<compile_context>
chip_gen: v6e
topology: v6e:2x2x1
jax: 0.10.0
libtpu: 0.0.40
codegen_flags: <defaults>
</compile_context>

<pallas_src>
import functools

import jax
import jax.numpy as jnp
from jax.experimental import pallas as pl
from jax.experimental.pallas import tpu as pltpu

LANE = 128


def _round_up(x, m):
    return (x + m - 1) // m * m


# ----------------------------- Pallas kernel ------------------------------

def fused_backbone_kernel(xcol_ref, w1_ref, b1_ref, w2_ref, b2_ref,
                          wh_ref, bh_ref, o_ref, xw2_ref):
    # xcol_ref: (1, H*W, K1p)      bf16   conv1 im2col LHS (K = 9*C_in, padded)
    # w1_ref  : (K1p, Np)          bf16
    # b1_ref  : (1, Np)            f32
    # w2_ref  : (3, 3*Np, Np)      bf16   conv2 weights, kx folded into K
    # b2_ref  : (1, Np)            f32
    # wh_ref  : (Np, Op)           bf16   head weights
    # bh_ref  : (1, Op)            f32
    # o_ref   : (1, 1, Op)         f32    sigmoid output
    # xw2_ref : (H+2, W, 3*Np)     bf16   scratch: row-wise im2col of conv1 out
    hp2, w, c3 = xw2_ref.shape
    h = hp2 - 2
    np_ = c3 // 3
    op = o_ref.shape[-1]

    # ---- conv1: single im2col matmul (K = 9*C_in) + bias + ReLU -----------
    h1 = jnp.dot(xcol_ref[0], w1_ref[...],
                 preferred_element_type=jnp.float32)             # (HW, Np) f32
    h1 = jnp.maximum(h1 + b1_ref[...], 0.0)
    h1_3d = h1.reshape(h, w, np_)                                # (H, W, Np)

    # ---- build conv2 LHS: fold the 3 kx taps into the contraction dim -----
    # xw2[1+y, x, kx*Np + c] = h1_pad[1+y, x+kx, c]; rows 0 / H+1 are the halo.
    col = jax.lax.broadcasted_iota(jnp.int32, (h, w, np_), 1)
    zeros = jnp.zeros_like(h1_3d)
    left = jnp.where(col == 0, zeros,
                     pltpu.roll(h1_3d, shift=1, axis=1))         # h1[y, x-1]
    right = jnp.where(col == w - 1, zeros,
                      pltpu.roll(h1_3d, shift=w - 1, axis=1))    # h1[y, x+1]

    halo_row = jnp.zeros((w, c3), jnp.bfloat16)
    xw2_ref[0] = halo_row
    xw2_ref[h + 1] = halo_row
    xw2_ref[1:h + 1, :, 0:np_] = left.astype(jnp.bfloat16)       # kx = 0 tap
    xw2_ref[1:h + 1, :, np_:2 * np_] = h1_3d.astype(jnp.bfloat16)   # kx = 1
    xw2_ref[1:h + 1, :, 2 * np_:3 * np_] = right.astype(jnp.bfloat16)  # kx = 2

    # ---- conv2: 3 matmuls with K = 3*Np, contiguous leading-dim slices ----
    acc = None
    for ky in range(3):
        lhs = xw2_ref[ky:ky + h].reshape(h * w, 3 * np_)         # (HW, 3*Np) bf16
        contrib = jnp.dot(lhs, w2_ref[ky],
                          preferred_element_type=jnp.float32)    # (HW, Np) f32
        acc = contrib if acc is None else acc + contrib
    feat = jnp.maximum(acc + b2_ref[...], 0.0)                   # (HW, Np) f32

    # ---- global average pool (XLU reduce, f32) + linear head + sigmoid ----
    pooled = jnp.sum(feat, axis=0, keepdims=True) * jnp.float32(1.0 / (h * w))
    z = jnp.dot(pooled.astype(jnp.bfloat16), wh_ref[...],
                preferred_element_type=jnp.float32) + bh_ref[...]   # (1, Op)
    sig = 1.0 / (1.0 + jnp.exp(-z))                              # exact sigmoid
    o_ref[...] = sig.reshape(1, 1, op)


# ------------------------------- JAX glue ---------------------------------

def fused_backbone(xcol, w1, b1, w2, b2, w_head, b_head, H, W):
    """One fused pallas_call: conv1 + conv2 + GAP + head + sigmoid, grid over B."""
    B, HW, K1p = xcol.shape
    Np = w1.shape[1]
    Op = w_head.shape[1]
    return pl.pallas_call(
        fused_backbone_kernel,
        out_shape=jax.ShapeDtypeStruct((B, 1, Op), jnp.float32),
        grid=(B,),
        in_specs=[
            pl.BlockSpec((1, HW, K1p), lambda i: (i, 0, 0)),
            pl.BlockSpec((K1p, Np), lambda i: (0, 0)),
            pl.BlockSpec((1, Np), lambda i: (0, 0)),
            pl.BlockSpec((3, 3 * Np, Np), lambda i: (0, 0, 0)),
            pl.BlockSpec((1, Np), lambda i: (0, 0)),
            pl.BlockSpec((Np, Op), lambda i: (0, 0)),
            pl.BlockSpec((1, Op), lambda i: (0, 0)),
        ],
        out_specs=pl.BlockSpec((1, 1, Op), lambda i: (i, 0, 0)),
        scratch_shapes=[pltpu.VMEM((H + 2, W, 3 * Np), jnp.bfloat16)],
        compiler_params=pltpu.CompilerParams(
            dimension_semantics=("parallel",)),
    )(xcol, w1, b1, w2, b2, w_head, b_head)


# --------------------------- model construction ---------------------------

def init_params(key, ch_in, hidden, ch_out):
    """Weights laid out for the fused kernel; hidden / head lanes padded to 128."""
    hid_p = _round_up(hidden, LANE)
    k1_p = _round_up(9 * ch_in, LANE)
    out_p = _round_up(ch_out, LANE)
    k1, k2, k3 = jax.random.split(key, 3)
    scale = 0.1
    w1 = scale * jax.random.normal(k1, (9, ch_in, hidden), jnp.float32)
    w2 = scale * jax.random.normal(k2, (3, 3, hidden, hidden), jnp.float32)
    wh = scale * jax.random.normal(k3, (hidden, ch_out), jnp.float32)

    # conv1: flat im2col weight (9*C_in, hidden), row index = (ky*3+kx)*C_in + c
    w1p = jnp.zeros((k1_p, hid_p), jnp.float32)
    w1p = w1p.at[:9 * ch_in, :hidden].set(w1.reshape(9 * ch_in, hidden))
    # conv2: kx folded into K -> (3, 3*Np, Np), row index = kx*Np + c
    w2p = jnp.zeros((3, 3, hid_p, hid_p), jnp.float32)
    w2p = w2p.at[:, :, :hidden, :hidden].set(w2).reshape(3, 3 * hid_p, hid_p)
    # head
    whp = jnp.zeros((hid_p, out_p), jnp.float32).at[:hidden, :ch_out].set(wh)

    return {
        "w1": w1p.astype(jnp.bfloat16),
        "b1": jnp.zeros((1, hid_p), jnp.float32),
        "w2": w2p.astype(jnp.bfloat16),
        "b2": jnp.zeros((1, hid_p), jnp.float32),
        "w_head": whp.astype(jnp.bfloat16),
        "b_head": jnp.zeros((1, out_p), jnp.float32),
    }


@functools.partial(jax.jit, static_argnames=("ch_out",))
def design_feature_generator(params, x_nchw, *, ch_out):
    # NCHW (PyTorch) -> NHWC; build the conv1 im2col LHS on the raw C_in=4
    # channels (no 4->128 padding in HBM), pad K to 128 lanes only once.
    B, C, H, W = x_nchw.shape
    x = jnp.transpose(x_nchw, (0, 2, 3, 1)).astype(jnp.float32)  # (B,H,W,C)
    xp = jnp.pad(x, ((0, 0), (1, 1), (1, 1), (0, 0)))            # 3x3 halo
    cols = [xp[:, ky:ky + H, kx:kx + W, :]
            for ky in range(3) for kx in range(3)]               # tap-major
    xcol = jnp.concatenate(cols, axis=-1).reshape(B, H * W, 9 * C)
    k1_p = params["w1"].shape[0]
    xcol = jnp.pad(xcol, ((0, 0), (0, 0), (0, k1_p - 9 * C))).astype(jnp.bfloat16)

    out = fused_backbone(xcol, params["w1"], params["b1"],
                         params["w2"], params["b2"],
                         params["w_head"], params["b_head"], H, W)   # (B,1,Op)
    return out[:, 0, :ch_out]                                        # sigmoid output


# --------------------------------- main ------------------------------------

if __name__ == "__main__":
    key = jax.random.PRNGKey(0)
    k_in, k_param = jax.random.split(key)

    B, C_IN, H, W = 2, 4, 16, 16
    HIDDEN, CH_OUT = 32, 8

    x = jax.random.normal(k_in, (B, C_IN, H, W), jnp.float32)    # NCHW input
    params = init_params(k_param, C_IN, HIDDEN, CH_OUT)

    out = design_feature_generator(params, x, ch_out=CH_OUT)
    out = jax.block_until_ready(out)

    assert out.shape == (B, CH_OUT)
    assert bool(jnp.all((out >= 0.0) & (out <= 1.0)))
    print("KERNEL_OK")
</pallas_src>

<mosaic_0001>
module attributes {stable_mosaic.version = 11 : i64} {
  func.func @fused_backbone_kernel(%arg0: i32, %arg1: memref<1x256x128xbf16, #tpu.memory_space<vmem>>, %arg2: memref<128x128xbf16, #tpu.memory_space<vmem>>, %arg3: memref<1x128xf32, #tpu.memory_space<vmem>>, %arg4: memref<3x384x128xbf16, #tpu.memory_space<vmem>>, %arg5: memref<1x128xf32, #tpu.memory_space<vmem>>, %arg6: memref<128x128xbf16, #tpu.memory_space<vmem>>, %arg7: memref<1x128xf32, #tpu.memory_space<vmem>>, %arg8: memref<1x1x128xf32, #tpu.memory_space<vmem>>, %arg9: memref<18x16x384xbf16, #tpu.memory_space<vmem>>) attributes {dimension_semantics = [#tpu.dimension_semantics<parallel>], iteration_bounds = array<i64: 2>, scalar_prefetch = 0 : i64, scratch_operands = 1 : i64, tpu.core_type = #tpu.core_type<tc>, window_params = [{transform_indices = @transform_0, window_bounds = array<i64: 1, 256, 128>}, {pipeline_mode = #tpu.pipeline_mode<synchronous>, transform_indices = @transform_1, window_bounds = array<i64: 128, 128>}, {pipeline_mode = #tpu.pipeline_mode<synchronous>, transform_indices = @transform_2, window_bounds = array<i64: 1, 128>}, {pipeline_mode = #tpu.pipeline_mode<synchronous>, transform_indices = @transform_3, window_bounds = array<i64: 3, 384, 128>}, {pipeline_mode = #tpu.pipeline_mode<synchronous>, transform_indices = @transform_4, window_bounds = array<i64: 1, 128>}, {pipeline_mode = #tpu.pipeline_mode<synchronous>, transform_indices = @transform_5, window_bounds = array<i64: 128, 128>}, {pipeline_mode = #tpu.pipeline_mode<synchronous>, transform_indices = @transform_6, window_bounds = array<i64: 1, 128>}, {transform_indices = @transform_7, window_bounds = array<i64: 1, 1, 128>}]} {
    %c0 = arith.constant 0 : index
    %c0_0 = arith.constant 0 : index
    %c0_1 = arith.constant 0 : index
    %0 = vector.load %arg1[%c0, %c0_0, %c0_1] : memref<1x256x128xbf16, #tpu.memory_space<vmem>>, vector<1x256x128xbf16>
    %1 = vector.shape_cast %0 : vector<1x256x128xbf16> to vector<256x128xbf16>
    %c0_2 = arith.constant 0 : index
    %c0_3 = arith.constant 0 : index
    %2 = vector.load %arg2[%c0_2, %c0_3] : memref<128x128xbf16, #tpu.memory_space<vmem>>, vector<128x128xbf16>
    %cst = arith.constant dense<0.000000e+00> : vector<256x128xf32>
    %3 = tpu.matmul %1, %2, %cst {dimension_numbers = #tpu.dot_dimension_numbers<[1], [0], [0], [1], [0, 0, 1, 1], [], []>} : vector<256x128xbf16>, vector<128x128xbf16>, vector<256x128xf32> -> vector<256x128xf32>
    %c0_4 = arith.constant 0 : index
    %c0_5 = arith.constant 0 : index
    %4 = vector.load %arg3[%c0_4, %c0_5] : memref<1x128xf32, #tpu.memory_space<vmem>>, vector<1x128xf32>
    %5 = vector.broadcast %4 : vector<1x128xf32> to vector<256x128xf32>
    %6 = arith.addf %3, %5 : vector<256x128xf32>
    %cst_6 = arith.constant 0.000000e+00 : f32
    %7 = vector.broadcast %cst_6 : f32 to vector<256x128xf32>
    %8 = arith.maximumf %6, %7 : vector<256x128xf32>
    %9 = vector.shape_cast %8 : vector<256x128xf32> to vector<16x16x128xf32>
    %10 = tpu.iota {dimensions = array<i32: 1>} : vector<16x16x128xi32>
    %cst_7 = arith.constant 0.000000e+00 : f32
    %11 = vector.broadcast %cst_7 : f32 to vector<16x16x128xf32>
    %c0_i32 = arith.constant 0 : i32
    %12 = vector.broadcast %c0_i32 : i32 to vector<16x16x128xi32>
    %13 = arith.cmpi eq, %10, %12 : vector<16x16x128xi32>
    %c1_i32 = arith.constant 1 : i32
    %14 = tpu.dynamic_rotate %9 by %c1_i32 dim 1 : vector<16x16x128xf32>, i32 -> vector<16x16x128xf32>
    %15 = arith.select %13, %11, %14 : vector<16x16x128xi1>, vector<16x16x128xf32>
    %c15_i32 = arith.constant 15 : i32
    %16 = vector.broadcast %c15_i32 : i32 to vector<16x16x128xi32>
    %17 = arith.cmpi eq, %10, %16 : vector<16x16x128xi32>
    %c15_i32_8 = arith.constant 15 : i32
    %18 = tpu.dynamic_rotate %9 by %c15_i32_8 dim 1 : vector<16x16x128xf32>, i32 -> vector<16x16x128xf32>
    %19 = arith.select %17, %11, %18 : vector<16x16x128xi1>, vector<16x16x128xf32>
    %cst_9 = arith.constant 0.000000e+00 : bf16
    %20 = vector.broadcast %cst_9 : bf16 to vector<16x384xbf16>
    %c0_10 = arith.constant 0 : index
    %c0_11 = arith.constant 0 : index
    %c0_12 = arith.constant 0 : index
    %21 = vector.load %arg9[%c0_10, %c0_11, %c0_12] : memref<18x16x384xbf16, #tpu.memory_space<vmem>>, vector<1x16x384xbf16>
    %22 = vector.shape_cast %21 : vector<1x16x384xbf16> to vector<16x384xbf16>
    %23 = vector.shape_cast %20 : vector<16x384xbf16> to vector<1x16x384xbf16>
    tpu.vector_store %arg9[%c0_10, %c0_11, %c0_12], %23 {strides = array<i32>} : memref<18x16x384xbf16, #tpu.memory_space<vmem>>, vector<1x16x384xbf16>,
    %c17 = arith.constant 17 : index
    %c0_13 = arith.constant 0 : index
    %c0_14 = arith.constant 0 : index
    %24 = vector.load %arg9[%c17, %c0_13, %c0_14] : memref<18x16x384xbf16, #tpu.memory_space<vmem>>, vector<1x16x384xbf16>
    %25 = vector.shape_cast %24 : vector<1x16x384xbf16> to vector<16x384xbf16>
    %26 = vector.shape_cast %20 : vector<16x384xbf16> to vector<1x16x384xbf16>
    tpu.vector_store %arg9[%c17, %c0_13, %c0_14], %26 {strides = array<i32>} : memref<18x16x384xbf16, #tpu.memory_space<vmem>>, vector<1x16x384xbf16>,
    %27 = arith.truncf %15 : vector<16x16x128xf32> to vector<16x16x128xbf16>
    %c1 = arith.constant 1 : index
    %c0_15 = arith.constant 0 : index
    %c0_16 = arith.constant 0 : index
    %28 = vector.load %arg9[%c1, %c0_15, %c0_16] : memref<18x16x384xbf16, #tpu.memory_space<vmem>>, vector<16x16x128xbf16>
    tpu.vector_store %arg9[%c1, %c0_15, %c0_16], %27 {strides = array<i32>} : memref<18x16x384xbf16, #tpu.memory_space<vmem>>, vector<16x16x128xbf16>,
    %29 = arith.truncf %9 : vector<16x16x128xf32> to vector<16x16x128xbf16>
    %c1_17 = arith.constant 1 : index
    %c0_18 = arith.constant 0 : index
    %c128 = arith.constant 128 : index
    %30 = vector.load %arg9[%c1_17, %c0_18, %c128] : memref<18x16x384xbf16, #tpu.memory_space<vmem>>, vector<16x16x128xbf16>
    tpu.vector_store %arg9[%c1_17, %c0_18, %c128], %29 {strides = array<i32>} : memref<18x16x384xbf16, #tpu.memory_space<vmem>>, vector<16x16x128xbf16>,
    %31 = arith.truncf %19 : vector<16x16x128xf32> to vector<16x16x128xbf16>
    %c1_19 = arith.constant 1 : index
    %c0_20 = arith.constant 0 : index
    %c256 = arith.constant 256 : index
    %32 = vector.load %arg9[%c1_19, %c0_20, %c256] : memref<18x16x384xbf16, #tpu.memory_space<vmem>>, vector<16x16x128xbf16>
    tpu.vector_store %arg9[%c1_19, %c0_20, %c256], %31 {strides = array<i32>} : memref<18x16x384xbf16, #tpu.memory_space<vmem>>, vector<16x16x128xbf16>,
    %c0_21 = arith.constant 0 : index
    %c0_22 = arith.constant 0 : index
    %c0_23 = arith.constant 0 : index
    %33 = vector.load %arg9[%c0_21, %c0_22, %c0_23] : memref<18x16x384xbf16, #tpu.memory_space<vmem>>, vector<16x16x384xbf16>
    %34 = vector.shape_cast %33 : vector<16x16x384xbf16> to vector<256x384xbf16>
    %c0_24 = arith.constant 0 : index
    %c0_25 = arith.constant 0 : index
    %c0_26 = arith.constant 0 : index
    %35 = vector.load %arg4[%c0_24, %c0_25, %c0_26] : memref<3x384x128xbf16, #tpu.memory_space<vmem>>, vector<1x384x128xbf16>
    %36 = vector.shape_cast %35 : vector<1x384x128xbf16> to vector<384x128xbf16>
    %cst_27 = arith.constant dense<0.000000e+00> : vector<256x128xf32>
    %37 = tpu.matmul %34, %36, %cst_27 {dimension_numbers = #tpu.dot_dimension_numbers<[1], [0], [0], [1], [0, 0, 1, 1], [], []>} : vector<256x384xbf16>, vector<384x128xbf16>, vector<256x128xf32> -> vector<256x128xf32>
    %c1_28 = arith.constant 1 : index
    %c0_29 = arith.constant 0 : index
    %c0_30 = arith.constant 0 : index
    %38 = vector.load %arg9[%c1_28, %c0_29, %c0_30] : memref<18x16x384xbf16, #tpu.memory_space<vmem>>, vector<16x16x384xbf16>
    %39 = vector.shape_cast %38 : vector<16x16x384xbf16> to vector<256x384xbf16>
    %c1_31 = arith.constant 1 : index
    %c0_32 = arith.constant 0 : index
    %c0_33 = arith.constant 0 : index
    %40 = vector.load %arg4[%c1_31, %c0_32, %c0_33] : memref<3x384x128xbf16, #tpu.memory_space<vmem>>, vector<1x384x128xbf16>
    %41 = vector.shape_cast %40 : vector<1x384x128xbf16> to vector<384x128xbf16>
    %cst_34 = arith.constant dense<0.000000e+00> : vector<256x128xf32>
    %42 = tpu.matmul %39, %41, %cst_34 {dimension_numbers = #tpu.dot_dimension_numbers<[1], [0], [0], [1], [0, 0, 1, 1], [], []>} : vector<256x384xbf16>, vector<384x128xbf16>, vector<256x128xf32> -> vector<256x128xf32>
    %43 = arith.addf %37, %42 : vector<256x128xf32>
    %c2 = arith.constant 2 : index
    %c0_35 = arith.constant 0 : index
    %c0_36 = arith.constant 0 : index
    %44 = vector.load %arg9[%c2, %c0_35, %c0_36] : memref<18x16x384xbf16, #tpu.memory_space<vmem>>, vector<16x16x384xbf16>
    %45 = vector.shape_cast %44 : vector<16x16x384xbf16> to vector<256x384xbf16>
    %c2_37 = arith.constant 2 : index
    %c0_38 = arith.constant 0 : index
    %c0_39 = arith.constant 0 : index
    %46 = vector.load %arg4[%c2_37, %c0_38, %c0_39] : memref<3x384x128xbf16, #tpu.memory_space<vmem>>, vector<1x384x128xbf16>
    %47 = vector.shape_cast %46 : vector<1x384x128xbf16> to vector<384x128xbf16>
    %cst_40 = arith.constant dense<0.000000e+00> : vector<256x128xf32>
    %48 = tpu.matmul %45, %47, %cst_40 {dimension_numbers = #tpu.dot_dimension_numbers<[1], [0], [0], [1], [0, 0, 1, 1], [], []>} : vector<256x384xbf16>, vector<384x128xbf16>, vector<256x128xf32> -> vector<256x128xf32>
    %49 = arith.addf %43, %48 : vector<256x128xf32>
    %c0_41 = arith.constant 0 : index
    %c0_42 = arith.constant 0 : index
    %50 = vector.load %arg5[%c0_41, %c0_42] : memref<1x128xf32, #tpu.memory_space<vmem>>, vector<1x128xf32>
    %51 = vector.broadcast %50 : vector<1x128xf32> to vector<256x128xf32>
    %52 = arith.addf %49, %51 : vector<256x128xf32>
    %cst_43 = arith.constant 0.000000e+00 : f32
    %53 = vector.broadcast %cst_43 : f32 to vector<256x128xf32>
    %54 = arith.maximumf %52, %53 : vector<256x128xf32>
    %cst_44 = arith.constant dense<0.000000e+00> : vector<128xf32>
    %55 = vector.multi_reduction <add>, %54, %cst_44 [0] : vector<256x128xf32> to vector<128xf32>
    %56 = vector.shape_cast %55 : vector<128xf32> to vector<1x128xf32>
    %cst_45 = arith.constant 3.906250e-03 : f32
    %57 = vector.broadcast %cst_45 : f32 to vector<1x128xf32>
    %58 = arith.mulf %56, %57 : vector<1x128xf32>
    %59 = arith.truncf %58 : vector<1x128xf32> to vector<1x128xbf16>
    %c0_46 = arith.constant 0 : index
    %c0_47 = arith.constant 0 : index
    %60 = vector.load %arg6[%c0_46, %c0_47] : memref<128x128xbf16, #tpu.memory_space<vmem>>, vector<128x128xbf16>
    %cst_48 = arith.constant dense<0.000000e+00> : vector<1x128xf32>
    %61 = tpu.matmul %59, %60, %cst_48 {dimension_numbers = #tpu.dot_dimension_numbers<[1], [0], [0], [1], [0, 0, 1, 1], [], []>} : vector<1x128xbf16>, vector<128x128xbf16>, vector<1x128xf32> -> vector<1x128xf32>
    %c0_49 = arith.constant 0 : index
    %c0_50 = arith.constant 0 : index
    %62 = vector.load %arg7[%c0_49, %c0_50] : memref<1x128xf32, #tpu.memory_space<vmem>>, vector<1x128xf32>
    %63 = arith.addf %61, %62 : vector<1x128xf32>
    %cst_51 = arith.constant 0.000000e+00 : f32
    %64 = vector.broadcast %cst_51 : f32 to vector<1x128xf32>
    %65 = arith.subf %64, %63 : vector<1x128xf32>
    %66 = math.exp %65 : vector<1x128xf32>
    %cst_52 = arith.constant 1.000000e+00 : f32
    %67 = vector.broadcast %cst_52 : f32 to vector<1x128xf32>
    %68 = arith.addf %67, %66 : vector<1x128xf32>
    %cst_53 = arith.constant 1.000000e+00 : f32
    %69 = vector.broadcast %cst_53 : f32 to vector<1x128xf32>
    %70 = arith.divf %69, %68 : vector<1x128xf32>
    %71 = vector.shape_cast %70 : vector<1x128xf32> to vector<1x1x128xf32>
    %c0_54 = arith.constant 0 : index
    %c0_55 = arith.constant 0 : index
    %c0_56 = arith.constant 0 : index
    %72 = vector.load %arg8[%c0_54, %c0_55, %c0_56] : memref<1x1x128xf32, #tpu.memory_space<vmem>>, vector<1x1x128xf32>
    tpu.vector_store %arg8[%c0_54, %c0_55, %c0_56], %71 {strides = array<i32>} : memref<1x1x128xf32, #tpu.memory_space<vmem>>, vector<1x1x128xf32>,
    return
  }
  func.func @transform_0(%arg0: i32) -> (i32, i32, i32) {
    %c0_i32 = arith.constant 0 : i32
    %c0_i32_0 = arith.constant 0 : i32
    %c0_i32_1 = arith.constant 0 : i32
    return %arg0, %c0_i32, %c0_i32_0 : i32, i32, i32
  }
  func.func @transform_1(%arg0: i32) -> (i32, i32) {
    %c0_i32 = arith.constant 0 : i32
    %c0_i32_0 = arith.constant 0 : i32
    %c0_i32_1 = arith.constant 0 : i32
    return %c0_i32, %c0_i32_0 : i32, i32
  }
  func.func @transform_2(%arg0: i32) -> (i32, i32) {
    %c0_i32 = arith.constant 0 : i32
    %c0_i32_0 = arith.constant 0 : i32
    %c0_i32_1 = arith.constant 0 : i32
    return %c0_i32, %c0_i32_0 : i32, i32
  }
  func.func @transform_3(%arg0: i32) -> (i32, i32, i32) {
    %c0_i32 = arith.constant 0 : i32
    %c0_i32_0 = arith.constant 0 : i32
    %c0_i32_1 = arith.constant 0 : i32
    %c0_i32_2 = arith.constant 0 : i32
    return %c0_i32, %c0_i32_0, %c0_i32_1 : i32, i32, i32
  }
  func.func @transform_4(%arg0: i32) -> (i32, i32) {
    %c0_i32 = arith.constant 0 : i32
    %c0_i32_0 = arith.constant 0 : i32
    %c0_i32_1 = arith.constant 0 : i32
    return %c0_i32, %c0_i32_0 : i32, i32
  }
  func.func @transform_5(%arg0: i32) -> (i32, i32) {
    %c0_i32 = arith.constant 0 : i32
    %c0_i32_0 = arith.constant 0 : i32
    %c0_i32_1 = arith.constant 0 : i32
    return %c0_i32, %c0_i32_0 : i32, i32
  }
  func.func @transform_6(%arg0: i32) -> (i32, i32) {
    %c0_i32 = arith.constant 0 : i32
    %c0_i32_0 = arith.constant 0 : i32
    %c0_i32_1 = arith.constant 0 : i32
    return %c0_i32, %c0_i32_0 : i32, i32
  }
  func.func @transform_7(%arg0: i32) -> (i32, i32, i32) {
    %c0_i32 = arith.constant 0 : i32
    %c0_i32_0 = arith.constant 0 : i32
    %c0_i32_1 = arith.constant 0 : i32
    return %arg0, %c0_i32, %c0_i32_0 : i32, i32, i32
  }
}

</mosaic_0001>

<llo_original>
// kernel: design_feature_generator.1
$region0: #{design_feature_generator.1}
  #allocation0 [shape = 'u32[]', space=smem, size = 0x4, offset = 0x4, fixed_abs, tag = 'smem constant byte address 0x4 - core index']
  #allocation1 [shape = 'u32[144,128]{1,0:T(1,128)}', space=vmem, size = 0x12000, scoped, tag = 'internal scratch']
  #allocation2 [shape = 'bf16[18,16,384]{2,1,0:T(8,128)(2,1)}', space=vmem, size = 0x36000, scoped, tag = 'scratch operand']
  %s0 = inlined_call_operand.vmem [shape: bf16[2,256,128], index: 0, kind: input, shape index: {}]
  %s1 = inlined_call_operand.vmem [shape: bf16[128,128], index: 1, kind: input, shape index: {}]
  %s2 = inlined_call_operand.vmem [shape: f32[1,128], index: 2, kind: input, shape index: {}]
  %s3 = inlined_call_operand.vmem [shape: bf16[3,384,128], index: 3, kind: input, shape index: {}]
  %s4 = inlined_call_operand.vmem [shape: f32[1,128], index: 4, kind: input, shape index: {}]
  %s5 = inlined_call_operand.vmem [shape: bf16[128,128], index: 5, kind: input, shape index: {}]
  %s6 = inlined_call_operand.vmem [shape: f32[1,128], index: 6, kind: input, shape index: {}]
  %s7 = inlined_call_operand.hbm [shape: f32[2,1,128], index: 7, kind: output, shape index: {}]
  %s8 = sld [smem:[#allocation0]]
  $region61: #{design_feature_generator.1} parent=0
    _
  %s10 = ssub.s32 1, %s8
  %s11 = scalar_select 0, %s10, %s8
  $region1: #{design_feature_generator.1} parent=0
    #allocation3 [shape = 'u8[1024]{0}', space=vmem, size = 0x400, scoped, tag = 'output window, operand 0']
    #allocation4 [shape = 's32[2]{0}', space=sflag, size = 0x8, scoped, tag = 'scoped memory for design_feature_generator.1']
    %12 = vsyncpa [#allocation4], 0
    %s13 = scalar_lea.sflag [#allocation4], 1
    %14 = vsyncpa %s13, 0
    loop: start=0, step=1, limit=4
    $region2: #{design_feature_generator.1} parent=1 // loop_pre_header
      _
    $region3: #{design_feature_generator.1} parent=1 // loop_header
      %s16 = sphi 0, %s20
      %p17 = scmp.ge.s32.totalorder %s16, 4
      %s26 = sphi 0, %s28
      %s29 = sphi 0, %s26
      %s30 = sphi 0, %s29
      %s46 = sphi 0, %s30
      %s50 = sphi 0, %s50
      %s52 = sphi 0, %s50
      %s53 = sphi 0, %s52
      %s67 = sphi 0, %s53
      %s71 = sphi 0, %s71
      %s73 = sphi 0, %s71
      %s74 = sphi 0, %s73
      %s88 = sphi 0, %s74
      %s92 = sphi 0, %s92
      %s94 = sphi 0, %s92
      %s95 = sphi 0, %s94
      %s109 = sphi 0, %s95
      %s113 = sphi 0, %s113
      %s115 = sphi 0, %s113
      %s116 = sphi 0, %s115
      %s130 = sphi 0, %s116
      %s134 = sphi 0, %s134
      %s136 = sphi 0, %s134
      %s137 = sphi 0, %s136
      %s151 = sphi 0, %s137
      %s155 = sphi 0, %s155
      %s157 = sphi 0, %s155
      %s158 = sphi 0, %s157
      %s172 = sphi 0, %s158
      %s178 = sphi 0, %s180
      %s181 = sphi 0, %s178
      %s182 = sphi 0, %s181
      %s198 = sphi 0, %s182
    $region4: #{design_feature_generator.1} parent=1 // loop_header_branch
      %19 = sbr.rel (%p17) target = $region8
    $region5: #{design_feature_generator.1} parent=1 // loop_body
      %s21 = ssub.s32 %s16, 1
      %s22 = ssub.s32 %s16, 2
      %s23 = sadd.s32 %s16, 1
      %s24 = ssub.s32 %s16, %s23
      %p25 = scmp.eq.s32.totalorder %s24, 0
      %s27 = sadd.s32 %s26, 1
      %s28 = scalar_select %p25, %s26, %s27
      %p31 = pneg %p25
      %p32 = scmp.eq.s32.totalorder %s16, 1
      %p33 = por %p31, %p32
      %p34 = scmp.ne.s32.totalorder %s26, %s29
      %p35 = scmp.eq.s32.totalorder %s16, 0
      %p36 = por %p34, %p35
      %p37 = scmp.ne.s32.totalorder %s26, %s29
      %p38 = scmp.eq.s32.totalorder %s21, 1
      %p39 = por %p37, %p38
      %p40 = scmp.ne.s32.totalorder %s29, %s30
      %p41 = scmp.eq.s32.totalorder %s21, 0
      %p42 = por %p40, %p41
      %p43 = scmp.ne.s32.totalorder %s29, %s30
      %p44 = scmp.eq.s32.totalorder %s22, 1
      %p45 = por %p43, %p44
      %p47 = scmp.ne.s32.totalorder %s30, %s46
      %p48 = scmp.eq.s32.totalorder %s22, 0
      %p49 = por %p47, %p48
      %s51 = sadd.s32 %s50, 1
      %p54 = scmp.eq.s32.totalorder %s16, 1
      %p55 = scmp.ne.s32.totalorder %s50, %s52
      %p56 = scmp.eq.s32.totalorder %s16, 0
      %p57 = por %p55, %p56
      %p58 = scmp.ne.s32.totalorder %s50, %s52
      %p59 = scmp.eq.s32.totalorder %s21, 1
      %p60 = por %p58, %p59
      %p61 = scmp.ne.s32.totalorder %s52, %s53
      %p62 = scmp.eq.s32.totalorder %s21, 0
      %p63 = por %p61, %p62
      %p64 = scmp.ne.s32.totalorder %s52, %s53
      %p65 = scmp.eq.s32.totalorder %s22, 1
      %p66 = por %p64, %p65
      %p68 = scmp.ne.s32.totalorder %s53, %s67
      %p69 = scmp.eq.s32.totalorder %s22, 0
      %p70 = por %p68, %p69
      %s72 = sadd.s32 %s71, 1
      %p75 = scmp.eq.s32.totalorder %s16, 1
      %p76 = scmp.ne.s32.totalorder %s71, %s73
      %p77 = scmp.eq.s32.totalorder %s16, 0
      %p78 = por %p76, %p77
      %p79 = scmp.ne.s32.totalorder %s71, %s73
      %p80 = scmp.eq.s32.totalorder %s21, 1
      %p81 = por %p79, %p80
      %p82 = scmp.ne.s32.totalorder %s73, %s74
      %p83 = scmp.eq.s32.totalorder %s21, 0
      %p84 = por %p82, %p83
      %p85 = scmp.ne.s32.totalorder %s73, %s74
      %p86 = scmp.eq.s32.totalorder %s22, 1
      %p87 = por %p85, %p86
      %p89 = scmp.ne.s32.totalorder %s74, %s88
      %p90 = scmp.eq.s32.totalorder %s22, 0
      %p91 = por %p89, %p90
      %s93 = sadd.s32 %s92, 1
      %p96 = scmp.eq.s32.totalorder %s16, 1
      %p97 = scmp.ne.s32.totalorder %s92, %s94
      %p98 = scmp.eq.s32.totalorder %s16, 0
      %p99 = por %p97, %p98
      %p100 = scmp.ne.s32.totalorder %s92, %s94
      %p101 = scmp.eq.s32.totalorder %s21, 1
      %p102 = por %p100, %p101
      %p103 = scmp.ne.s32.totalorder %s94, %s95
      %p104 = scmp.eq.s32.totalorder %s21, 0
      %p105 = por %p103, %p104
      %p106 = scmp.ne.s32.totalorder %s94, %s95
      %p107 = scmp.eq.s32.totalorder %s22, 1
      %p108 = por %p106, %p107
      %p110 = scmp.ne.s32.totalorder %s95, %s109
      %p111 = scmp.eq.s32.totalorder %s22, 0
      %p112 = por %p110, %p111
      %s114 = sadd.s32 %s113, 1
      %p117 = scmp.eq.s32.totalorder %s16, 1
      %p118 = scmp.ne.s32.totalorder %s113, %s115
      %p119 = scmp.eq.s32.totalorder %s16, 0
      %p120 = por %p118, %p119
      %p121 = scmp.ne.s32.totalorder %s113, %s115
      %p122 = scmp.eq.s32.totalorder %s21, 1
      %p123 = por %p121, %p122
      %p124 = scmp.ne.s32.totalorder %s115, %s116
      %p125 = scmp.eq.s32.totalorder %s21, 0
      %p126 = por %p124, %p125
      %p127 = scmp.ne.s32.totalorder %s115, %s116
      %p128 = scmp.eq.s32.totalorder %s22, 1
      %p129 = por %p127, %p128
      %p131 = scmp.ne.s32.totalorder %s116, %s130
      %p132 = scmp.eq.s32.totalorder %s22, 0
      %p133 = por %p131, %p132
      %s135 = sadd.s32 %s134, 1
      %p138 = scmp.eq.s32.totalorder %s16, 1
      %p139 = scmp.ne.s32.totalorder %s134, %s136
      %p140 = scmp.eq.s32.totalorder %s16, 0
      %p141 = por %p139, %p140
      %p142 = scmp.ne.s32.totalorder %s134, %s136
      %p143 = scmp.eq.s32.totalorder %s21, 1
      %p144 = por %p142, %p143
      %p145 = scmp.ne.s32.totalorder %s136, %s137
      %p146 = scmp.eq.s32.totalorder %s21, 0
      %p147 = por %p145, %p146
      %p148 = scmp.ne.s32.totalorder %s136, %s137
      %p149 = scmp.eq.s32.totalorder %s22, 1
      %p150 = por %p148, %p149
      %p152 = scmp.ne.s32.totalorder %s137, %s151
      %p153 = scmp.eq.s32.totalorder %s22, 0
      %p154 = por %p152, %p153
      %s156 = sadd.s32 %s155, 1
      %p159 = scmp.eq.s32.totalorder %s16, 1
      %p160 = scmp.ne.s32.totalorder %s155, %s157
      %p161 = scmp.eq.s32.totalorder %s16, 0
      %p162 = por %p160, %p161
      %p163 = scmp.ne.s32.totalorder %s155, %s157
      %p164 = scmp.eq.s32.totalorder %s21, 1
      %p165 = por %p163, %p164
      %p166 = scmp.ne.s32.totalorder %s157, %s158
      %p167 = scmp.eq.s32.totalorder %s21, 0
      %p168 = por %p166, %p167
      %p169 = scmp.ne.s32.totalorder %s157, %s158
      %p170 = scmp.eq.s32.totalorder %s22, 1
      %p171 = por %p169, %p170
      %p173 = scmp.ne.s32.totalorder %s158, %s172
      %p174 = scmp.eq.s32.totalorder %s22, 0
      %p175 = por %p173, %p174
      %s176 = ssub.s32 %s16, %s23
      %p177 = scmp.eq.s32.totalorder %s176, 0
      %s179 = sadd.s32 %s178, 1
      %s180 = scalar_select %p177, %s178, %s179
      %p183 = pneg %p177
      %p184 = scmp.eq.s32.totalorder %s16, 1
      %p185 = por %p183, %p184
      %p186 = scmp.ne.s32.totalorder %s178, %s181
      %p187 = scmp.eq.s32.totalorder %s16, 0
      %p188 = por %p186, %p187
      %p189 = scmp.ne.s32.totalorder %s178, %s181
      %p190 = scmp.eq.s32.totalorder %s21, 1
      %p191 = por %p189, %p190
      %p192 = scmp.ne.s32.totalorder %s181, %s182
      %p193 = scmp.eq.s32.totalorder %s21, 0
      %p194 = por %p192, %p193
      %p195 = scmp.ne.s32.totalorder %s181, %s182
      %p196 = scmp.eq.s32.totalorder %s22, 1
      %p197 = por %p195, %p196
      %p199 = scmp.ne.s32.totalorder %s182, %s198
      %p200 = scmp.eq.s32.totalorder %s22, 0
      %p201 = por %p199, %p200
      %p202 = scmp.le.s32.totalorder 1, %s16
      %p203 = scmp.lt.s32.totalorder %s16, 3
      %p204 = pnand %p202, %p203
      %p205 = pneg %p204
      // Predicated region
      $region9: #{design_feature_generator.1} parent=5 // pred_check
        _
      $region10: #{design_feature_generator.1} parent=5 // pred_check_branch
        %207 = sbr.rel (%p204) target = $region12
      $region11: #{design_feature_generator.1} parent=5 // pred_region
        %s208 = ssub.s32 %s16, 1
        // Predicated region
        $region13: #{design_feature_generator.1} parent=11 // pred_check
          %p209 = pneg %p63
        $region14: #{design_feature_generator.1} parent=11 // pred_check_branch
          %211 = sbr.rel (%p209) target = $region16
        $region15: #{design_feature_generator.1} parent=11 // pred_region
          _
        $region16: #{design_feature_generator.1} parent=11 // pred_fallthru
          _
        // Predicated region
        $region17: #{design_feature_generator.1} parent=11 // pred_check
          %p212 = pneg %p84
        $region18: #{design_feature_generator.1} parent=11 // pred_check_branch
          %214 = sbr.rel (%p212) target = $region20
        $region19: #{design_feature_generator.1} parent=11 // pred_region
          _
        $region20: #{design_feature_generator.1} parent=11 // pred_fallthru
          _
        // Predicated region
        $region21: #{design_feature_generator.1} parent=11 // pred_check
          %p215 = pneg %p105
        $region22: #{design_feature_generator.1} parent=11 // pred_check_branch
          %217 = sbr.rel (%p215) target = $region24
        $region23: #{design_feature_generator.1} parent=11 // pred_region
          _
        $region24: #{design_feature_generator.1} parent=11 // pred_fallthru
          _
        // Predicated region
        $region25: #{design_feature_generator.1} parent=11 // pred_check
          %p218 = pneg %p126
        $region26: #{design_feature_generator.1} parent=11 // pred_check_branch
          %220 = sbr.rel (%p218) target = $region28
        $region27: #{design_feature_generator.1} parent=11 // pred_region
          _
        $region28: #{design_feature_generator.1} parent=11 // pred_fallthru
          _
        // Predicated region
        $region29: #{design_feature_generator.1} parent=11 // pred_check
          %p221 = pneg %p147
        $region30: #{design_feature_generator.1} parent=11 // pred_check_branch
          %223 = sbr.rel (%p221) target = $region32
        $region31: #{design_feature_generator.1} parent=11 // pred_region
          _
        $region32: #{design_feature_generator.1} parent=11 // pred_fallthru
          _
        // Predicated region
        $region33: #{design_feature_generator.1} parent=11 // pred_check
          %p224 = pneg %p168
        $region34: #{design_feature_generator.1} parent=11 // pred_check_branch
          %226 = sbr.rel (%p224) target = $region36
        $region35: #{design_feature_generator.1} parent=11 // pred_region
          _
        $region36: #{design_feature_generator.1} parent=11 // pred_fallthru
          _
      $region12: #{design_feature_generator.1} parent=5 // pred_fallthru
        _
      %p227 = scmp.lt.s32.totalorder %s16, 2
      // Predicated region
      $region37: #{design_feature_generator.1} parent=5 // pred_check
        %p228 = pneg %p227
      $region38: #{design_feature_generator.1} parent=5 // pred_check_branch
        %230 = sbr.rel (%p228) target = $region40
      $region39: #{design_feature_generator.1} parent=5 // pred_region
        // Predicated region
        $region41: #{design_feature_generator.1} parent=39 // pred_check
          %p231 = pneg %p36
        $region42: #{design_feature_generator.1} parent=39 // pred_check_branch
          %233 = sbr.rel (%p231) target = $region44
        $region43: #{design_feature_generator.1} parent=39 // pred_region
          %p234 = scmp.lt.s32.totalorder %s16, 1
          %s235 = scalar_select %p234, %s16, 1
          %s236 = smul.addr %s235, 32
          %s237 = smul.addr %s236, 4
          %s238 = scalar_lea.vmem %s0, %s237
        $region44: #{design_feature_generator.1} parent=39 // pred_fallthru
          _
      $region40: #{design_feature_generator.1} parent=5 // pred_fallthru
        _
      %p239 = scmp.le.s32.totalorder 1, %s16
      %p240 = scmp.lt.s32.totalorder %s16, 3
      %p241 = pnand %p239, %p240
      %p242 = pneg %p241
      // Predicated region
      $region45: #{design_feature_generator.1} parent=5 // pred_check
        _
      $region46: #{design_feature_generator.1} parent=5 // pred_check_branch
        %244 = sbr.rel (%p241) target = $region48
      $region47: #{design_feature_generator.1} parent=5 // pred_region
        %s245 = ssub.s32 %s16, 1
        %p246 = scmp.lt.s32.totalorder %s21, 1
        %s247 = scalar_select %p246, %s21, 1
        %s248 = smul.addr %s247, 32
        %s249 = smul.addr %s248, 4
        %s250 = scalar_lea.vmem %s0, %s249
        %p251 = pneg %p42
        %p252 = pneg %p39
        %p253 = pneg %p63
        %p254 = pneg %p60
        %p255 = pneg %p84
        %p256 = pneg %p81
        %p257 = pneg %p105
        %p258 = pneg %p102
        %p259 = pneg %p126
        %p260 = pneg %p123
        %p261 = pneg %p147
        %p262 = pneg %p144
        %p263 = pneg %p168
        %p264 = pneg %p165
        %p265 = pneg %p194
        %p266 = pneg %p191
        %s267 = sand.u32 %s181, 1
        %s268 = scalar_lea.sflag [#allocation4], %s267
        %s269 = sand.u32 %s181, 1
        %s270 = scalar_lea.vmem [#allocation3], %s269
        %p271 = scmp.lt.s32.totalorder %s21, 1
        %s272 = scalar_select %p271, %s21, 1
        %s273 = smul.addr %s272, 32
        %s274 = smul.addr %s273, 4
        %s275 = scalar_lea.vmem %s0, %s274
        %v277 = vld [vmem:[%s275] sm:$0xf]
        %v278 = vld [vmem:[%s275 + $0x4] sm:$0xf]
        %v279 = vld [vmem:[%s275 + $0x8] sm:$0xf]
        %v280 = vld [vmem:[%s275 + $0xc] sm:$0xf]
        %v281 = vld [vmem:[%s275 + $0x10] sm:$0xf]
        %v282 = vld [vmem:[%s275 + $0x14] sm:$0xf]
        %v283 = vld [vmem:[%s275 + $0x18] sm:$0xf]
        %v284 = vld [vmem:[%s275 + $0x1c] sm:$0xf]
        %v285 = vld [vmem:[%s275 + $0x20] sm:$0xf]
        %v286 = vld [vmem:[%s275 + $0x24] sm:$0xf]
        %v287 = vld [vmem:[%s275 + $0x28] sm:$0xf]
        %v288 = vld [vmem:[%s275 + $0x2c] sm:$0xf]
        %v289 = vld [vmem:[%s275 + $0x30] sm:$0xf]
        %v290 = vld [vmem:[%s275 + $0x34] sm:$0xf]
        %v291 = vld [vmem:[%s275 + $0x38] sm:$0xf]
        %v292 = vld [vmem:[%s275 + $0x3c] sm:$0xf]
        %v293 = vld [vmem:[%s275 + $0x40] sm:$0xf]
        %v294 = vld [vmem:[%s275 + $0x44] sm:$0xf]
        %v295 = vld [vmem:[%s275 + $0x48] sm:$0xf]
        %v296 = vld [vmem:[%s275 + $0x4c] sm:$0xf]
        %v297 = vld [vmem:[%s275 + $0x50] sm:$0xf]
        %v298 = vld [vmem:[%s275 + $0x54] sm:$0xf]
        %v299 = vld [vmem:[%s275 + $0x58] sm:$0xf]
        %v300 = vld [vmem:[%s275 + $0x5c] sm:$0xf]
        %v301 = vld [vmem:[%s275 + $0x60] sm:$0xf]
        %v302 = vld [vmem:[%s275 + $0x64] sm:$0xf]
        %v303 = vld [vmem:[%s275 + $0x68] sm:$0xf]
        %v304 = vld [vmem:[%s275 + $0x6c] sm:$0xf]
        %v305 = vld [vmem:[%s275 + $0x70] sm:$0xf]
        %v306 = vld [vmem:[%s275 + $0x74] sm:$0xf]
        %v307 = vld [vmem:[%s275 + $0x78] sm:$0xf]
        %v308 = vld [vmem:[%s275 + $0x7c] sm:$0xf]
        %v309 = vld [vmem:[%s1] sm:$0xf]
        %v310 = vld [vmem:[%s1 + $0x4] sm:$0xf]
        %v311 = vld [vmem:[%s1 + $0x8] sm:$0xf]
        %v312 = vld [vmem:[%s1 + $0xc] sm:$0xf]
        %v313 = vld [vmem:[%s1 + $0x10] sm:$0xf]
        %v314 = vld [vmem:[%s1 + $0x14] sm:$0xf]
        %v315 = vld [vmem:[%s1 + $0x18] sm:$0xf]
        %v316 = vld [vmem:[%s1 + $0x1c] sm:$0xf]
        %v317 = vld [vmem:[%s1 + $0x20] sm:$0xf]
        %v318 = vld [vmem:[%s1 + $0x24] sm:$0xf]
        %v319 = vld [vmem:[%s1 + $0x28] sm:$0xf]
        %v320 = vld [vmem:[%s1 + $0x2c] sm:$0xf]
        %v321 = vld [vmem:[%s1 + $0x30] sm:$0xf]
        %v322 = vld [vmem:[%s1 + $0x34] sm:$0xf]
        %v323 = vld [vmem:[%s1 + $0x38] sm:$0xf]
        %v324 = vld [vmem:[%s1 + $0x3c] sm:$0xf]
        %v325 = vld [vmem:[%s2] sm:$0x1]
        %v327 = vlaneseq
        %v328 = vshrl.u32 %v327, 7
        %v329 = vsub.s32 0, %v328
        %v330 = vrot.slane %v325, %v329
        %v364 = vunpack.c.l.b16 %v277
        %v365 = vunpack.c.l.b16 %v278
        %v366 = vunpack.c.l.b16 %v279
        %v367 = vunpack.c.l.b16 %v280
        %v368 = vunpack.c.l.b16 %v281
        %v369 = vunpack.c.l.b16 %v282
        %v370 = vunpack.c.l.b16 %v283
        %v371 = vunpack.c.l.b16 %v284
        %v372 = vunpack.c.l.b16 %v285
        %v373 = vunpack.c.l.b16 %v286
        %v374 = vunpack.c.l.b16 %v287
        %v375 = vunpack.c.l.b16 %v288
        %v376 = vunpack.c.l.b16 %v289
        %v377 = vunpack.c.l.b16 %v290
        %v378 = vunpack.c.l.b16 %v291
        %v379 = vunpack.c.l.b16 %v292
        %v380 = vunpack.c.l.b16 %v293
        %v381 = vunpack.c.l.b16 %v294
        %v382 = vunpack.c.l.b16 %v295
        %v383 = vunpack.c.l.b16 %v296
        %v384 = vunpack.c.l.b16 %v297
        %v385 = vunpack.c.l.b16 %v298
        %v386 = vunpack.c.l.b16 %v299
        %v387 = vunpack.c.l.b16 %v300
        %v388 = vunpack.c.l.b16 %v301
        %v389 = vunpack.c.l.b16 %v302
        %v390 = vunpack.c.l.b16 %v303
        %v391 = vunpack.c.l.b16 %v304
        %v392 = vunpack.c.l.b16 %v305
        %v393 = vunpack.c.l.b16 %v306
        %v394 = vunpack.c.l.b16 %v307
        %v395 = vunpack.c.l.b16 %v308
        %v396 = vpack.c.b16 %v365, %v364
        %v397 = vpack.c.b16 %v367, %v366
        %v398 = vpack.c.b16 %v369, %v368
        %v399 = vpack.c.b16 %v371, %v370
        %v400 = vpack.c.b16 %v373, %v372
        %v401 = vpack.c.b16 %v375, %v374
        %v402 = vpack.c.b16 %v377, %v376
        %v403 = vpack.c.b16 %v379, %v378
        %v404 = vpack.c.b16 %v381, %v380
        %v405 = vpack.c.b16 %v383, %v382
        %v406 = vpack.c.b16 %v385, %v384
        %v407 = vpack.c.b16 %v387, %v386
        %v408 = vpack.c.b16 %v389, %v388
        %v409 = vpack.c.b16 %v391, %v390
        %v410 = vpack.c.b16 %v393, %v392
        %v411 = vpack.c.b16 %v395, %v394
        %v444 = vunpack.c.l.b16 %v309
        %v445 = vunpack.c.l.b16 %v310
        %v446 = vunpack.c.l.b16 %v311
        %v447 = vunpack.c.l.b16 %v312
        %v448 = vunpack.c.l.b16 %v313
        %v449 = vunpack.c.l.b16 %v314
        %v450 = vunpack.c.l.b16 %v315
        %v451 = vunpack.c.l.b16 %v316
        %v452 = vunpack.c.l.b16 %v317
        %v453 = vunpack.c.l.b16 %v318
        %v454 = vunpack.c.l.b16 %v319
        %v455 = vunpack.c.l.b16 %v320
        %v456 = vunpack.c.l.b16 %v321
        %v457 = vunpack.c.l.b16 %v322
        %v458 = vunpack.c.l.b16 %v323
        %v459 = vunpack.c.l.b16 %v324
        %v460 = vpack.c.b16 %v445, %v444
        %v461 = vpack.c.b16 %v447, %v446
        %v462 = vpack.c.b16 %v449, %v448
        %v463 = vpack.c.b16 %v451, %v450
        %v464 = vpack.c.b16 %v453, %v452
        %v465 = vpack.c.b16 %v455, %v454
        %v466 = vpack.c.b16 %v457, %v456
        %v467 = vpack.c.b16 %v459, %v458
        %476 = vmatprep.subr.bf16.mxu0 0
        %477 = vmatpush1.bf16.msra.mxu0 %v467
        %478 = vmatprep.subr.bf16.mxu0 0
        %479 = vmatpush1.bf16.msra.mxu0 %v466
        %480 = vmatprep.subr.bf16.mxu0 0
        %481 = vmatpush1.bf16.msra.mxu0 %v465
        %482 = vmatprep.subr.bf16.mxu0 0
        %483 = vmatpush1.bf16.msra.mxu0 %v464
        %484 = vmatprep.subr.bf16.mxu0 0
        %485 = vmatpush1.bf16.msra.mxu0 %v463
        %486 = vmatprep.subr.bf16.mxu0 0
        %487 = vmatpush1.bf16.msra.mxu0 %v462
        %488 = vmatprep.subr.bf16.mxu0 0
        %489 = vmatpush1.bf16.msra.mxu0 %v461
        %490 = vmatprep.subr.bf16.mxu0 0
        %491 = vmatpush1.bf16.msra.mxu0 %v460
        %492 = vmatprep.subr.bf16.mxu0 0
        %493 = vmatpush2.bf16.msra.mxu0 0
        %494 = vmatprep.subr.bf16.mxu0 0
        %495 = vmatpush2.bf16.msra.mxu0 0
        %496 = vmatprep.subr.bf16.mxu0 0
        %497 = vmatpush2.bf16.msra.mxu0 0
        %498 = vmatprep.subr.bf16.mxu0 0
        %499 = vmatpush2.bf16.msra.mxu0 0
        %500 = vmatprep.subr.bf16.mxu0 0
        %501 = vmatpush2.bf16.msra.mxu0 0
        %502 = vmatprep.subr.bf16.mxu0 0
        %503 = vmatpush2.bf16.msra.mxu0 0
        %504 = vmatprep.subr.bf16.mxu0 0
        %505 = vmatpush2.bf16.msra.mxu0 0
        %506 = vmatprep.subr.bf16.mxu0 0
        %507 = vmatpush2.bf16.msra.mxu0 0
        %508 = vmatprep.mubr.bf16.mxu0 0
        %509 = vmatmul.mubr.bf16.gmra.mxu0 %v396
        %v510 = vpop.f32.mrf.mxu0
        %v511 = vadd.f32 %v330, %v510
        %v512 = vpop.f32.mrf.mxu0
        %v513 = vpop.f32.mrf.mxu0
        %v514 = vadd.f32 %v330, %v513
        %v515 = vpop.f32.mrf.mxu0
        %516 = vmatprep.mubr.bf16.mxu0 0
        %517 = vmatmul.mubr.bf16.gmra.mxu0 %v397
        %v518 = vpop.f32.mrf.mxu0
        %v519 = vadd.f32 %v330, %v518
        %v520 = vpop.f32.mrf.mxu0
        %v521 = vpop.f32.mrf.mxu0
        %v522 = vadd.f32 %v330, %v521
        %v523 = vpop.f32.mrf.mxu0
        %524 = vmatprep.mubr.bf16.mxu0 0
        %525 = vmatmul.mubr.bf16.gmra.mxu0 %v398
        %v526 = vpop.f32.mrf.mxu0
        %v527 = vadd.f32 %v330, %v526
        %v528 = vpop.f32.mrf.mxu0
        %v529 = vpop.f32.mrf.mxu0
        %v530 = vadd.f32 %v330, %v529
        %v531 = vpop.f32.mrf.mxu0
        %532 = vmatprep.mubr.bf16.mxu0 0
        %533 = vmatmul.mubr.bf16.gmra.mxu0 %v399
        %v534 = vpop.f32.mrf.mxu0
        %v535 = vadd.f32 %v330, %v534
        %v536 = vpop.f32.mrf.mxu0
        %v537 = vpop.f32.mrf.mxu0
        %v538 = vadd.f32 %v330, %v537
        %v539 = vpop.f32.mrf.mxu0
        %540 = vmatprep.mubr.bf16.mxu0 0
        %541 = vmatmul.mubr.bf16.gmra.mxu0 %v400
        %v542 = vpop.f32.mrf.mxu0
        %v543 = vadd.f32 %v330, %v542
        %v544 = vpop.f32.mrf.mxu0
        %v545 = vpop.f32.mrf.mxu0
        %v546 = vadd.f32 %v330, %v545
        %v547 = vpop.f32.mrf.mxu0
        %548 = vmatprep.mubr.bf16.mxu0 0
        %549 = vmatmul.mubr.bf16.gmra.mxu0 %v401
        %v550 = vpop.f32.mrf.mxu0
        %v551 = vadd.f32 %v330, %v550
        %v552 = vpop.f32.mrf.mxu0
        %v553 = vpop.f32.mrf.mxu0
        %v554 = vadd.f32 %v330, %v553
        %v555 = vpop.f32.mrf.mxu0
        %556 = vmatprep.mubr.bf16.mxu0 0
        %557 = vmatmul.mubr.bf16.gmra.mxu0 %v402
        %v558 = vpop.f32.mrf.mxu0
        %v559 = vadd.f32 %v330, %v558
        %v560 = vpop.f32.mrf.mxu0
        %v561 = vpop.f32.mrf.mxu0
        %v562 = vadd.f32 %v330, %v561
        %v563 = vpop.f32.mrf.mxu0
        %564 = vmatprep.mubr.bf16.mxu0 0
        %565 = vmatmul.mubr.bf16.gmra.mxu0 %v403
        %v566 = vpop.f32.mrf.mxu0
        %v567 = vadd.f32 %v330, %v566
        %v568 = vpop.f32.mrf.mxu0
        %v569 = vpop.f32.mrf.mxu0
        %v570 = vadd.f32 %v330, %v569
        %v571 = vpop.f32.mrf.mxu0
        %572 = vmatprep.mubr.bf16.mxu0 0
        %573 = vmatmul.mubr.bf16.gmra.mxu0 %v404
        %v574 = vpop.f32.mrf.mxu0
        %v575 = vadd.f32 %v330, %v574
        %v576 = vpop.f32.mrf.mxu0
        %v577 = vpop.f32.mrf.mxu0
        %v578 = vadd.f32 %v330, %v577
        %v579 = vpop.f32.mrf.mxu0
        %580 = vmatprep.mubr.bf16.mxu0 0
        %581 = vmatmul.mubr.bf16.gmra.mxu0 %v405
        %v582 = vpop.f32.mrf.mxu0
        %v583 = vadd.f32 %v330, %v582
        %v584 = vpop.f32.mrf.mxu0
        %v585 = vpop.f32.mrf.mxu0
        %v586 = vadd.f32 %v330, %v585
        %v587 = vpop.f32.mrf.mxu0
        %588 = vmatprep.mubr.bf16.mxu0 0
        %589 = vmatmul.mubr.bf16.gmra.mxu0 %v406
        %v590 = vpop.f32.mrf.mxu0
        %v591 = vadd.f32 %v330, %v590
        %v592 = vpop.f32.mrf.mxu0
        %v593 = vpop.f32.mrf.mxu0
        %v594 = vadd.f32 %v330, %v593
        %v595 = vpop.f32.mrf.mxu0
        %596 = vmatprep.mubr.bf16.mxu0 0
        %597 = vmatmul.mubr.bf16.gmra.mxu0 %v407
        %v598 = vpop.f32.mrf.mxu0
        %v599 = vadd.f32 %v330, %v598
        %v600 = vpop.f32.mrf.mxu0
        %v601 = vpop.f32.mrf.mxu0
        %v602 = vadd.f32 %v330, %v601
        %v603 = vpop.f32.mrf.mxu0
        %604 = vmatprep.mubr.bf16.mxu0 0
        %605 = vmatmul.mubr.bf16.gmra.mxu0 %v408
        %v606 = vpop.f32.mrf.mxu0
        %v607 = vadd.f32 %v330, %v606
        %v608 = vpop.f32.mrf.mxu0
        %v609 = vpop.f32.mrf.mxu0
        %v610 = vadd.f32 %v330, %v609
        %v611 = vpop.f32.mrf.mxu0
        %612 = vmatprep.mubr.bf16.mxu0 0
        %613 = vmatmul.mubr.bf16.gmra.mxu0 %v409
        %v614 = vpop.f32.mrf.mxu0
        %v615 = vadd.f32 %v330, %v614
        %v616 = vpop.f32.mrf.mxu0
        %v617 = vpop.f32.mrf.mxu0
        %v618 = vadd.f32 %v330, %v617
        %v619 = vpop.f32.mrf.mxu0
        %620 = vmatprep.mubr.bf16.mxu0 0
        %621 = vmatmul.mubr.bf16.gmra.mxu0 %v410
        %v622 = vpop.f32.mrf.mxu0
        %v623 = vadd.f32 %v330, %v622
        %v624 = vpop.f32.mrf.mxu0
        %v625 = vpop.f32.mrf.mxu0
        %v626 = vadd.f32 %v330, %v625
        %v627 = vpop.f32.mrf.mxu0
        %628 = vmatprep.mubr.bf16.mxu0 0
        %629 = vmatmul.mubr.bf16.gmra.mxu0 %v411
        %v630 = vpop.f32.mrf.mxu0
        %v631 = vadd.f32 %v330, %v630
        %v632 = vpop.f32.mrf.mxu0
        %v633 = vpop.f32.mrf.mxu0
        %v634 = vadd.f32 %v330, %v633
        %v635 = vpop.f32.mrf.mxu0
        %636 = vdwg.mxu0
        %v637 = vmax.f32 %v511, 0.0
        %v638 = vmax.f32 %v514, 0.0
        %v639 = vmax.f32 %v519, 0.0
        %v640 = vmax.f32 %v522, 0.0
        %v641 = vmax.f32 %v527, 0.0
        %v642 = vmax.f32 %v530, 0.0
        %v643 = vmax.f32 %v535, 0.0
        %v644 = vmax.f32 %v538, 0.0
        %v645 = vmax.f32 %v543, 0.0
        %v646 = vmax.f32 %v546, 0.0
        %v647 = vmax.f32 %v551, 0.0
        %v648 = vmax.f32 %v554, 0.0
        %v649 = vmax.f32 %v559, 0.0
        %v650 = vmax.f32 %v562, 0.0
        %v651 = vmax.f32 %v567, 0.0
        %v652 = vmax.f32 %v570, 0.0
        %v653 = vmax.f32 %v575, 0.0
        %v654 = vmax.f32 %v578, 0.0
        %v655 = vmax.f32 %v583, 0.0
        %v656 = vmax.f32 %v586, 0.0
        %v657 = vmax.f32 %v591, 0.0
        %v658 = vmax.f32 %v594, 0.0
        %v659 = vmax.f32 %v599, 0.0
        %v660 = vmax.f32 %v602, 0.0
        %v661 = vmax.f32 %v607, 0.0
        %v662 = vmax.f32 %v610, 0.0
        %v663 = vmax.f32 %v615, 0.0
        %v664 = vmax.f32 %v618, 0.0
        %v665 = vmax.f32 %v623, 0.0
        %v666 = vmax.f32 %v626, 0.0
        %v667 = vmax.f32 %v631, 0.0
        %v668 = vmax.f32 %v634, 0.0
        %v669 = vlaneseq
        %v670 = vshrl.u32 %v669, 7
        %v671 = vadd.s32 %v670, 8
        %vm672 = vcmp.eq.s32.totalorder %v670, 0
        %vm673 = vcmp.eq.s32.totalorder %v671, 0
        %v674 = vrot.slane %v637, 7
        %v675 = vrot.slane %v639, 7
        %v676 = vrot.slane %v641, 7
        %v677 = vrot.slane %v643, 7
        %v678 = vrot.slane %v645, 7
        %v679 = vrot.slane %v647, 7
        %v680 = vrot.slane %v649, 7
        %v681 = vrot.slane %v651, 7
        %v682 = vrot.slane %v653, 7
        %v683 = vrot.slane %v655, 7
        %v684 = vrot.slane %v657, 7
        %v685 = vrot.slane %v659, 7
        %v686 = vrot.slane %v661, 7
        %v687 = vrot.slane %v663, 7
        %v688 = vrot.slane %v665, 7
        %v689 = vrot.slane %v667, 7
        %v690 = vrot.slane %v638, 7
        %v691 = vrot.slane %v640, 7
        %v692 = vrot.slane %v642, 7
        %v693 = vrot.slane %v644, 7
        %v694 = vrot.slane %v646, 7
        %v695 = vrot.slane %v648, 7
        %v696 = vrot.slane %v650, 7
        %v697 = vrot.slane %v652, 7
        %v698 = vrot.slane %v654, 7
        %v699 = vrot.slane %v656, 7
        %v700 = vrot.slane %v658, 7
        %v701 = vrot.slane %v660, 7
        %v702 = vrot.slane %v662, 7
        %v703 = vrot.slane %v664, 7
        %v704 = vrot.slane %v666, 7
        %v705 = vrot.slane %v668, 7
        %vm706 = vcmp.lt.s32.totalorder %v670, 1
        %v707 = vsel %vm706, %v674, %v690
        %v708 = vsel %vm706, %v675, %v691
        %v709 = vsel %vm706, %v676, %v692
        %v710 = vsel %vm706, %v677, %v693
        %v711 = vsel %vm706, %v678, %v694
        %v712 = vsel %vm706, %v679, %v695
        %v713 = vsel %vm706, %v680, %v696
        %v714 = vsel %vm706, %v681, %v697
        %v715 = vsel %vm706, %v682, %v698
        %v716 = vsel %vm706, %v683, %v699
        %v717 = vsel %vm706, %v684, %v700
        %v718 = vsel %vm706, %v685, %v701
        %v719 = vsel %vm706, %v686, %v702
        %v720 = vsel %vm706, %v687, %v703
        %v721 = vsel %vm706, %v688, %v704
        %v722 = vsel %vm706, %v689, %v705
        %v723 = vsel %vm706, %v690, %v674
        %v724 = vsel %vm706, %v691, %v675
        %v725 = vsel %vm706, %v692, %v676
        %v726 = vsel %vm706, %v693, %v677
        %v727 = vsel %vm706, %v694, %v678
        %v728 = vsel %vm706, %v695, %v679
        %v729 = vsel %vm706, %v696, %v680
        %v730 = vsel %vm706, %v697, %v681
        %v731 = vsel %vm706, %v698, %v682
        %v732 = vsel %vm706, %v699, %v683
        %v733 = vsel %vm706, %v700, %v684
        %v734 = vsel %vm706, %v701, %v685
        %v735 = vsel %vm706, %v702, %v686
        %v736 = vsel %vm706, %v703, %v687
        %v737 = vsel %vm706, %v704, %v688
        %v738 = vsel %vm706, %v705, %v689
        %v739 = vsel %vm672, 0.0, %v723
        %v740 = vsel %vm673, 0.0, %v707
        %v741 = vsel %vm672, 0.0, %v724
        %v742 = vsel %vm673, 0.0, %v708
        %v743 = vsel %vm672, 0.0, %v725
        %v744 = vsel %vm673, 0.0, %v709
        %v745 = vsel %vm672, 0.0, %v726
        %v746 = vsel %vm673, 0.0, %v710
        %v747 = vsel %vm672, 0.0, %v727
        %v748 = vsel %vm673, 0.0, %v711
        %v749 = vsel %vm672, 0.0, %v728
        %v750 = vsel %vm673, 0.0, %v712
        %v751 = vsel %vm672, 0.0, %v729
        %v752 = vsel %vm673, 0.0, %v713
        %v753 = vsel %vm672, 0.0, %v730
        %v754 = vsel %vm673, 0.0, %v714
        %v755 = vsel %vm672, 0.0, %v731
        %v756 = vsel %vm673, 0.0, %v715
        %v757 = vsel %vm672, 0.0, %v732
        %v758 = vsel %vm673, 0.0, %v716
        %v759 = vsel %vm672, 0.0, %v733
        %v760 = vsel %vm673, 0.0, %v717
        %v761 = vsel %vm672, 0.0, %v734
        %v762 = vsel %vm673, 0.0, %v718
        %v763 = vsel %vm672, 0.0, %v735
        %v764 = vsel %vm673, 0.0, %v719
        %v765 = vsel %vm672, 0.0, %v736
        %v766 = vsel %vm673, 0.0, %v720
        %v767 = vsel %vm672, 0.0, %v737
        %v768 = vsel %vm673, 0.0, %v721
        %v769 = vsel %vm672, 0.0, %v738
        %v770 = vsel %vm673, 0.0, %v722
        %vm771 = vcmp.eq.s32.totalorder %v670, 15
        %vm772 = vcmp.eq.s32.totalorder %v671, 15
        %v773 = vrot.slane %v637, 1
        %v774 = vrot.slane %v639, 1
        %v775 = vrot.slane %v641, 1
        %v776 = vrot.slane %v643, 1
        %v777 = vrot.slane %v645, 1
        %v778 = vrot.slane %v647, 1
        %v779 = vrot.slane %v649, 1
        %v780 = vrot.slane %v651, 1
        %v781 = vrot.slane %v653, 1
        %v782 = vrot.slane %v655, 1
        %v783 = vrot.slane %v657, 1
        %v784 = vrot.slane %v659, 1
        %v785 = vrot.slane %v661, 1
        %v786 = vrot.slane %v663, 1
        %v787 = vrot.slane %v665, 1
        %v788 = vrot.slane %v667, 1
        %v789 = vrot.slane %v638, 1
        %v790 = vrot.slane %v640, 1
        %v791 = vrot.slane %v642, 1
        %v792 = vrot.slane %v644, 1
        %v793 = vrot.slane %v646, 1
        %v794 = vrot.slane %v648, 1
        %v795 = vrot.slane %v650, 1
        %v796 = vrot.slane %v652, 1
        %v797 = vrot.slane %v654, 1
        %v798 = vrot.slane %v656, 1
        %v799 = vrot.slane %v658, 1
        %v800 = vrot.slane %v660, 1
        %v801 = vrot.slane %v662, 1
        %v802 = vrot.slane %v664, 1
        %v803 = vrot.slane %v666, 1
        %v804 = vrot.slane %v668, 1
        %vm805 = vcmp.lt.s32.totalorder %v670, 7
        %v806 = vsel %vm805, %v773, %v789
        %v807 = vsel %vm805, %v774, %v790
        %v808 = vsel %vm805, %v775, %v791
        %v809 = vsel %vm805, %v776, %v792
        %v810 = vsel %vm805, %v777, %v793
        %v811 = vsel %vm805, %v778, %v794
        %v812 = vsel %vm805, %v779, %v795
        %v813 = vsel %vm805, %v780, %v796
        %v814 = vsel %vm805, %v781, %v797
        %v815 = vsel %vm805, %v782, %v798
        %v816 = vsel %vm805, %v783, %v799
        %v817 = vsel %vm805, %v784, %v800
        %v818 = vsel %vm805, %v785, %v801
        %v819 = vsel %vm805, %v786, %v802
        %v820 = vsel %vm805, %v787, %v803
        %v821 = vsel %vm805, %v788, %v804
        %v822 = vsel %vm805, %v789, %v773
        %v823 = vsel %vm805, %v790, %v774
        %v824 = vsel %vm805, %v791, %v775
        %v825 = vsel %vm805, %v792, %v776
        %v826 = vsel %vm805, %v793, %v777
        %v827 = vsel %vm805, %v794, %v778
        %v828 = vsel %vm805, %v795, %v779
        %v829 = vsel %vm805, %v796, %v780
        %v830 = vsel %vm805, %v797, %v781
        %v831 = vsel %vm805, %v798, %v782
        %v832 = vsel %vm805, %v799, %v783
        %v833 = vsel %vm805, %v800, %v784
        %v834 = vsel %vm805, %v801, %v785
        %v835 = vsel %vm805, %v802, %v786
        %v836 = vsel %vm805, %v803, %v787
        %v837 = vsel %vm805, %v804, %v788
        %v838 = vsel %vm771, 0.0, %v806
        %v839 = vsel %vm772, 0.0, %v822
        %v840 = vsel %vm771, 0.0, %v807
        %v841 = vsel %vm772, 0.0, %v823
        %v842 = vsel %vm771, 0.0, %v808
        %v843 = vsel %vm772, 0.0, %v824
        %v844 = vsel %vm771, 0.0, %v809
        %v845 = vsel %vm772, 0.0, %v825
        %v846 = vsel %vm771, 0.0, %v810
        %v847 = vsel %vm772, 0.0, %v826
        %v848 = vsel %vm771, 0.0, %v811
        %v849 = vsel %vm772, 0.0, %v827
        %v850 = vsel %vm771, 0.0, %v812
        %v851 = vsel %vm772, 0.0, %v828
        %v852 = vsel %vm771, 0.0, %v813
        %v853 = vsel %vm772, 0.0, %v829
        %v854 = vsel %vm771, 0.0, %v814
        %v855 = vsel %vm772, 0.0, %v830
        %v856 = vsel %vm771, 0.0, %v815
        %v857 = vsel %vm772, 0.0, %v831
        %v858 = vsel %vm771, 0.0, %v816
        %v859 = vsel %vm772, 0.0, %v832
        %v860 = vsel %vm771, 0.0, %v817
        %v861 = vsel %vm772, 0.0, %v833
        %v862 = vsel %vm771, 0.0, %v818
        %v863 = vsel %vm772, 0.0, %v834
        %v864 = vsel %vm771, 0.0, %v819
        %v865 = vsel %vm772, 0.0, %v835
        %v866 = vsel %vm771, 0.0, %v820
        %v867 = vsel %vm772, 0.0, %v836
        %v868 = vsel %vm771, 0.0, %v821
        %v869 = vsel %vm772, 0.0, %v837
        %870 = vst [vmem:[#allocation2] sm:$0xff] 0
        %871 = vst [vmem:[#allocation2 + $0x8] sm:$0xf] 0
        %872 = vst [vmem:[#allocation2 + $0xc] sm:$0xff] 0
        %873 = vst [vmem:[#allocation2 + $0x14] sm:$0xf] 0
        %s874 = scalar_lea.vmem [#allocation2], 408
        %875 = vst [vmem:[%s874] sm:$0xff] 0
        %876 = vst [vmem:[%s874 + $0x8] sm:$0xf] 0
        %877 = vst [vmem:[%s874 + $0xc] sm:$0xff] 0
        %878 = vst [vmem:[%s874 + $0x14] sm:$0xf] 0
        %v879 = vpack.c.bf16 %v740, %v739
        %v880 = vpack.c.bf16 %v742, %v741
        %v881 = vpack.c.bf16 %v744, %v743
        %v882 = vpack.c.bf16 %v746, %v745
        %v883 = vpack.c.bf16 %v748, %v747
        %v884 = vpack.c.bf16 %v750, %v749
        %v885 = vpack.c.bf16 %v752, %v751
        %v886 = vpack.c.bf16 %v754, %v753
        %v887 = vpack.c.bf16 %v756, %v755
        %v888 = vpack.c.bf16 %v758, %v757
        %v889 = vpack.c.bf16 %v760, %v759
        %v890 = vpack.c.bf16 %v762, %v761
        %v891 = vpack.c.bf16 %v764, %v763
        %v892 = vpack.c.bf16 %v766, %v765
        %v893 = vpack.c.bf16 %v768, %v767
        %v894 = vpack.c.bf16 %v770, %v769
        %v911 = vunpack.c.l.b16 %v879
        %v912 = vunpack.c.h.b16 %v879
        %v913 = vunpack.c.l.b16 %v880
        %v914 = vunpack.c.h.b16 %v880
        %v915 = vunpack.c.l.b16 %v881
        %v916 = vunpack.c.h.b16 %v881
        %v917 = vunpack.c.l.b16 %v882
        %v918 = vunpack.c.h.b16 %v882
        %v919 = vunpack.c.l.b16 %v883
        %v920 = vunpack.c.h.b16 %v883
        %v921 = vunpack.c.l.b16 %v884
        %v922 = vunpack.c.h.b16 %v884
        %v923 = vunpack.c.l.b16 %v885
        %v924 = vunpack.c.h.b16 %v885
        %v925 = vunpack.c.l.b16 %v886
        %v926 = vunpack.c.h.b16 %v886
        %v927 = vunpack.c.l.b16 %v887
        %v928 = vunpack.c.h.b16 %v887
        %v929 = vunpack.c.l.b16 %v888
        %v930 = vunpack.c.h.b16 %v888
        %v931 = vunpack.c.l.b16 %v889
        %v932 = vunpack.c.h.b16 %v889
        %v933 = vunpack.c.l.b16 %v890
        %v934 = vunpack.c.h.b16 %v890
        %v935 = vunpack.c.l.b16 %v891
        %v936 = vunpack.c.h.b16 %v891
        %v937 = vunpack.c.l.b16 %v892
        %v938 = vunpack.c.h.b16 %v892
        %v939 = vunpack.c.l.b16 %v893
        %v940 = vunpack.c.h.b16 %v893
        %v941 = vunpack.c.l.b16 %v894
        %v942 = vunpack.c.h.b16 %v894
        %v943 = vpack.c.b16 %v911, %v911
        %v944 = vpack.c.b16 %v912, %v912
        %v945 = vpack.c.b16 %v913, %v913
        %v946 = vpack.c.b16 %v914, %v914
        %v947 = vpack.c.b16 %v915, %v915
        %v948 = vpack.c.b16 %v916, %v916
        %v949 = vpack.c.b16 %v917, %v917
        %v950 = vpack.c.b16 %v918, %v918
        %v951 = vpack.c.b16 %v919, %v919
        %v952 = vpack.c.b16 %v920, %v920
        %v953 = vpack.c.b16 %v921, %v921
        %v954 = vpack.c.b16 %v922, %v922
        %v955 = vpack.c.b16 %v923, %v923
        %v956 = vpack.c.b16 %v924, %v924
        %v957 = vpack.c.b16 %v925, %v925
        %v958 = vpack.c.b16 %v926, %v926
        %v959 = vpack.c.b16 %v927, %v927
        %v960 = vpack.c.b16 %v928, %v928
        %v961 = vpack.c.b16 %v929, %v929
        %v962 = vpack.c.b16 %v930, %v930
        %v963 = vpack.c.b16 %v931, %v931
        %v964 = vpack.c.b16 %v932, %v932
        %v965 = vpack.c.b16 %v933, %v933
        %v966 = vpack.c.b16 %v934, %v934
        %v967 = vpack.c.b16 %v935, %v935
        %v968 = vpack.c.b16 %v936, %v936
        %v969 = vpack.c.b16 %v937, %v937
        %v970 = vpack.c.b16 %v938, %v938
        %v971 = vpack.c.b16 %v939, %v939
        %v972 = vpack.c.b16 %v940, %v940
        %v973 = vpack.c.b16 %v941, %v941
        %v974 = vpack.c.b16 %v942, %v942
        %s1007 = scalar_lea.vmem [#allocation2], 24
        %1008 = vst [vmem:[%s1007] sm:$0xf] %v943
        %1009 = vst [vmem:[%s1007 + $0xc] sm:$0xf] %v944
        %1010 = vst [vmem:[%s1007 + $0x18] sm:$0xf] %v945
        %1011 = vst [vmem:[%s1007 + $0x24] sm:$0xf] %v946
        %1012 = vst [vmem:[%s1007 + $0x30] sm:$0xf] %v947
        %1013 = vst [vmem:[%s1007 + $0x3c] sm:$0xf] %v948
        %1014 = vst [vmem:[%s1007 + $0x48] sm:$0xf] %v949
        %1015 = vst [vmem:[%s1007 + $0x54] sm:$0xf] %v950
        %1016 = vst [vmem:[%s1007 + $0x60] sm:$0xf] %v951
        %1017 = vst [vmem:[%s1007 + $0x6c] sm:$0xf] %v952
        %1018 = vst [vmem:[%s1007 + $0x78] sm:$0xf] %v953
        %1019 = vst [vmem:[%s1007 + $0x84] sm:$0xf] %v954
        %1020 = vst [vmem:[%s1007 + $0x90] sm:$0xf] %v955
        %1021 = vst [vmem:[%s1007 + $0x9c] sm:$0xf] %v956
        %1022 = vst [vmem:[%s1007 + $0xa8] sm:$0xf] %v957
        %1023 = vst [vmem:[%s1007 + $0xb4] sm:$0xf] %v958
        %1024 = vst [vmem:[%s1007 + $0xc0] sm:$0xf] %v959
        %1025 = vst [vmem:[%s1007 + $0xcc] sm:$0xf] %v960
        %1026 = vst [vmem:[%s1007 + $0xd8] sm:$0xf] %v961
        %1027 = vst [vmem:[%s1007 + $0xe4] sm:$0xf] %v962
        %1028 = vst [vmem:[%s1007 + $0xf0] sm:$0xf] %v963
        %1029 = vst [vmem:[%s1007 + $0xfc] sm:$0xf] %v964
        %1030 = vst [vmem:[%s1007 + $0x108] sm:$0xf] %v965
        %1031 = vst [vmem:[%s1007 + $0x114] sm:$0xf] %v966
        %1032 = vst [vmem:[%s1007 + $0x120] sm:$0xf] %v967
        %1033 = vst [vmem:[%s1007 + $0x12c] sm:$0xf] %v968
        %1034 = vst [vmem:[%s1007 + $0x138] sm:$0xf] %v969
        %1035 = vst [vmem:[%s1007 + $0x144] sm:$0xf] %v970
        %1036 = vst [vmem:[%s1007 + $0x150] sm:$0xf] %v971
        %1037 = vst [vmem:[%s1007 + $0x15c] sm:$0xf] %v972
        %1038 = vst [vmem:[%s1007 + $0x168] sm:$0xf] %v973
        %1039 = vst [vmem:[%s1007 + $0x174] sm:$0xf] %v974
        %v1040 = vpack.c.bf16 %v638, %v637
        %v1041 = vpack.c.bf16 %v640, %v639
        %v1042 = vpack.c.bf16 %v642, %v641
        %v1043 = vpack.c.bf16 %v644, %v643
        %v1044 = vpack.c.bf16 %v646, %v645
        %v1045 = vpack.c.bf16 %v648, %v647
        %v1046 = vpack.c.bf16 %v650, %v649
        %v1047 = vpack.c.bf16 %v652, %v651
        %v1048 = vpack.c.bf16 %v654, %v653
        %v1049 = vpack.c.bf16 %v656, %v655
        %v1050 = vpack.c.bf16 %v658, %v657
        %v1051 = vpack.c.bf16 %v660, %v659
        %v1052 = vpack.c.bf16 %v662, %v661
        %v1053 = vpack.c.bf16 %v664, %v663
        %v1054 = vpack.c.bf16 %v666, %v665
        %v1055 = vpack.c.bf16 %v668, %v667
        %v1072 = vunpack.c.l.b16 %v1040
        %v1073 = vunpack.c.h.b16 %v1040
        %v1074 = vunpack.c.l.b16 %v1041
        %v1075 = vunpack.c.h.b16 %v1041
        %v1076 = vunpack.c.l.b16 %v1042
        %v1077 = vunpack.c.h.b16 %v1042
        %v1078 = vunpack.c.l.b16 %v1043
        %v1079 = vunpack.c.h.b16 %v1043
        %v1080 = vunpack.c.l.b16 %v1044
        %v1081 = vunpack.c.h.b16 %v1044
        %v1082 = vunpack.c.l.b16 %v1045
        %v1083 = vunpack.c.h.b16 %v1045
        %v1084 = vunpack.c.l.b16 %v1046
        %v1085 = vunpack.c.h.b16 %v1046
        %v1086 = vunpack.c.l.b16 %v1047
        %v1087 = vunpack.c.h.b16 %v1047
        %v1088 = vunpack.c.l.b16 %v1048
        %v1089 = vunpack.c.h.b16 %v1048
        %v1090 = vunpack.c.l.b16 %v1049
        %v1091 = vunpack.c.h.b16 %v1049
        %v1092 = vunpack.c.l.b16 %v1050
        %v1093 = vunpack.c.h.b16 %v1050
        %v1094 = vunpack.c.l.b16 %v1051
        %v1095 = vunpack.c.h.b16 %v1051
        %v1096 = vunpack.c.l.b16 %v1052
        %v1097 = vunpack.c.h.b16 %v1052
        %v1098 = vunpack.c.l.b16 %v1053
        %v1099 = vunpack.c.h.b16 %v1053
        %v1100 = vunpack.c.l.b16 %v1054
        %v1101 = vunpack.c.h.b16 %v1054
        %v1102 = vunpack.c.l.b16 %v1055
        %v1103 = vunpack.c.h.b16 %v1055
        %v1104 = vpack.c.b16 %v1072, %v1072
        %v1105 = vpack.c.b16 %v1073, %v1073
        %v1106 = vpack.c.b16 %v1074, %v1074
        %v1107 = vpack.c.b16 %v1075, %v1075
        %v1108 = vpack.c.b16 %v1076, %v1076
        %v1109 = vpack.c.b16 %v1077, %v1077
        %v1110 = vpack.c.b16 %v1078, %v1078
        %v1111 = vpack.c.b16 %v1079, %v1079
        %v1112 = vpack.c.b16 %v1080, %v1080
        %v1113 = vpack.c.b16 %v1081, %v1081
        %v1114 = vpack.c.b16 %v1082, %v1082
        %v1115 = vpack.c.b16 %v1083, %v1083
        %v1116 = vpack.c.b16 %v1084, %v1084
        %v1117 = vpack.c.b16 %v1085, %v1085
        %v1118 = vpack.c.b16 %v1086, %v1086
        %v1119 = vpack.c.b16 %v1087, %v1087
        %v1120 = vpack.c.b16 %v1088, %v1088
        %v1121 = vpack.c.b16 %v1089, %v1089
        %v1122 = vpack.c.b16 %v1090, %v1090
        %v1123 = vpack.c.b16 %v1091, %v1091
        %v1124 = vpack.c.b16 %v1092, %v1092
        %v1125 = vpack.c.b16 %v1093, %v1093
        %v1126 = vpack.c.b16 %v1094, %v1094
        %v1127 = vpack.c.b16 %v1095, %v1095
        %v1128 = vpack.c.b16 %v1096, %v1096
        %v1129 = vpack.c.b16 %v1097, %v1097
        %v1130 = vpack.c.b16 %v1098, %v1098
        %v1131 = vpack.c.b16 %v1099, %v1099
        %v1132 = vpack.c.b16 %v1100, %v1100
        %v1133 = vpack.c.b16 %v1101, %v1101
        %v1134 = vpack.c.b16 %v1102, %v1102
        %v1135 = vpack.c.b16 %v1103, %v1103
        %1168 = vst [vmem:[%s1007 + $0x4] sm:$0xf] %v1104
        %1169 = vst [vmem:[%s1007 + $0x10] sm:$0xf] %v1105
        %1170 = vst [vmem:[%s1007 + $0x1c] sm:$0xf] %v1106
        %1171 = vst [vmem:[%s1007 + $0x28] sm:$0xf] %v1107
        %1172 = vst [vmem:[%s1007 + $0x34] sm:$0xf] %v1108
        %1173 = vst [vmem:[%s1007 + $0x40] sm:$0xf] %v1109
        %1174 = vst [vmem:[%s1007 + $0x4c] sm:$0xf] %v1110
        %1175 = vst [vmem:[%s1007 + $0x58] sm:$0xf] %v1111
        %1176 = vst [vmem:[%s1007 + $0x64] sm:$0xf] %v1112
        %1177 = vst [vmem:[%s1007 + $0x70] sm:$0xf] %v1113
        %1178 = vst [vmem:[%s1007 + $0x7c] sm:$0xf] %v1114
        %1179 = vst [vmem:[%s1007 + $0x88] sm:$0xf] %v1115
        %1180 = vst [vmem:[%s1007 + $0x94] sm:$0xf] %v1116
        %1181 = vst [vmem:[%s1007 + $0xa0] sm:$0xf] %v1117
        %1182 = vst [vmem:[%s1007 + $0xac] sm:$0xf] %v1118
        %1183 = vst [vmem:[%s1007 + $0xb8] sm:$0xf] %v1119
        %1184 = vst [vmem:[%s1007 + $0xc4] sm:$0xf] %v1120
        %1185 = vst [vmem:[%s1007 + $0xd0] sm:$0xf] %v1121
        %1186 = vst [vmem:[%s1007 + $0xdc] sm:$0xf] %v1122
        %1187 = vst [vmem:[%s1007 + $0xe8] sm:$0xf] %v1123
        %1188 = vst [vmem:[%s1007 + $0xf4] sm:$0xf] %v1124
        %1189 = vst [vmem:[%s1007 + $0x100] sm:$0xf] %v1125
        %1190 = vst [vmem:[%s1007 + $0x10c] sm:$0xf] %v1126
        %1191 = vst [vmem:[%s1007 + $0x118] sm:$0xf] %v1127
        %1192 = vst [vmem:[%s1007 + $0x124] sm:$0xf] %v1128
        %1193 = vst [vmem:[%s1007 + $0x130] sm:$0xf] %v1129
        %1194 = vst [vmem:[%s1007 + $0x13c] sm:$0xf] %v1130
        %1195 = vst [vmem:[%s1007 + $0x148] sm:$0xf] %v1131
        %1196 = vst [vmem:[%s1007 + $0x154] sm:$0xf] %v1132
        %1197 = vst [vmem:[%s1007 + $0x160] sm:$0xf] %v1133
        %1198 = vst [vmem:[%s1007 + $0x16c] sm:$0xf] %v1134
        %1199 = vst [vmem:[%s1007 + $0x178] sm:$0xf] %v1135
        %v1200 = vpack.c.bf16 %v839, %v838
        %v1201 = vpack.c.bf16 %v841, %v840
        %v1202 = vpack.c.bf16 %v843, %v842
        %v1203 = vpack.c.bf16 %v845, %v844
        %v1204 = vpack.c.bf16 %v847, %v846
        %v1205 = vpack.c.bf16 %v849, %v848
        %v1206 = vpack.c.bf16 %v851, %v850
        %v1207 = vpack.c.bf16 %v853, %v852
        %v1208 = vpack.c.bf16 %v855, %v854
        %v1209 = vpack.c.bf16 %v857, %v856
        %v1210 = vpack.c.bf16 %v859, %v858
        %v1211 = vpack.c.bf16 %v861, %v860
        %v1212 = vpack.c.bf16 %v863, %v862
        %v1213 = vpack.c.bf16 %v865, %v864
        %v1214 = vpack.c.bf16 %v867, %v866
        %v1215 = vpack.c.bf16 %v869, %v868
        %v1232 = vunpack.c.l.b16 %v1200
        %v1233 = vunpack.c.h.b16 %v1200
        %v1234 = vunpack.c.l.b16 %v1201
        %v1235 = vunpack.c.h.b16 %v1201
        %v1236 = vunpack.c.l.b16 %v1202
        %v1237 = vunpack.c.h.b16 %v1202
        %v1238 = vunpack.c.l.b16 %v1203
        %v1239 = vunpack.c.h.b16 %v1203
        %v1240 = vunpack.c.l.b16 %v1204
        %v1241 = vunpack.c.h.b16 %v1204
        %v1242 = vunpack.c.l.b16 %v1205
        %v1243 = vunpack.c.h.b16 %v1205
        %v1244 = vunpack.c.l.b16 %v1206
        %v1245 = vunpack.c.h.b16 %v1206
        %v1246 = vunpack.c.l.b16 %v1207
        %v1247 = vunpack.c.h.b16 %v1207
        %v1248 = vunpack.c.l.b16 %v1208
        %v1249 = vunpack.c.h.b16 %v1208
        %v1250 = vunpack.c.l.b16 %v1209
        %v1251 = vunpack.c.h.b16 %v1209
        %v1252 = vunpack.c.l.b16 %v1210
        %v1253 = vunpack.c.h.b16 %v1210
        %v1254 = vunpack.c.l.b16 %v1211
        %v1255 = vunpack.c.h.b16 %v1211
        %v1256 = vunpack.c.l.b16 %v1212
        %v1257 = vunpack.c.h.b16 %v1212
        %v1258 = vunpack.c.l.b16 %v1213
        %v1259 = vunpack.c.h.b16 %v1213
        %v1260 = vunpack.c.l.b16 %v1214
        %v1261 = vunpack.c.h.b16 %v1214
        %v1262 = vunpack.c.l.b16 %v1215
        %v1263 = vunpack.c.h.b16 %v1215
        %v1264 = vpack.c.b16 %v1232, %v1232
        %v1265 = vpack.c.b16 %v1233, %v1233
        %v1266 = vpack.c.b16 %v1234, %v1234
        %v1267 = vpack.c.b16 %v1235, %v1235
        %v1268 = vpack.c.b16 %v1236, %v1236
        %v1269 = vpack.c.b16 %v1237, %v1237
        %v1270 = vpack.c.b16 %v1238, %v1238
        %v1271 = vpack.c.b16 %v1239, %v1239
        %v1272 = vpack.c.b16 %v1240, %v1240
        %v1273 = vpack.c.b16 %v1241, %v1241
        %v1274 = vpack.c.b16 %v1242, %v1242
        %v1275 = vpack.c.b16 %v1243, %v1243
        %v1276 = vpack.c.b16 %v1244, %v1244
        %v1277 = vpack.c.b16 %v1245, %v1245
        %v1278 = vpack.c.b16 %v1246, %v1246
        %v1279 = vpack.c.b16 %v1247, %v1247
        %v1280 = vpack.c.b16 %v1248, %v1248
        %v1281 = vpack.c.b16 %v1249, %v1249
        %v1282 = vpack.c.b16 %v1250, %v1250
        %v1283 = vpack.c.b16 %v1251, %v1251
        %v1284 = vpack.c.b16 %v1252, %v1252
        %v1285 = vpack.c.b16 %v1253, %v1253
        %v1286 = vpack.c.b16 %v1254, %v1254
        %v1287 = vpack.c.b16 %v1255, %v1255
        %v1288 = vpack.c.b16 %v1256, %v1256
        %v1289 = vpack.c.b16 %v1257, %v1257
        %v1290 = vpack.c.b16 %v1258, %v1258
        %v1291 = vpack.c.b16 %v1259, %v1259
        %v1292 = vpack.c.b16 %v1260, %v1260
        %v1293 = vpack.c.b16 %v1261, %v1261
        %v1294 = vpack.c.b16 %v1262, %v1262
        %v1295 = vpack.c.b16 %v1263, %v1263
        %1328 = vst [vmem:[%s1007 + $0x8] sm:$0xf] %v1264
        %1329 = vst [vmem:[%s1007 + $0x14] sm:$0xf] %v1265
        %1330 = vst [vmem:[%s1007 + $0x20] sm:$0xf] %v1266
        %1331 = vst [vmem:[%s1007 + $0x2c] sm:$0xf] %v1267
        %1332 = vst [vmem:[%s1007 + $0x38] sm:$0xf] %v1268
        %1333 = vst [vmem:[%s1007 + $0x44] sm:$0xf] %v1269
        %1334 = vst [vmem:[%s1007 + $0x50] sm:$0xf] %v1270
        %1335 = vst [vmem:[%s1007 + $0x5c] sm:$0xf] %v1271
        %1336 = vst [vmem:[%s1007 + $0x68] sm:$0xf] %v1272
        %1337 = vst [vmem:[%s1007 + $0x74] sm:$0xf] %v1273
        %1338 = vst [vmem:[%s1007 + $0x80] sm:$0xf] %v1274
        %1339 = vst [vmem:[%s1007 + $0x8c] sm:$0xf] %v1275
        %1340 = vst [vmem:[%s1007 + $0x98] sm:$0xf] %v1276
        %1341 = vst [vmem:[%s1007 + $0xa4] sm:$0xf] %v1277
        %1342 = vst [vmem:[%s1007 + $0xb0] sm:$0xf] %v1278
        %1343 = vst [vmem:[%s1007 + $0xbc] sm:$0xf] %v1279
        %1344 = vst [vmem:[%s1007 + $0xc8] sm:$0xf] %v1280
        %1345 = vst [vmem:[%s1007 + $0xd4] sm:$0xf] %v1281
        %1346 = vst [vmem:[%s1007 + $0xe0] sm:$0xf] %v1282
        %1347 = vst [vmem:[%s1007 + $0xec] sm:$0xf] %v1283
        %1348 = vst [vmem:[%s1007 + $0xf8] sm:$0xf] %v1284
        %1349 = vst [vmem:[%s1007 + $0x104] sm:$0xf] %v1285
        %1350 = vst [vmem:[%s1007 + $0x110] sm:$0xf] %v1286
        %1351 = vst [vmem:[%s1007 + $0x11c] sm:$0xf] %v1287
        %1352 = vst [vmem:[%s1007 + $0x128] sm:$0xf] %v1288
        %1353 = vst [vmem:[%s1007 + $0x134] sm:$0xf] %v1289
        %1354 = vst [vmem:[%s1007 + $0x140] sm:$0xf] %v1290
        %1355 = vst [vmem:[%s1007 + $0x14c] sm:$0xf] %v1291
        %1356 = vst [vmem:[%s1007 + $0x158] sm:$0xf] %v1292
        %1357 = vst [vmem:[%s1007 + $0x164] sm:$0xf] %v1293
        %1358 = vst [vmem:[%s1007 + $0x170] sm:$0xf] %v1294
        %1359 = vst [vmem:[%s1007 + $0x17c] sm:$0xf] %v1295
        %v1360 = vld [vmem:[#allocation2] sm:$0xff]
        %v1361 = vld [vmem:[#allocation2 + $0x8] sm:$0xf]
        %v1362 = vld [vmem:[#allocation2 + $0xc] sm:$0xff]
        %v1363 = vld [vmem:[#allocation2 + $0x14] sm:$0xf]
        %v1364 = vld [vmem:[#allocation2 + $0x18] sm:$0xff]
        %v1365 = vld [vmem:[#allocation2 + $0x20] sm:$0xf]
        %v1366 = vld [vmem:[#allocation2 + $0x24] sm:$0xff]
        %v1367 = vld [vmem:[#allocation2 + $0x2c] sm:$0xf]
        %v1368 = vld [vmem:[#allocation2 + $0x30] sm:$0xff]
        %v1369 = vld [vmem:[#allocation2 + $0x38] sm:$0xf]
        %v1370 = vld [vmem:[#allocation2 + $0x3c] sm:$0xff]
        %v1371 = vld [vmem:[#allocation2 + $0x44] sm:$0xf]
        %v1372 = vld [vmem:[#allocation2 + $0x48] sm:$0xff]
        %v1373 = vld [vmem:[#allocation2 + $0x50] sm:$0xf]
        %v1374 = vld [vmem:[#allocation2 + $0x54] sm:$0xff]
        %v1375 = vld [vmem:[#allocation2 + $0x5c] sm:$0xf]
        %v1376 = vld [vmem:[#allocation2 + $0x60] sm:$0xff]
        %v1377 = vld [vmem:[#allocation2 + $0x68] sm:$0xf]
        %v1378 = vld [vmem:[#allocation2 + $0x6c] sm:$0xff]
        %v1379 = vld [vmem:[#allocation2 + $0x74] sm:$0xf]
        %v1380 = vld [vmem:[#allocation2 + $0x78] sm:$0xff]
        %v1381 = vld [vmem:[#allocation2 + $0x80] sm:$0xf]
        %v1382 = vld [vmem:[#allocation2 + $0x84] sm:$0xff]
        %v1383 = vld [vmem:[#allocation2 + $0x8c] sm:$0xf]
        %v1384 = vld [vmem:[#allocation2 + $0x90] sm:$0xff]
        %v1385 = vld [vmem:[#allocation2 + $0x98] sm:$0xf]
        %v1386 = vld [vmem:[#allocation2 + $0x9c] sm:$0xff]
        %v1387 = vld [vmem:[#allocation2 + $0xa4] sm:$0xf]
        %v1388 = vld [vmem:[#allocation2 + $0xa8] sm:$0xff]
        %v1389 = vld [vmem:[#allocation2 + $0xb0] sm:$0xf]
        %v1390 = vld [vmem:[#allocation2 + $0xb4] sm:$0xff]
        %v1391 = vld [vmem:[#allocation2 + $0xbc] sm:$0xf]
        %v1392 = vld [vmem:[#allocation2 + $0xc0] sm:$0xff]
        %v1393 = vld [vmem:[#allocation2 + $0xc8] sm:$0xf]
        %v1394 = vld [vmem:[#allocation2 + $0xcc] sm:$0xff]
        %v1395 = vld [vmem:[#allocation2 + $0xd4] sm:$0xf]
        %v1396 = vld [vmem:[#allocation2 + $0xd8] sm:$0xff]
        %v1397 = vld [vmem:[#allocation2 + $0xe0] sm:$0xf]
        %v1398 = vld [vmem:[#allocation2 + $0xe4] sm:$0xff]
        %v1399 = vld [vmem:[#allocation2 + $0xec] sm:$0xf]
        %v1400 = vld [vmem:[#allocation2 + $0xf0] sm:$0xff]
        %v1401 = vld [vmem:[#allocation2 + $0xf8] sm:$0xf]
        %v1402 = vld [vmem:[#allocation2 + $0xfc] sm:$0xff]
        %v1403 = vld [vmem:[#allocation2 + $0x104] sm:$0xf]
        %v1404 = vld [vmem:[#allocation2 + $0x108] sm:$0xff]
        %v1405 = vld [vmem:[#allocation2 + $0x110] sm:$0xf]
        %v1406 = vld [vmem:[#allocation2 + $0x114] sm:$0xff]
        %v1407 = vld [vmem:[#allocation2 + $0x11c] sm:$0xf]
        %v1408 = vld [vmem:[#allocation2 + $0x120] sm:$0xff]
        %v1409 = vld [vmem:[#allocation2 + $0x128] sm:$0xf]
        %v1410 = vld [vmem:[#allocation2 + $0x12c] sm:$0xff]
        %v1411 = vld [vmem:[#allocation2 + $0x134] sm:$0xf]
        %v1412 = vld [vmem:[#allocation2 + $0x138] sm:$0xff]
        %v1413 = vld [vmem:[#allocation2 + $0x140] sm:$0xf]
        %v1414 = vld [vmem:[#allocation2 + $0x144] sm:$0xff]
        %v1415 = vld [vmem:[#allocation2 + $0x14c] sm:$0xf]
        %v1416 = vld [vmem:[#allocation2 + $0x150] sm:$0xff]
        %v1417 = vld [vmem:[#allocation2 + $0x158] sm:$0xf]
        %v1418 = vld [vmem:[#allocation2 + $0x15c] sm:$0xff]
        %v1419 = vld [vmem:[#allocation2 + $0x164] sm:$0xf]
        %v1420 = vld [vmem:[#allocation2 + $0x168] sm:$0xff]
        %v1421 = vld [vmem:[#allocation2 + $0x170] sm:$0xf]
        %v1422 = vld [vmem:[#allocation2 + $0x174] sm:$0xff]
        %v1423 = vld [vmem:[#allocation2 + $0x17c] sm:$0xf]
        %v1424 = vld [vmem:[%s3] sm:$0xf]
        %v1425 = vld [vmem:[%s3 + $0x4] sm:$0xf]
        %v1426 = vld [vmem:[%s3 + $0x8] sm:$0xf]
        %v1427 = vld [vmem:[%s3 + $0xc] sm:$0xf]
        %v1428 = vld [vmem:[%s3 + $0x10] sm:$0xf]
        %v1429 = vld [vmem:[%s3 + $0x14] sm:$0xf]
        %v1430 = vld [vmem:[%s3 + $0x18] sm:$0xf]
        %v1431 = vld [vmem:[%s3 + $0x1c] sm:$0xf]
        %v1432 = vld [vmem:[%s3 + $0x20] sm:$0xf]
        %v1433 = vld [vmem:[%s3 + $0x24] sm:$0xf]
        %v1434 = vld [vmem:[%s3 + $0x28] sm:$0xf]
        %v1435 = vld [vmem:[%s3 + $0x2c] sm:$0xf]
        %v1436 = vld [vmem:[%s3 + $0x30] sm:$0xf]
        %v1437 = vld [vmem:[%s3 + $0x34] sm:$0xf]
        %v1438 = vld [vmem:[%s3 + $0x38] sm:$0xf]
        %v1439 = vld [vmem:[%s3 + $0x3c] sm:$0xf]
        %v1440 = vld [vmem:[%s3 + $0x40] sm:$0xf]
        %v1441 = vld [vmem:[%s3 + $0x44] sm:$0xf]
        %v1442 = vld [vmem:[%s3 + $0x48] sm:$0xf]
        %v1443 = vld [vmem:[%s3 + $0x4c] sm:$0xf]
        %v1444 = vld [vmem:[%s3 + $0x50] sm:$0xf]
        %v1445 = vld [vmem:[%s3 + $0x54] sm:$0xf]
        %v1446 = vld [vmem:[%s3 + $0x58] sm:$0xf]
        %v1447 = vld [vmem:[%s3 + $0x5c] sm:$0xf]
        %v1448 = vld [vmem:[%s3 + $0x60] sm:$0xf]
        %v1449 = vld [vmem:[%s3 + $0x64] sm:$0xf]
        %v1450 = vld [vmem:[%s3 + $0x68] sm:$0xf]
        %v1451 = vld [vmem:[%s3 + $0x6c] sm:$0xf]
        %v1452 = vld [vmem:[%s3 + $0x70] sm:$0xf]
        %v1453 = vld [vmem:[%s3 + $0x74] sm:$0xf]
        %v1454 = vld [vmem:[%s3 + $0x78] sm:$0xf]
        %v1455 = vld [vmem:[%s3 + $0x7c] sm:$0xf]
        %v1456 = vld [vmem:[%s3 + $0x80] sm:$0xf]
        %v1457 = vld [vmem:[%s3 + $0x84] sm:$0xf]
        %v1458 = vld [vmem:[%s3 + $0x88] sm:$0xf]
        %v1459 = vld [vmem:[%s3 + $0x8c] sm:$0xf]
        %v1460 = vld [vmem:[%s3 + $0x90] sm:$0xf]
        %v1461 = vld [vmem:[%s3 + $0x94] sm:$0xf]
        %v1462 = vld [vmem:[%s3 + $0x98] sm:$0xf]
        %v1463 = vld [vmem:[%s3 + $0x9c] sm:$0xf]
        %v1464 = vld [vmem:[%s3 + $0xa0] sm:$0xf]
        %v1465 = vld [vmem:[%s3 + $0xa4] sm:$0xf]
        %v1466 = vld [vmem:[%s3 + $0xa8] sm:$0xf]
        %v1467 = vld [vmem:[%s3 + $0xac] sm:$0xf]
        %v1468 = vld [vmem:[%s3 + $0xb0] sm:$0xf]
        %v1469 = vld [vmem:[%s3 + $0xb4] sm:$0xf]
        %v1470 = vld [vmem:[%s3 + $0xb8] sm:$0xf]
        %v1471 = vld [vmem:[%s3 + $0xbc] sm:$0xf]
        %v1472 = vld [vmem:[%s1007] sm:$0xff]
        %v1473 = vld [vmem:[%s1007 + $0x8] sm:$0xf]
        %v1474 = vld [vmem:[%s1007 + $0xc] sm:$0xff]
        %v1475 = vld [vmem:[%s1007 + $0x14] sm:$0xf]
        %v1476 = vld [vmem:[%s1007 + $0x18] sm:$0xff]
        %v1477 = vld [vmem:[%s1007 + $0x20] sm:$0xf]
        %v1478 = vld [vmem:[%s1007 + $0x24] sm:$0xff]
        %v1479 = vld [vmem:[%s1007 + $0x2c] sm:$0xf]
        %v1480 = vld [vmem:[%s1007 + $0x30] sm:$0xff]
        %v1481 = vld [vmem:[%s1007 + $0x38] sm:$0xf]
        %v1482 = vld [vmem:[%s1007 + $0x3c] sm:$0xff]
        %v1483 = vld [vmem:[%s1007 + $0x44] sm:$0xf]
        %v1484 = vld [vmem:[%s1007 + $0x48] sm:$0xff]
        %v1485 = vld [vmem:[%s1007 + $0x50] sm:$0xf]
        %v1486 = vld [vmem:[%s1007 + $0x54] sm:$0xff]
        %v1487 = vld [vmem:[%s1007 + $0x5c] sm:$0xf]
        %v1488 = vld [vmem:[%s1007 + $0x60] sm:$0xff]
        %v1489 = vld [vmem:[%s1007 + $0x68] sm:$0xf]
        %v1490 = vld [vmem:[%s1007 + $0x6c] sm:$0xff]
        %v1491 = vld [vmem:[%s1007 + $0x74] sm:$0xf]
        %v1492 = vld [vmem:[%s1007 + $0x78] sm:$0xff]
        %v1493 = vld [vmem:[%s1007 + $0x80] sm:$0xf]
        %v1494 = vld [vmem:[%s1007 + $0x84] sm:$0xff]
        %v1495 = vld [vmem:[%s1007 + $0x8c] sm:$0xf]
        %v1496 = vld [vmem:[%s1007 + $0x90] sm:$0xff]
        %v1497 = vld [vmem:[%s1007 + $0x98] sm:$0xf]
        %v1498 = vld [vmem:[%s1007 + $0x9c] sm:$0xff]
        %v1499 = vld [vmem:[%s1007 + $0xa4] sm:$0xf]
        %v1500 = vld [vmem:[%s1007 + $0xa8] sm:$0xff]
        %v1501 = vld [vmem:[%s1007 + $0xb0] sm:$0xf]
        %v1502 = vld [vmem:[%s1007 + $0xb4] sm:$0xff]
        %v1503 = vld [vmem:[%s1007 + $0xbc] sm:$0xf]
        %v1504 = vld [vmem:[%s1007 + $0xc0] sm:$0xff]
        %v1505 = vld [vmem:[%s1007 + $0xc8] sm:$0xf]
        %v1506 = vld [vmem:[%s1007 + $0xcc] sm:$0xff]
        %v1507 = vld [vmem:[%s1007 + $0xd4] sm:$0xf]
        %v1508 = vld [vmem:[%s1007 + $0xd8] sm:$0xff]
        %v1509 = vld [vmem:[%s1007 + $0xe0] sm:$0xf]
        %v1510 = vld [vmem:[%s1007 + $0xe4] sm:$0xff]
        %v1511 = vld [vmem:[%s1007 + $0xec] sm:$0xf]
        %v1512 = vld [vmem:[%s1007 + $0xf0] sm:$0xff]
        %v1513 = vld [vmem:[%s1007 + $0xf8] sm:$0xf]
        %v1514 = vld [vmem:[%s1007 + $0xfc] sm:$0xff]
        %v1515 = vld [vmem:[%s1007 + $0x104] sm:$0xf]
        %v1516 = vld [vmem:[%s1007 + $0x108] sm:$0xff]
        %v1517 = vld [vmem:[%s1007 + $0x110] sm:$0xf]
        %v1518 = vld [vmem:[%s1007 + $0x114] sm:$0xff]
        %v1519 = vld [vmem:[%s1007 + $0x11c] sm:$0xf]
        %v1520 = vld [vmem:[%s1007 + $0x120] sm:$0xff]
        %v1521 = vld [vmem:[%s1007 + $0x128] sm:$0xf]
        %v1522 = vld [vmem:[%s1007 + $0x12c] sm:$0xff]
        %v1523 = vld [vmem:[%s1007 + $0x134] sm:$0xf]
        %v1524 = vld [vmem:[%s1007 + $0x138] sm:$0xff]
        %v1525 = vld [vmem:[%s1007 + $0x140] sm:$0xf]
        %v1526 = vld [vmem:[%s1007 + $0x144] sm:$0xff]
        %v1527 = vld [vmem:[%s1007 + $0x14c] sm:$0xf]
        %v1528 = vld [vmem:[%s1007 + $0x150] sm:$0xff]
        %v1529 = vld [vmem:[%s1007 + $0x158] sm:$0xf]
        %v1530 = vld [vmem:[%s1007 + $0x15c] sm:$0xff]
        %v1531 = vld [vmem:[%s1007 + $0x164] sm:$0xf]
        %v1532 = vld [vmem:[%s1007 + $0x168] sm:$0xff]
        %v1533 = vld [vmem:[%s1007 + $0x170] sm:$0xf]
        %v1534 = vld [vmem:[%s1007 + $0x174] sm:$0xff]
        %v1535 = vld [vmem:[%s1007 + $0x17c] sm:$0xf]
        %s1536 = scalar_lea.vmem %s3, 192
        %v1537 = vld [vmem:[%s1536] sm:$0xf]
        %v1538 = vld [vmem:[%s1536 + $0x4] sm:$0xf]
        %v1539 = vld [vmem:[%s1536 + $0x8] sm:$0xf]
        %v1540 = vld [vmem:[%s1536 + $0xc] sm:$0xf]
        %v1541 = vld [vmem:[%s1536 + $0x10] sm:$0xf]
        %v1542 = vld [vmem:[%s1536 + $0x14] sm:$0xf]
        %v1543 = vld [vmem:[%s1536 + $0x18] sm:$0xf]
        %v1544 = vld [vmem:[%s1536 + $0x1c] sm:$0xf]
        %v1545 = vld [vmem:[%s1536 + $0x20] sm:$0xf]
        %v1546 = vld [vmem:[%s1536 + $0x24] sm:$0xf]
        %v1547 = vld [vmem:[%s1536 + $0x28] sm:$0xf]
        %v1548 = vld [vmem:[%s1536 + $0x2c] sm:$0xf]
        %v1549 = vld [vmem:[%s1536 + $0x30] sm:$0xf]
        %v1550 = vld [vmem:[%s1536 + $0x34] sm:$0xf]
        %v1551 = vld [vmem:[%s1536 + $0x38] sm:$0xf]
        %v1552 = vld [vmem:[%s1536 + $0x3c] sm:$0xf]
        %v1553 = vld [vmem:[%s1536 + $0x40] sm:$0xf]
        %v1554 = vld [vmem:[%s1536 + $0x44] sm:$0xf]
        %v1555 = vld [vmem:[%s1536 + $0x48] sm:$0xf]
        %v1556 = vld [vmem:[%s1536 + $0x4c] sm:$0xf]
        %v1557 = vld [vmem:[%s1536 + $0x50] sm:$0xf]
        %v1558 = vld [vmem:[%s1536 + $0x54] sm:$0xf]
        %v1559 = vld [vmem:[%s1536 + $0x58] sm:$0xf]
        %v1560 = vld [vmem:[%s1536 + $0x5c] sm:$0xf]
        %v1561 = vld [vmem:[%s1536 + $0x60] sm:$0xf]
        %v1562 = vld [vmem:[%s1536 + $0x64] sm:$0xf]
        %v1563 = vld [vmem:[%s1536 + $0x68] sm:$0xf]
        %v1564 = vld [vmem:[%s1536 + $0x6c] sm:$0xf]
        %v1565 = vld [vmem:[%s1536 + $0x70] sm:$0xf]
        %v1566 = vld [vmem:[%s1536 + $0x74] sm:$0xf]
        %v1567 = vld [vmem:[%s1536 + $0x78] sm:$0xf]
        %v1568 = vld [vmem:[%s1536 + $0x7c] sm:$0xf]
        %v1569 = vld [vmem:[%s1536 + $0x80] sm:$0xf]
        %v1570 = vld [vmem:[%s1536 + $0x84] sm:$0xf]
        %v1571 = vld [vmem:[%s1536 + $0x88] sm:$0xf]
        %v1572 = vld [vmem:[%s1536 + $0x8c] sm:$0xf]
        %v1573 = vld [vmem:[%s1536 + $0x90] sm:$0xf]
        %v1574 = vld [vmem:[%s1536 + $0x94] sm:$0xf]
        %v1575 = vld [vmem:[%s1536 + $0x98] sm:$0xf]
        %v1576 = vld [vmem:[%s1536 + $0x9c] sm:$0xf]
        %v1577 = vld [vmem:[%s1536 + $0xa0] sm:$0xf]
        %v1578 = vld [vmem:[%s1536 + $0xa4] sm:$0xf]
        %v1579 = vld [vmem:[%s1536 + $0xa8] sm:$0xf]
        %v1580 = vld [vmem:[%s1536 + $0xac] sm:$0xf]
        %v1581 = vld [vmem:[%s1536 + $0xb0] sm:$0xf]
        %v1582 = vld [vmem:[%s1536 + $0xb4] sm:$0xf]
        %v1583 = vld [vmem:[%s1536 + $0xb8] sm:$0xf]
        %v1584 = vld [vmem:[%s1536 + $0xbc] sm:$0xf]
        %v1649 = vunpack.c.l.b16 %v1472
        %v1650 = vunpack.c.h.b16 %v1472
        %v1651 = vunpack.c.l.b16 %v1473
        %v1652 = vunpack.c.l.b16 %v1474
        %v1653 = vunpack.c.h.b16 %v1474
        %v1654 = vunpack.c.l.b16 %v1475
        %v1655 = vunpack.c.l.b16 %v1476
        %v1656 = vunpack.c.h.b16 %v1476
        %v1657 = vunpack.c.l.b16 %v1477
        %v1658 = vunpack.c.l.b16 %v1478
        %v1659 = vunpack.c.h.b16 %v1478
        %v1660 = vunpack.c.l.b16 %v1479
        %v1661 = vunpack.c.l.b16 %v1480
        %v1662 = vunpack.c.h.b16 %v1480
        %v1663 = vunpack.c.l.b16 %v1481
        %v1664 = vunpack.c.l.b16 %v1482
        %v1665 = vunpack.c.h.b16 %v1482
        %v1666 = vunpack.c.l.b16 %v1483
        %v1667 = vunpack.c.l.b16 %v1484
        %v1668 = vunpack.c.h.b16 %v1484
        %v1669 = vunpack.c.l.b16 %v1485
        %v1670 = vunpack.c.l.b16 %v1486
        %v1671 = vunpack.c.h.b16 %v1486
        %v1672 = vunpack.c.l.b16 %v1487
        %v1673 = vunpack.c.l.b16 %v1488
        %v1674 = vunpack.c.h.b16 %v1488
        %v1675 = vunpack.c.l.b16 %v1489
        %v1676 = vunpack.c.l.b16 %v1490
        %v1677 = vunpack.c.h.b16 %v1490
        %v1678 = vunpack.c.l.b16 %v1491
        %v1679 = vunpack.c.l.b16 %v1492
        %v1680 = vunpack.c.h.b16 %v1492
        %v1681 = vunpack.c.l.b16 %v1493
        %v1682 = vunpack.c.l.b16 %v1494
        %v1683 = vunpack.c.h.b16 %v1494
        %v1684 = vunpack.c.l.b16 %v1495
        %v1685 = vunpack.c.l.b16 %v1496
        %v1686 = vunpack.c.h.b16 %v1496
        %v1687 = vunpack.c.l.b16 %v1497
        %v1688 = vunpack.c.l.b16 %v1498
        %v1689 = vunpack.c.h.b16 %v1498
        %v1690 = vunpack.c.l.b16 %v1499
        %v1691 = vunpack.c.l.b16 %v1500
        %v1692 = vunpack.c.h.b16 %v1500
        %v1693 = vunpack.c.l.b16 %v1501
        %v1694 = vunpack.c.l.b16 %v1502
        %v1695 = vunpack.c.h.b16 %v1502
        %v1696 = vunpack.c.l.b16 %v1503
        %v1697 = vunpack.c.l.b16 %v1504
        %v1698 = vunpack.c.h.b16 %v1504
        %v1699 = vunpack.c.l.b16 %v1505
        %v1700 = vunpack.c.l.b16 %v1506
        %v1701 = vunpack.c.h.b16 %v1506
        %v1702 = vunpack.c.l.b16 %v1507
        %v1703 = vunpack.c.l.b16 %v1508
        %v1704 = vunpack.c.h.b16 %v1508
        %v1705 = vunpack.c.l.b16 %v1509
        %v1706 = vunpack.c.l.b16 %v1510
        %v1707 = vunpack.c.h.b16 %v1510
        %v1708 = vunpack.c.l.b16 %v1511
        %v1709 = vunpack.c.l.b16 %v1512
        %v1710 = vunpack.c.h.b16 %v1512
        %v1711 = vunpack.c.l.b16 %v1513
        %v1712 = vunpack.c.l.b16 %v1514
        %v1713 = vunpack.c.h.b16 %v1514
        %v1714 = vunpack.c.l.b16 %v1515
        %v1715 = vunpack.c.l.b16 %v1516
        %v1716 = vunpack.c.h.b16 %v1516
        %v1717 = vunpack.c.l.b16 %v1517
        %v1718 = vunpack.c.l.b16 %v1518
        %v1719 = vunpack.c.h.b16 %v1518
        %v1720 = vunpack.c.l.b16 %v1519
        %v1721 = vunpack.c.l.b16 %v1520
        %v1722 = vunpack.c.h.b16 %v1520
        %v1723 = vunpack.c.l.b16 %v1521
        %v1724 = vunpack.c.l.b16 %v1522
        %v1725 = vunpack.c.h.b16 %v1522
        %v1726 = vunpack.c.l.b16 %v1523
        %v1727 = vunpack.c.l.b16 %v1524
        %v1728 = vunpack.c.h.b16 %v1524
        %v1729 = vunpack.c.l.b16 %v1525
        %v1730 = vunpack.c.l.b16 %v1526
        %v1731 = vunpack.c.h.b16 %v1526
        %v1732 = vunpack.c.l.b16 %v1527
        %v1733 = vunpack.c.l.b16 %v1528
        %v1734 = vunpack.c.h.b16 %v1528
        %v1735 = vunpack.c.l.b16 %v1529
        %v1736 = vunpack.c.l.b16 %v1530
        %v1737 = vunpack.c.h.b16 %v1530
        %v1738 = vunpack.c.l.b16 %v1531
        %v1739 = vunpack.c.l.b16 %v1532
        %v1740 = vunpack.c.h.b16 %v1532
        %v1741 = vunpack.c.l.b16 %v1533
        %v1742 = vunpack.c.l.b16 %v1534
        %v1743 = vunpack.c.h.b16 %v1534
        %v1744 = vunpack.c.l.b16 %v1535
        %v1745 = vpack.c.b16 %v1652, %v1649
        %v1746 = vpack.c.b16 %v1653, %v1650
        %v1747 = vpack.c.b16 %v1654, %v1651
        %v1748 = vpack.c.b16 %v1658, %v1655
        %v1749 = vpack.c.b16 %v1659, %v1656
        %v1750 = vpack.c.b16 %v1660, %v1657
        %v1751 = vpack.c.b16 %v1664, %v1661
        %v1752 = vpack.c.b16 %v1665, %v1662
        %v1753 = vpack.c.b16 %v1666, %v1663
        %v1754 = vpack.c.b16 %v1670, %v1667
        %v1755 = vpack.c.b16 %v1671, %v1668
        %v1756 = vpack.c.b16 %v1672, %v1669
        %v1757 = vpack.c.b16 %v1676, %v1673
        %v1758 = vpack.c.b16 %v1677, %v1674
        %v1759 = vpack.c.b16 %v1678, %v1675
        %v1760 = vpack.c.b16 %v1682, %v1679
        %v1761 = vpack.c.b16 %v1683, %v1680
        %v1762 = vpack.c.b16 %v1684, %v1681
        %v1763 = vpack.c.b16 %v1688, %v1685
        %v1764 = vpack.c.b16 %v1689, %v1686
        %v1765 = vpack.c.b16 %v1690, %v1687
        %v1766 = vpack.c.b16 %v1694, %v1691
        %v1767 = vpack.c.b16 %v1695, %v1692
        %v1768 = vpack.c.b16 %v1696, %v1693
        %v1769 = vpack.c.b16 %v1700, %v1697
        %v1770 = vpack.c.b16 %v1701, %v1698
        %v1771 = vpack.c.b16 %v1702, %v1699
        %v1772 = vpack.c.b16 %v1706, %v1703
        %v1773 = vpack.c.b16 %v1707, %v1704
        %v1774 = vpack.c.b16 %v1708, %v1705
        %v1775 = vpack.c.b16 %v1712, %v1709
        %v1776 = vpack.c.b16 %v1713, %v1710
        %v1777 = vpack.c.b16 %v1714, %v1711
        %v1778 = vpack.c.b16 %v1718, %v1715
        %v1779 = vpack.c.b16 %v1719, %v1716
        %v1780 = vpack.c.b16 %v1720, %v1717
        %v1781 = vpack.c.b16 %v1724, %v1721
        %v1782 = vpack.c.b16 %v1725, %v1722
        %v1783 = vpack.c.b16 %v1726, %v1723
        %v1784 = vpack.c.b16 %v1730, %v1727
        %v1785 = vpack.c.b16 %v1731, %v1728
        %v1786 = vpack.c.b16 %v1732, %v1729
        %v1787 = vpack.c.b16 %v1736, %v1733
        %v1788 = vpack.c.b16 %v1737, %v1734
        %v1789 = vpack.c.b16 %v1738, %v1735
        %v1790 = vpack.c.b16 %v1742, %v1739
        %v1791 = vpack.c.b16 %v1743, %v1740
        %v1792 = vpack.c.b16 %v1744, %v1741
        %v1889 = vunpack.c.l.b16 %v1537
        %v1890 = vunpack.c.l.b16 %v1538
        %v1891 = vunpack.c.l.b16 %v1539
        %v1892 = vunpack.c.l.b16 %v1540
        %v1893 = vunpack.c.l.b16 %v1541
        %v1894 = vunpack.c.l.b16 %v1542
        %v1895 = vunpack.c.l.b16 %v1543
        %v1896 = vunpack.c.l.b16 %v1544
        %v1897 = vunpack.c.l.b16 %v1545
        %v1898 = vunpack.c.l.b16 %v1546
        %v1899 = vunpack.c.l.b16 %v1547
        %v1900 = vunpack.c.l.b16 %v1548
        %v1901 = vunpack.c.l.b16 %v1549
        %v1902 = vunpack.c.l.b16 %v1550
        %v1903 = vunpack.c.l.b16 %v1551
        %v1904 = vunpack.c.l.b16 %v1552
        %v1905 = vunpack.c.l.b16 %v1553
        %v1906 = vunpack.c.l.b16 %v1554
        %v1907 = vunpack.c.l.b16 %v1555
        %v1908 = vunpack.c.l.b16 %v1556
        %v1909 = vunpack.c.l.b16 %v1557
        %v1910 = vunpack.c.l.b16 %v1558
        %v1911 = vunpack.c.l.b16 %v1559
        %v1912 = vunpack.c.l.b16 %v1560
        %v1913 = vunpack.c.l.b16 %v1561
        %v1914 = vunpack.c.l.b16 %v1562
        %v1915 = vunpack.c.l.b16 %v1563
        %v1916 = vunpack.c.l.b16 %v1564
        %v1917 = vunpack.c.l.b16 %v1565
        %v1918 = vunpack.c.l.b16 %v1566
        %v1919 = vunpack.c.l.b16 %v1567
        %v1920 = vunpack.c.l.b16 %v1568
        %v1921 = vunpack.c.l.b16 %v1569
        %v1922 = vunpack.c.l.b16 %v1570
        %v1923 = vunpack.c.l.b16 %v1571
        %v1924 = vunpack.c.l.b16 %v1572
        %v1925 = vunpack.c.l.b16 %v1573
        %v1926 = vunpack.c.l.b16 %v1574
        %v1927 = vunpack.c.l.b16 %v1575
        %v1928 = vunpack.c.l.b16 %v1576
        %v1929 = vunpack.c.l.b16 %v1577
        %v1930 = vunpack.c.l.b16 %v1578
        %v1931 = vunpack.c.l.b16 %v1579
        %v1932 = vunpack.c.l.b16 %v1580
        %v1933 = vunpack.c.l.b16 %v1581
        %v1934 = vunpack.c.l.b16 %v1582
        %v1935 = vunpack.c.l.b16 %v1583
        %v1936 = vunpack.c.l.b16 %v1584
        %v1937 = vpack.c.b16 %v1890, %v1889
        %v1938 = vpack.c.b16 %v1892, %v1891
        %v1939 = vpack.c.b16 %v1894, %v1893
        %v1940 = vpack.c.b16 %v1896, %v1895
        %v1941 = vpack.c.b16 %v1898, %v1897
        %v1942 = vpack.c.b16 %v1900, %v1899
        %v1943 = vpack.c.b16 %v1902, %v1901
        %v1944 = vpack.c.b16 %v1904, %v1903
        %v1945 = vpack.c.b16 %v1906, %v1905
        %v1946 = vpack.c.b16 %v1908, %v1907
        %v1947 = vpack.c.b16 %v1910, %v1909
        %v1948 = vpack.c.b16 %v1912, %v1911
        %v1949 = vpack.c.b16 %v1914, %v1913
        %v1950 = vpack.c.b16 %v1916, %v1915
        %v1951 = vpack.c.b16 %v1918, %v1917
        %v1952 = vpack.c.b16 %v1920, %v1919
        %v1953 = vpack.c.b16 %v1922, %v1921
        %v1954 = vpack.c.b16 %v1924, %v1923
        %v1955 = vpack.c.b16 %v1926, %v1925
        %v1956 = vpack.c.b16 %v1928, %v1927
        %v1957 = vpack.c.b16 %v1930, %v1929
        %v1958 = vpack.c.b16 %v1932, %v1931
        %v1959 = vpack.c.b16 %v1934, %v1933
        %v1960 = vpack.c.b16 %v1936, %v1935
        %1985 = vmatprep.subr.bf16.mxu0 0
        %1986 = vmatpush1.bf16.msra.mxu0 %v1944
        %1987 = vmatprep.subr.bf16.mxu0 0
        %1988 = vmatpush1.bf16.msra.mxu0 %v1943
        %1989 = vmatprep.subr.bf16.mxu0 0
        %1990 = vmatpush1.bf16.msra.mxu0 %v1942
        %1991 = vmatprep.subr.bf16.mxu0 0
        %1992 = vmatpush1.bf16.msra.mxu0 %v1941
        %1993 = vmatprep.subr.bf16.mxu0 0
        %1994 = vmatpush1.bf16.msra.mxu0 %v1940
        %1995 = vmatprep.subr.bf16.mxu0 0
        %1996 = vmatpush1.bf16.msra.mxu0 %v1939
        %1997 = vmatprep.subr.bf16.mxu0 0
        %1998 = vmatpush1.bf16.msra.mxu0 %v1938
        %1999 = vmatprep.subr.bf16.mxu0 0
        %2000 = vmatpush1.bf16.msra.mxu0 %v1937
        %2001 = vmatprep.subr.bf16.mxu0 0
        %2002 = vmatpush2.bf16.msra.mxu0 %v1952
        %2003 = vmatprep.subr.bf16.mxu0 0
        %2004 = vmatpush2.bf16.msra.mxu0 %v1951
        %2005 = vmatprep.subr.bf16.mxu0 0
        %2006 = vmatpush2.bf16.msra.mxu0 %v1950
        %2007 = vmatprep.subr.bf16.mxu0 0
        %2008 = vmatpush2.bf16.msra.mxu0 %v1949
        %2009 = vmatprep.subr.bf16.mxu0 0
        %2010 = vmatpush2.bf16.msra.mxu0 %v1948
        %2011 = vmatprep.subr.bf16.mxu0 0
        %2012 = vmatpush2.bf16.msra.mxu0 %v1947
        %2013 = vmatprep.subr.bf16.mxu0 0
        %2014 = vmatpush2.bf16.msra.mxu0 %v1946
        %2015 = vmatprep.subr.bf16.mxu0 0
        %2016 = vmatpush2.bf16.msra.mxu0 %v1945
        %2017 = vmatprep.mubr.bf16.mxu0 %v1746
        %2018 = vmatmul.mubr.bf16.gmra.mxu0 %v1745
        %v2019 = vpop.f32.mrf.mxu0
        %v2020 = vadd.f32 0.0, %v2019
        %v2021 = vpop.f32.mrf.mxu0
        %v2022 = vpop.f32.mrf.mxu0
        %v2023 = vadd.f32 0.0, %v2022
        %v2024 = vpop.f32.mrf.mxu0
        %2025 = vmatprep.mubr.bf16.mxu0 %v1749
        %2026 = vmatmul.mubr.bf16.gmra.mxu0 %v1748
        %v2027 = vpop.f32.mrf.mxu0
        %v2028 = vadd.f32 0.0, %v2027
        %v2029 = vpop.f32.mrf.mxu0
        %v2030 = vpop.f32.mrf.mxu0
        %v2031 = vadd.f32 0.0, %v2030
        %v2032 = vpop.f32.mrf.mxu0
        %2033 = vmatprep.mubr.bf16.mxu0 %v1752
        %2034 = vmatmul.mubr.bf16.gmra.mxu0 %v1751
        %v2035 = vpop.f32.mrf.mxu0
        %v2036 = vadd.f32 0.0, %v2035
        %v2037 = vpop.f32.mrf.mxu0
        %v2038 = vpop.f32.mrf.mxu0
        %v2039 = vadd.f32 0.0, %v2038
        %v2040 = vpop.f32.mrf.mxu0
        %2041 = vmatprep.mubr.bf16.mxu0 %v1755
        %2042 = vmatmul.mubr.bf16.gmra.mxu0 %v1754
        %v2043 = vpop.f32.mrf.mxu0
        %v2044 = vadd.f32 0.0, %v2043
        %v2045 = vpop.f32.mrf.mxu0
        %v2046 = vpop.f32.mrf.mxu0
        %v2047 = vadd.f32 0.0, %v2046
        %v2048 = vpop.f32.mrf.mxu0
        %2049 = vmatprep.mubr.bf16.mxu0 %v1758
        %2050 = vmatmul.mubr.bf16.gmra.mxu0 %v1757
        %v2051 = vpop.f32.mrf.mxu0
        %v2052 = vadd.f32 0.0, %v2051
        %v2053 = vpop.f32.mrf.mxu0
        %v2054 = vpop.f32.mrf.mxu0
        %v2055 = vadd.f32 0.0, %v2054
        %v2056 = vpop.f32.mrf.mxu0
        %2057 = vmatprep.mubr.bf16.mxu0 %v1761
        %2058 = vmatmul.mubr.bf16.gmra.mxu0 %v1760
        %v2059 = vpop.f32.mrf.mxu0
        %v2060 = vadd.f32 0.0, %v2059
        %v2061 = vpop.f32.mrf.mxu0
        %v2062 = vpop.f32.mrf.mxu0
        %v2063 = vadd.f32 0.0, %v2062
        %v2064 = vpop.f32.mrf.mxu0
        %2065 = vmatprep.mubr.bf16.mxu0 %v1764
        %2066 = vmatmul.mubr.bf16.gmra.mxu0 %v1763
        %v2067 = vpop.f32.mrf.mxu0
        %v2068 = vadd.f32 0.0, %v2067
        %v2069 = vpop.f32.mrf.mxu0
        %v2070 = vpop.f32.mrf.mxu0
        %v2071 = vadd.f32 0.0, %v2070
        %v2072 = vpop.f32.mrf.mxu0
        %2073 = vmatprep.mubr.bf16.mxu0 %v1767
        %2074 = vmatmul.mubr.bf16.gmra.mxu0 %v1766
        %v2075 = vpop.f32.mrf.mxu0
        %v2076 = vadd.f32 0.0, %v2075
        %v2077 = vpop.f32.mrf.mxu0
        %v2078 = vpop.f32.mrf.mxu0
        %v2079 = vadd.f32 0.0, %v2078
        %v2080 = vpop.f32.mrf.mxu0
        %2081 = vmatprep.mubr.bf16.mxu0 %v1770
        %2082 = vmatmul.mubr.bf16.gmra.mxu0 %v1769
        %v2083 = vpop.f32.mrf.mxu0
        %v2084 = vadd.f32 0.0, %v2083
        %v2085 = vpop.f32.mrf.mxu0
        %v2086 = vpop.f32.mrf.mxu0
        %v2087 = vadd.f32 0.0, %v2086
        %v2088 = vpop.f32.mrf.mxu0
        %2089 = vmatprep.mubr.bf16.mxu0 %v1773
        %2090 = vmatmul.mubr.bf16.gmra.mxu0 %v1772
        %v2091 = vpop.f32.mrf.mxu0
        %v2092 = vadd.f32 0.0, %v2091
        %v2093 = vpop.f32.mrf.mxu0
        %v2094 = vpop.f32.mrf.mxu0
        %v2095 = vadd.f32 0.0, %v2094
        %v2096 = vpop.f32.mrf.mxu0
        %2097 = vmatprep.mubr.bf16.mxu0 %v1776
        %2098 = vmatmul.mubr.bf16.gmra.mxu0 %v1775
        %v2099 = vpop.f32.mrf.mxu0
        %v2100 = vadd.f32 0.0, %v2099
        %v2101 = vpop.f32.mrf.mxu0
        %v2102 = vpop.f32.mrf.mxu0
        %v2103 = vadd.f32 0.0, %v2102
        %v2104 = vpop.f32.mrf.mxu0
        %2105 = vmatprep.mubr.bf16.mxu0 %v1779
        %2106 = vmatmul.mubr.bf16.gmra.mxu0 %v1778
        %v2107 = vpop.f32.mrf.mxu0
        %v2108 = vadd.f32 0.0, %v2107
        %v2109 = vpop.f32.mrf.mxu0
        %v2110 = vpop.f32.mrf.mxu0
        %v2111 = vadd.f32 0.0, %v2110
        %v2112 = vpop.f32.mrf.mxu0
        %2113 = vmatprep.mubr.bf16.mxu0 %v1782
        %2114 = vmatmul.mubr.bf16.gmra.mxu0 %v1781
        %v2115 = vpop.f32.mrf.mxu0
        %v2116 = vadd.f32 0.0, %v2115
        %v2117 = vpop.f32.mrf.mxu0
        %v2118 = vpop.f32.mrf.mxu0
        %v2119 = vadd.f32 0.0, %v2118
        %v2120 = vpop.f32.mrf.mxu0
        %2121 = vmatprep.mubr.bf16.mxu0 %v1785
        %2122 = vmatmul.mubr.bf16.gmra.mxu0 %v1784
        %v2123 = vpop.f32.mrf.mxu0
        %v2124 = vadd.f32 0.0, %v2123
        %v2125 = vpop.f32.mrf.mxu0
        %v2126 = vpop.f32.mrf.mxu0
        %v2127 = vadd.f32 0.0, %v2126
        %v2128 = vpop.f32.mrf.mxu0
        %2129 = vmatprep.mubr.bf16.mxu0 %v1788
        %2130 = vmatmul.mubr.bf16.gmra.mxu0 %v1787
        %v2131 = vpop.f32.mrf.mxu0
        %v2132 = vadd.f32 0.0, %v2131
        %v2133 = vpop.f32.mrf.mxu0
        %v2134 = vpop.f32.mrf.mxu0
        %v2135 = vadd.f32 0.0, %v2134
        %v2136 = vpop.f32.mrf.mxu0
        %2137 = vmatprep.mubr.bf16.mxu0 %v1791
        %2138 = vmatmul.mubr.bf16.gmra.mxu0 %v1790
        %v2139 = vpop.f32.mrf.mxu0
        %v2140 = vadd.f32 0.0, %v2139
        %v2141 = vpop.f32.mrf.mxu0
        %v2142 = vpop.f32.mrf.mxu0
        %v2143 = vadd.f32 0.0, %v2142
        %v2144 = vpop.f32.mrf.mxu0
        %2145 = vdwg.mxu0
        %2146 = vmatprep.subr.bf16.mxu0 0
        %2147 = vmatpush1.bf16.msra.mxu0 %v1960
        %2148 = vmatprep.subr.bf16.mxu0 0
        %2149 = vmatpush1.bf16.msra.mxu0 %v1959
        %2150 = vmatprep.subr.bf16.mxu0 0
        %2151 = vmatpush1.bf16.msra.mxu0 %v1958
        %2152 = vmatprep.subr.bf16.mxu0 0
        %2153 = vmatpush1.bf16.msra.mxu0 %v1957
        %2154 = vmatprep.subr.bf16.mxu0 0
        %2155 = vmatpush1.bf16.msra.mxu0 %v1956
        %2156 = vmatprep.subr.bf16.mxu0 0
        %2157 = vmatpush1.bf16.msra.mxu0 %v1955
        %2158 = vmatprep.subr.bf16.mxu0 0
        %2159 = vmatpush1.bf16.msra.mxu0 %v1954
        %2160 = vmatprep.subr.bf16.mxu0 0
        %2161 = vmatpush1.bf16.msra.mxu0 %v1953
        %2162 = vmatprep.subr.bf16.mxu0 0
        %2163 = vmatpush2.bf16.msra.mxu0 0
        %2164 = vmatprep.subr.bf16.mxu0 0
        %2165 = vmatpush2.bf16.msra.mxu0 0
        %2166 = vmatprep.subr.bf16.mxu0 0
        %2167 = vmatpush2.bf16.msra.mxu0 0
        %2168 = vmatprep.subr.bf16.mxu0 0
        %2169 = vmatpush2.bf16.msra.mxu0 0
        %2170 = vmatprep.subr.bf16.mxu0 0
        %2171 = vmatpush2.bf16.msra.mxu0 0
        %2172 = vmatprep.subr.bf16.mxu0 0
        %2173 = vmatpush2.bf16.msra.mxu0 0
        %2174 = vmatprep.subr.bf16.mxu0 0
        %2175 = vmatpush2.bf16.msra.mxu0 0
        %2176 = vmatprep.subr.bf16.mxu0 0
        %2177 = vmatpush2.bf16.msra.mxu0 0
        %2178 = vmatprep.mubr.bf16.mxu0 0
        %2179 = vmatmul.mubr.bf16.gmra.mxu0 %v1747
        %v2180 = vpop.f32.mrf.mxu0
        %v2181 = vadd.f32 %v2020, %v2180
        %v2182 = vpop.f32.mrf.mxu0
        %v2183 = vpop.f32.mrf.mxu0
        %v2184 = vadd.f32 %v2023, %v2183
        %v2185 = vpop.f32.mrf.mxu0
        %2186 = vmatprep.mubr.bf16.mxu0 0
        %2187 = vmatmul.mubr.bf16.gmra.mxu0 %v1750
        %v2188 = vpop.f32.mrf.mxu0
        %v2189 = vadd.f32 %v2028, %v2188
        %v2190 = vpop.f32.mrf.mxu0
        %v2191 = vpop.f32.mrf.mxu0
        %v2192 = vadd.f32 %v2031, %v2191
        %v2193 = vpop.f32.mrf.mxu0
        %2194 = vmatprep.mubr.bf16.mxu0 0
        %2195 = vmatmul.mubr.bf16.gmra.mxu0 %v1753
        %v2196 = vpop.f32.mrf.mxu0
        %v2197 = vadd.f32 %v2036, %v2196
        %v2198 = vpop.f32.mrf.mxu0
        %v2199 = vpop.f32.mrf.mxu0
        %v2200 = vadd.f32 %v2039, %v2199
        %v2201 = vpop.f32.mrf.mxu0
        %2202 = vmatprep.mubr.bf16.mxu0 0
        %2203 = vmatmul.mubr.bf16.gmra.mxu0 %v1756
        %v2204 = vpop.f32.mrf.mxu0
        %v2205 = vadd.f32 %v2044, %v2204
        %v2206 = vpop.f32.mrf.mxu0
        %v2207 = vpop.f32.mrf.mxu0
        %v2208 = vadd.f32 %v2047, %v2207
        %v2209 = vpop.f32.mrf.mxu0
        %2210 = vmatprep.mubr.bf16.mxu0 0
        %2211 = vmatmul.mubr.bf16.gmra.mxu0 %v1759
        %v2212 = vpop.f32.mrf.mxu0
        %v2213 = vadd.f32 %v2052, %v2212
        %v2214 = vpop.f32.mrf.mxu0
        %v2215 = vpop.f32.mrf.mxu0
        %v2216 = vadd.f32 %v2055, %v2215
        %v2217 = vpop.f32.mrf.mxu0
        %2218 = vmatprep.mubr.bf16.mxu0 0
        %2219 = vmatmul.mubr.bf16.gmra.mxu0 %v1762
        %v2220 = vpop.f32.mrf.mxu0
        %v2221 = vadd.f32 %v2060, %v2220
        %v2222 = vpop.f32.mrf.mxu0
        %v2223 = vpop.f32.mrf.mxu0
        %v2224 = vadd.f32 %v2063, %v2223
        %v2225 = vpop.f32.mrf.mxu0
        %2226 = vmatprep.mubr.bf16.mxu0 0
        %2227 = vmatmul.mubr.bf16.gmra.mxu0 %v1765
        %v2228 = vpop.f32.mrf.mxu0
        %v2229 = vadd.f32 %v2068, %v2228
        %v2230 = vpop.f32.mrf.mxu0
        %v2231 = vpop.f32.mrf.mxu0
        %v2232 = vadd.f32 %v2071, %v2231
        %v2233 = vpop.f32.mrf.mxu0
        %2234 = vmatprep.mubr.bf16.mxu0 0
        %2235 = vmatmul.mubr.bf16.gmra.mxu0 %v1768
        %v2236 = vpop.f32.mrf.mxu0
        %v2237 = vadd.f32 %v2076, %v2236
        %v2238 = vpop.f32.mrf.mxu0
        %v2239 = vpop.f32.mrf.mxu0
        %v2240 = vadd.f32 %v2079, %v2239
        %v2241 = vpop.f32.mrf.mxu0
        %2242 = vmatprep.mubr.bf16.mxu0 0
        %2243 = vmatmul.mubr.bf16.gmra.mxu0 %v1771
        %v2244 = vpop.f32.mrf.mxu0
        %v2245 = vadd.f32 %v2084, %v2244
        %v2246 = vpop.f32.mrf.mxu0
        %v2247 = vpop.f32.mrf.mxu0
        %v2248 = vadd.f32 %v2087, %v2247
        %v2249 = vpop.f32.mrf.mxu0
        %2250 = vmatprep.mubr.bf16.mxu0 0
        %2251 = vmatmul.mubr.bf16.gmra.mxu0 %v1774
        %v2252 = vpop.f32.mrf.mxu0
        %v2253 = vadd.f32 %v2092, %v2252
        %v2254 = vpop.f32.mrf.mxu0
        %v2255 = vpop.f32.mrf.mxu0
        %v2256 = vadd.f32 %v2095, %v2255
        %v2257 = vpop.f32.mrf.mxu0
        %2258 = vmatprep.mubr.bf16.mxu0 0
        %2259 = vmatmul.mubr.bf16.gmra.mxu0 %v1777
        %v2260 = vpop.f32.mrf.mxu0
        %v2261 = vadd.f32 %v2100, %v2260
        %v2262 = vpop.f32.mrf.mxu0
        %v2263 = vpop.f32.mrf.mxu0
        %v2264 = vadd.f32 %v2103, %v2263
        %v2265 = vpop.f32.mrf.mxu0
        %2266 = vmatprep.mubr.bf16.mxu0 0
        %2267 = vmatmul.mubr.bf16.gmra.mxu0 %v1780
        %v2268 = vpop.f32.mrf.mxu0
        %v2269 = vadd.f32 %v2108, %v2268
        %v2270 = vpop.f32.mrf.mxu0
        %v2271 = vpop.f32.mrf.mxu0
        %v2272 = vadd.f32 %v2111, %v2271
        %v2273 = vpop.f32.mrf.mxu0
        %2274 = vmatprep.mubr.bf16.mxu0 0
        %2275 = vmatmul.mubr.bf16.gmra.mxu0 %v1783
        %v2276 = vpop.f32.mrf.mxu0
        %v2277 = vadd.f32 %v2116, %v2276
        %v2278 = vpop.f32.mrf.mxu0
        %v2279 = vpop.f32.mrf.mxu0
        %v2280 = vadd.f32 %v2119, %v2279
        %v2281 = vpop.f32.mrf.mxu0
        %2282 = vmatprep.mubr.bf16.mxu0 0
        %2283 = vmatmul.mubr.bf16.gmra.mxu0 %v1786
        %v2284 = vpop.f32.mrf.mxu0
        %v2285 = vadd.f32 %v2124, %v2284
        %v2286 = vpop.f32.mrf.mxu0
        %v2287 = vpop.f32.mrf.mxu0
        %v2288 = vadd.f32 %v2127, %v2287
        %v2289 = vpop.f32.mrf.mxu0
        %2290 = vmatprep.mubr.bf16.mxu0 0
        %2291 = vmatmul.mubr.bf16.gmra.mxu0 %v1789
        %v2292 = vpop.f32.mrf.mxu0
        %v2293 = vadd.f32 %v2132, %v2292
        %v2294 = vpop.f32.mrf.mxu0
        %v2295 = vpop.f32.mrf.mxu0
        %v2296 = vadd.f32 %v2135, %v2295
        %v2297 = vpop.f32.mrf.mxu0
        %2298 = vmatprep.mubr.bf16.mxu0 0
        %2299 = vmatmul.mubr.bf16.gmra.mxu0 %v1792
        %v2300 = vpop.f32.mrf.mxu0
        %v2301 = vadd.f32 %v2140, %v2300
        %v2302 = vpop.f32.mrf.mxu0
        %v2303 = vpop.f32.mrf.mxu0
        %v2304 = vadd.f32 %v2143, %v2303
        %v2305 = vpop.f32.mrf.mxu0
        %2306 = vdwg.mxu0
        %v2371 = vunpack.c.l.b16 %v1360
        %v2372 = vunpack.c.h.b16 %v1360
        %v2373 = vunpack.c.l.b16 %v1361
        %v2374 = vunpack.c.l.b16 %v1362
        %v2375 = vunpack.c.h.b16 %v1362
        %v2376 = vunpack.c.l.b16 %v1363
        %v2377 = vunpack.c.l.b16 %v1364
        %v2378 = vunpack.c.h.b16 %v1364
        %v2379 = vunpack.c.l.b16 %v1365
        %v2380 = vunpack.c.l.b16 %v1366
        %v2381 = vunpack.c.h.b16 %v1366
        %v2382 = vunpack.c.l.b16 %v1367
        %v2383 = vunpack.c.l.b16 %v1368
        %v2384 = vunpack.c.h.b16 %v1368
        %v2385 = vunpack.c.l.b16 %v1369
        %v2386 = vunpack.c.l.b16 %v1370
        %v2387 = vunpack.c.h.b16 %v1370
        %v2388 = vunpack.c.l.b16 %v1371
        %v2389 = vunpack.c.l.b16 %v1372
        %v2390 = vunpack.c.h.b16 %v1372
        %v2391 = vunpack.c.l.b16 %v1373
        %v2392 = vunpack.c.l.b16 %v1374
        %v2393 = vunpack.c.h.b16 %v1374
        %v2394 = vunpack.c.l.b16 %v1375
        %v2395 = vunpack.c.l.b16 %v1376
        %v2396 = vunpack.c.h.b16 %v1376
        %v2397 = vunpack.c.l.b16 %v1377
        %v2398 = vunpack.c.l.b16 %v1378
        %v2399 = vunpack.c.h.b16 %v1378
        %v2400 = vunpack.c.l.b16 %v1379
        %v2401 = vunpack.c.l.b16 %v1380
        %v2402 = vunpack.c.h.b16 %v1380
        %v2403 = vunpack.c.l.b16 %v1381
        %v2404 = vunpack.c.l.b16 %v1382
        %v2405 = vunpack.c.h.b16 %v1382
        %v2406 = vunpack.c.l.b16 %v1383
        %v2407 = vunpack.c.l.b16 %v1384
        %v2408 = vunpack.c.h.b16 %v1384
        %v2409 = vunpack.c.l.b16 %v1385
        %v2410 = vunpack.c.l.b16 %v1386
        %v2411 = vunpack.c.h.b16 %v1386
        %v2412 = vunpack.c.l.b16 %v1387
        %v2413 = vunpack.c.l.b16 %v1388
        %v2414 = vunpack.c.h.b16 %v1388
        %v2415 = vunpack.c.l.b16 %v1389
        %v2416 = vunpack.c.l.b16 %v1390
        %v2417 = vunpack.c.h.b16 %v1390
        %v2418 = vunpack.c.l.b16 %v1391
        %v2419 = vunpack.c.l.b16 %v1392
        %v2420 = vunpack.c.h.b16 %v1392
        %v2421 = vunpack.c.l.b16 %v1393
        %v2422 = vunpack.c.l.b16 %v1394
        %v2423 = vunpack.c.h.b16 %v1394
        %v2424 = vunpack.c.l.b16 %v1395
        %v2425 = vunpack.c.l.b16 %v1396
        %v2426 = vunpack.c.h.b16 %v1396
        %v2427 = vunpack.c.l.b16 %v1397
        %v2428 = vunpack.c.l.b16 %v1398
        %v2429 = vunpack.c.h.b16 %v1398
        %v2430 = vunpack.c.l.b16 %v1399
        %v2431 = vunpack.c.l.b16 %v1400
        %v2432 = vunpack.c.h.b16 %v1400
        %v2433 = vunpack.c.l.b16 %v1401
        %v2434 = vunpack.c.l.b16 %v1402
        %v2435 = vunpack.c.h.b16 %v1402
        %v2436 = vunpack.c.l.b16 %v1403
        %v2437 = vunpack.c.l.b16 %v1404
        %v2438 = vunpack.c.h.b16 %v1404
        %v2439 = vunpack.c.l.b16 %v1405
        %v2440 = vunpack.c.l.b16 %v1406
        %v2441 = vunpack.c.h.b16 %v1406
        %v2442 = vunpack.c.l.b16 %v1407
        %v2443 = vunpack.c.l.b16 %v1408
        %v2444 = vunpack.c.h.b16 %v1408
        %v2445 = vunpack.c.l.b16 %v1409
        %v2446 = vunpack.c.l.b16 %v1410
        %v2447 = vunpack.c.h.b16 %v1410
        %v2448 = vunpack.c.l.b16 %v1411
        %v2449 = vunpack.c.l.b16 %v1412
        %v2450 = vunpack.c.h.b16 %v1412
        %v2451 = vunpack.c.l.b16 %v1413
        %v2452 = vunpack.c.l.b16 %v1414
        %v2453 = vunpack.c.h.b16 %v1414
        %v2454 = vunpack.c.l.b16 %v1415
        %v2455 = vunpack.c.l.b16 %v1416
        %v2456 = vunpack.c.h.b16 %v1416
        %v2457 = vunpack.c.l.b16 %v1417
        %v2458 = vunpack.c.l.b16 %v1418
        %v2459 = vunpack.c.h.b16 %v1418
        %v2460 = vunpack.c.l.b16 %v1419
        %v2461 = vunpack.c.l.b16 %v1420
        %v2462 = vunpack.c.h.b16 %v1420
        %v2463 = vunpack.c.l.b16 %v1421
        %v2464 = vunpack.c.l.b16 %v1422
        %v2465 = vunpack.c.h.b16 %v1422
        %v2466 = vunpack.c.l.b16 %v1423
        %v2467 = vpack.c.b16 %v2374, %v2371
        %v2468 = vpack.c.b16 %v2375, %v2372
        %v2469 = vpack.c.b16 %v2376, %v2373
        %v2470 = vpack.c.b16 %v2380, %v2377
        %v2471 = vpack.c.b16 %v2381, %v2378
        %v2472 = vpack.c.b16 %v2382, %v2379
        %v2473 = vpack.c.b16 %v2386, %v2383
        %v2474 = vpack.c.b16 %v2387, %v2384
        %v2475 = vpack.c.b16 %v2388, %v2385
        %v2476 = vpack.c.b16 %v2392, %v2389
        %v2477 = vpack.c.b16 %v2393, %v2390
        %v2478 = vpack.c.b16 %v2394, %v2391
        %v2479 = vpack.c.b16 %v2398, %v2395
        %v2480 = vpack.c.b16 %v2399, %v2396
        %v2481 = vpack.c.b16 %v2400, %v2397
        %v2482 = vpack.c.b16 %v2404, %v2401
        %v2483 = vpack.c.b16 %v2405, %v2402
        %v2484 = vpack.c.b16 %v2406, %v2403
        %v2485 = vpack.c.b16 %v2410, %v2407
        %v2486 = vpack.c.b16 %v2411, %v2408
        %v2487 = vpack.c.b16 %v2412, %v2409
        %v2488 = vpack.c.b16 %v2416, %v2413
        %v2489 = vpack.c.b16 %v2417, %v2414
        %v2490 = vpack.c.b16 %v2418, %v2415
        %v2491 = vpack.c.b16 %v2422, %v2419
        %v2492 = vpack.c.b16 %v2423, %v2420
        %v2493 = vpack.c.b16 %v2424, %v2421
        %v2494 = vpack.c.b16 %v2428, %v2425
        %v2495 = vpack.c.b16 %v2429, %v2426
        %v2496 = vpack.c.b16 %v2430, %v2427
        %v2497 = vpack.c.b16 %v2434, %v2431
        %v2498 = vpack.c.b16 %v2435, %v2432
        %v2499 = vpack.c.b16 %v2436, %v2433
        %v2500 = vpack.c.b16 %v2440, %v2437
        %v2501 = vpack.c.b16 %v2441, %v2438
        %v2502 = vpack.c.b16 %v2442, %v2439
        %v2503 = vpack.c.b16 %v2446, %v2443
        %v2504 = vpack.c.b16 %v2447, %v2444
        %v2505 = vpack.c.b16 %v2448, %v2445
        %v2506 = vpack.c.b16 %v2452, %v2449
        %v2507 = vpack.c.b16 %v2453, %v2450
        %v2508 = vpack.c.b16 %v2454, %v2451
        %v2509 = vpack.c.b16 %v2458, %v2455
        %v2510 = vpack.c.b16 %v2459, %v2456
        %v2511 = vpack.c.b16 %v2460, %v2457
        %v2512 = vpack.c.b16 %v2464, %v2461
        %v2513 = vpack.c.b16 %v2465, %v2462
        %v2514 = vpack.c.b16 %v2466, %v2463
        %v2611 = vunpack.c.l.b16 %v1424
        %v2612 = vunpack.c.l.b16 %v1425
        %v2613 = vunpack.c.l.b16 %v1426
        %v2614 = vunpack.c.l.b16 %v1427
        %v2615 = vunpack.c.l.b16 %v1428
        %v2616 = vunpack.c.l.b16 %v1429
        %v2617 = vunpack.c.l.b16 %v1430
        %v2618 = vunpack.c.l.b16 %v1431
        %v2619 = vunpack.c.l.b16 %v1432
        %v2620 = vunpack.c.l.b16 %v1433
        %v2621 = vunpack.c.l.b16 %v1434
        %v2622 = vunpack.c.l.b16 %v1435
        %v2623 = vunpack.c.l.b16 %v1436
        %v2624 = vunpack.c.l.b16 %v1437
        %v2625 = vunpack.c.l.b16 %v1438
        %v2626 = vunpack.c.l.b16 %v1439
        %v2627 = vunpack.c.l.b16 %v1440
        %v2628 = vunpack.c.l.b16 %v1441
        %v2629 = vunpack.c.l.b16 %v1442
        %v2630 = vunpack.c.l.b16 %v1443
        %v2631 = vunpack.c.l.b16 %v1444
        %v2632 = vunpack.c.l.b16 %v1445
        %v2633 = vunpack.c.l.b16 %v1446
        %v2634 = vunpack.c.l.b16 %v1447
        %v2635 = vunpack.c.l.b16 %v1448
        %v2636 = vunpack.c.l.b16 %v1449
        %v2637 = vunpack.c.l.b16 %v1450
        %v2638 = vunpack.c.l.b16 %v1451
        %v2639 = vunpack.c.l.b16 %v1452
        %v2640 = vunpack.c.l.b16 %v1453
        %v2641 = vunpack.c.l.b16 %v1454
        %v2642 = vunpack.c.l.b16 %v1455
        %v2643 = vunpack.c.l.b16 %v1456
        %v2644 = vunpack.c.l.b16 %v1457
        %v2645 = vunpack.c.l.b16 %v1458
        %v2646 = vunpack.c.l.b16 %v1459
        %v2647 = vunpack.c.l.b16 %v1460
        %v2648 = vunpack.c.l.b16 %v1461
        %v2649 = vunpack.c.l.b16 %v1462
        %v2650 = vunpack.c.l.b16 %v1463
        %v2651 = vunpack.c.l.b16 %v1464
        %v2652 = vunpack.c.l.b16 %v1465
        %v2653 = vunpack.c.l.b16 %v1466
        %v2654 = vunpack.c.l.b16 %v1467
        %v2655 = vunpack.c.l.b16 %v1468
        %v2656 = vunpack.c.l.b16 %v1469
        %v2657 = vunpack.c.l.b16 %v1470
        %v2658 = vunpack.c.l.b16 %v1471
        %v2659 = vpack.c.b16 %v2612, %v2611
        %v2660 = vpack.c.b16 %v2614, %v2613
        %v2661 = vpack.c.b16 %v2616, %v2615
        %v2662 = vpack.c.b16 %v2618, %v2617
        %v2663 = vpack.c.b16 %v2620, %v2619
        %v2664 = vpack.c.b16 %v2622, %v2621
        %v2665 = vpack.c.b16 %v2624, %v2623
        %v2666 = vpack.c.b16 %v2626, %v2625
        %v2667 = vpack.c.b16 %v2628, %v2627
        %v2668 = vpack.c.b16 %v2630, %v2629
        %v2669 = vpack.c.b16 %v2632, %v2631
        %v2670 = vpack.c.b16 %v2634, %v2633
        %v2671 = vpack.c.b16 %v2636, %v2635
        %v2672 = vpack.c.b16 %v2638, %v2637
        %v2673 = vpack.c.b16 %v2640, %v2639
        %v2674 = vpack.c.b16 %v2642, %v2641
        %v2675 = vpack.c.b16 %v2644, %v2643
        %v2676 = vpack.c.b16 %v2646, %v2645
        %v2677 = vpack.c.b16 %v2648, %v2647
        %v2678 = vpack.c.b16 %v2650, %v2649
        %v2679 = vpack.c.b16 %v2652, %v2651
        %v2680 = vpack.c.b16 %v2654, %v2653
        %v2681 = vpack.c.b16 %v2656, %v2655
        %v2682 = vpack.c.b16 %v2658, %v2657
        %2707 = vmatprep.subr.bf16.mxu0 0
        %2708 = vmatpush1.bf16.msra.mxu0 %v2666
        %2709 = vmatprep.subr.bf16.mxu0 0
        %2710 = vmatpush1.bf16.msra.mxu0 %v2665
        %2711 = vmatprep.subr.bf16.mxu0 0
        %2712 = vmatpush1.bf16.msra.mxu0 %v2664
        %2713 = vmatprep.subr.bf16.mxu0 0
        %2714 = vmatpush1.bf16.msra.mxu0 %v2663
        %2715 = vmatprep.subr.bf16.mxu0 0
        %2716 = vmatpush1.bf16.msra.mxu0 %v2662
        %2717 = vmatprep.subr.bf16.mxu0 0
        %2718 = vmatpush1.bf16.msra.mxu0 %v2661
        %2719 = vmatprep.subr.bf16.mxu0 0
        %2720 = vmatpush1.bf16.msra.mxu0 %v2660
        %2721 = vmatprep.subr.bf16.mxu0 0
        %2722 = vmatpush1.bf16.msra.mxu0 %v2659
        %2723 = vmatprep.subr.bf16.mxu0 0
        %2724 = vmatpush2.bf16.msra.mxu0 %v2674
        %2725 = vmatprep.subr.bf16.mxu0 0
        %2726 = vmatpush2.bf16.msra.mxu0 %v2673
        %2727 = vmatprep.subr.bf16.mxu0 0
        %2728 = vmatpush2.bf16.msra.mxu0 %v2672
        %2729 = vmatprep.subr.bf16.mxu0 0
        %2730 = vmatpush2.bf16.msra.mxu0 %v2671
        %2731 = vmatprep.subr.bf16.mxu0 0
        %2732 = vmatpush2.bf16.msra.mxu0 %v2670
        %2733 = vmatprep.subr.bf16.mxu0 0
        %2734 = vmatpush2.bf16.msra.mxu0 %v2669
        %2735 = vmatprep.subr.bf16.mxu0 0
        %2736 = vmatpush2.bf16.msra.mxu0 %v2668
        %2737 = vmatprep.subr.bf16.mxu0 0
        %2738 = vmatpush2.bf16.msra.mxu0 %v2667
        %2739 = vmatprep.mubr.bf16.mxu0 %v2468
        %2740 = vmatmul.mubr.bf16.gmra.mxu0 %v2467
        %v2741 = vpop.f32.mrf.mxu0
        %v2742 = vadd.f32 %v2181, %v2741
        %v2743 = vpop.f32.mrf.mxu0
        %v2744 = vpop.f32.mrf.mxu0
        %v2745 = vadd.f32 %v2184, %v2744
        %v2746 = vpop.f32.mrf.mxu0
        %2747 = vmatprep.mubr.bf16.mxu0 %v2471
        %2748 = vmatmul.mubr.bf16.gmra.mxu0 %v2470
        %v2749 = vpop.f32.mrf.mxu0
        %v2750 = vadd.f32 %v2189, %v2749
        %v2751 = vpop.f32.mrf.mxu0
        %v2752 = vpop.f32.mrf.mxu0
        %v2753 = vadd.f32 %v2192, %v2752
        %v2754 = vpop.f32.mrf.mxu0
        %2755 = vmatprep.mubr.bf16.mxu0 %v2474
        %2756 = vmatmul.mubr.bf16.gmra.mxu0 %v2473
        %v2757 = vpop.f32.mrf.mxu0
        %v2758 = vadd.f32 %v2197, %v2757
        %v2759 = vpop.f32.mrf.mxu0
        %v2760 = vpop.f32.mrf.mxu0
        %v2761 = vadd.f32 %v2200, %v2760
        %v2762 = vpop.f32.mrf.mxu0
        %2763 = vmatprep.mubr.bf16.mxu0 %v2477
        %2764 = vmatmul.mubr.bf16.gmra.mxu0 %v2476
        %v2765 = vpop.f32.mrf.mxu0
        %v2766 = vadd.f32 %v2205, %v2765
        %v2767 = vpop.f32.mrf.mxu0
        %v2768 = vpop.f32.mrf.mxu0
        %v2769 = vadd.f32 %v2208, %v2768
        %v2770 = vpop.f32.mrf.mxu0
        %2771 = vmatprep.mubr.bf16.mxu0 %v2480
        %2772 = vmatmul.mubr.bf16.gmra.mxu0 %v2479
        %v2773 = vpop.f32.mrf.mxu0
        %v2774 = vadd.f32 %v2213, %v2773
        %v2775 = vpop.f32.mrf.mxu0
        %v2776 = vpop.f32.mrf.mxu0
        %v2777 = vadd.f32 %v2216, %v2776
        %v2778 = vpop.f32.mrf.mxu0
        %2779 = vmatprep.mubr.bf16.mxu0 %v2483
        %2780 = vmatmul.mubr.bf16.gmra.mxu0 %v2482
        %v2781 = vpop.f32.mrf.mxu0
        %v2782 = vadd.f32 %v2221, %v2781
        %v2783 = vpop.f32.mrf.mxu0
        %v2784 = vpop.f32.mrf.mxu0
        %v2785 = vadd.f32 %v2224, %v2784
        %v2786 = vpop.f32.mrf.mxu0
        %2787 = vmatprep.mubr.bf16.mxu0 %v2486
        %2788 = vmatmul.mubr.bf16.gmra.mxu0 %v2485
        %v2789 = vpop.f32.mrf.mxu0
        %v2790 = vadd.f32 %v2229, %v2789
        %v2791 = vpop.f32.mrf.mxu0
        %v2792 = vpop.f32.mrf.mxu0
        %v2793 = vadd.f32 %v2232, %v2792
        %v2794 = vpop.f32.mrf.mxu0
        %2795 = vmatprep.mubr.bf16.mxu0 %v2489
        %2796 = vmatmul.mubr.bf16.gmra.mxu0 %v2488
        %v2797 = vpop.f32.mrf.mxu0
        %v2798 = vadd.f32 %v2237, %v2797
        %v2799 = vpop.f32.mrf.mxu0
        %v2800 = vpop.f32.mrf.mxu0
        %v2801 = vadd.f32 %v2240, %v2800
        %v2802 = vpop.f32.mrf.mxu0
        %2803 = vmatprep.mubr.bf16.mxu0 %v2492
        %2804 = vmatmul.mubr.bf16.gmra.mxu0 %v2491
        %v2805 = vpop.f32.mrf.mxu0
        %v2806 = vadd.f32 %v2245, %v2805
        %v2807 = vpop.f32.mrf.mxu0
        %v2808 = vpop.f32.mrf.mxu0
        %v2809 = vadd.f32 %v2248, %v2808
        %v2810 = vpop.f32.mrf.mxu0
        %2811 = vmatprep.mubr.bf16.mxu0 %v2495
        %2812 = vmatmul.mubr.bf16.gmra.mxu0 %v2494
        %v2813 = vpop.f32.mrf.mxu0
        %v2814 = vadd.f32 %v2253, %v2813
        %v2815 = vpop.f32.mrf.mxu0
        %v2816 = vpop.f32.mrf.mxu0
        %v2817 = vadd.f32 %v2256, %v2816
        %v2818 = vpop.f32.mrf.mxu0
        %2819 = vmatprep.mubr.bf16.mxu0 %v2498
        %2820 = vmatmul.mubr.bf16.gmra.mxu0 %v2497
        %v2821 = vpop.f32.mrf.mxu0
        %v2822 = vadd.f32 %v2261, %v2821
        %v2823 = vpop.f32.mrf.mxu0
        %v2824 = vpop.f32.mrf.mxu0
        %v2825 = vadd.f32 %v2264, %v2824
        %v2826 = vpop.f32.mrf.mxu0
        %2827 = vmatprep.mubr.bf16.mxu0 %v2501
        %2828 = vmatmul.mubr.bf16.gmra.mxu0 %v2500
        %v2829 = vpop.f32.mrf.mxu0
        %v2830 = vadd.f32 %v2269, %v2829
        %v2831 = vpop.f32.mrf.mxu0
        %v2832 = vpop.f32.mrf.mxu0
        %v2833 = vadd.f32 %v2272, %v2832
        %v2834 = vpop.f32.mrf.mxu0
        %2835 = vmatprep.mubr.bf16.mxu0 %v2504
        %2836 = vmatmul.mubr.bf16.gmra.mxu0 %v2503
        %v2837 = vpop.f32.mrf.mxu0
        %v2838 = vadd.f32 %v2277, %v2837
        %v2839 = vpop.f32.mrf.mxu0
        %v2840 = vpop.f32.mrf.mxu0
        %v2841 = vadd.f32 %v2280, %v2840
        %v2842 = vpop.f32.mrf.mxu0
        %2843 = vmatprep.mubr.bf16.mxu0 %v2507
        %2844 = vmatmul.mubr.bf16.gmra.mxu0 %v2506
        %v2845 = vpop.f32.mrf.mxu0
        %v2846 = vadd.f32 %v2285, %v2845
        %v2847 = vpop.f32.mrf.mxu0
        %v2848 = vpop.f32.mrf.mxu0
        %v2849 = vadd.f32 %v2288, %v2848
        %v2850 = vpop.f32.mrf.mxu0
        %2851 = vmatprep.mubr.bf16.mxu0 %v2510
        %2852 = vmatmul.mubr.bf16.gmra.mxu0 %v2509
        %v2853 = vpop.f32.mrf.mxu0
        %v2854 = vadd.f32 %v2293, %v2853
        %v2855 = vpop.f32.mrf.mxu0
        %v2856 = vpop.f32.mrf.mxu0
        %v2857 = vadd.f32 %v2296, %v2856
        %v2858 = vpop.f32.mrf.mxu0
        %2859 = vmatprep.mubr.bf16.mxu0 %v2513
        %2860 = vmatmul.mubr.bf16.gmra.mxu0 %v2512
        %v2861 = vpop.f32.mrf.mxu0
        %v2862 = vadd.f32 %v2301, %v2861
        %v2863 = vpop.f32.mrf.mxu0
        %v2864 = vpop.f32.mrf.mxu0
        %v2865 = vadd.f32 %v2304, %v2864
        %v2866 = vpop.f32.mrf.mxu0
        %2867 = vdwg.mxu0
        %2868 = vmatprep.subr.bf16.mxu0 0
        %2869 = vmatpush1.bf16.msra.mxu0 %v2682
        %2870 = vmatprep.subr.bf16.mxu0 0
        %2871 = vmatpush1.bf16.msra.mxu0 %v2681
        %2872 = vmatprep.subr.bf16.mxu0 0
        %2873 = vmatpush1.bf16.msra.mxu0 %v2680
        %2874 = vmatprep.subr.bf16.mxu0 0
        %2875 = vmatpush1.bf16.msra.mxu0 %v2679
        %2876 = vmatprep.subr.bf16.mxu0 0
        %2877 = vmatpush1.bf16.msra.mxu0 %v2678
        %2878 = vmatprep.subr.bf16.mxu0 0
        %2879 = vmatpush1.bf16.msra.mxu0 %v2677
        %2880 = vmatprep.subr.bf16.mxu0 0
        %2881 = vmatpush1.bf16.msra.mxu0 %v2676
        %2882 = vmatprep.subr.bf16.mxu0 0
        %2883 = vmatpush1.bf16.msra.mxu0 %v2675
        %2884 = vmatprep.subr.bf16.mxu0 0
        %2885 = vmatpush2.bf16.msra.mxu0 0
        %2886 = vmatprep.subr.bf16.mxu0 0
        %2887 = vmatpush2.bf16.msra.mxu0 0
        %2888 = vmatprep.subr.bf16.mxu0 0
        %2889 = vmatpush2.bf16.msra.mxu0 0
        %2890 = vmatprep.subr.bf16.mxu0 0
        %2891 = vmatpush2.bf16.msra.mxu0 0
        %2892 = vmatprep.subr.bf16.mxu0 0
        %2893 = vmatpush2.bf16.msra.mxu0 0
        %2894 = vmatprep.subr.bf16.mxu0 0
        %2895 = vmatpush2.bf16.msra.mxu0 0
        %2896 = vmatprep.subr.bf16.mxu0 0
        %2897 = vmatpush2.bf16.msra.mxu0 0
        %2898 = vmatprep.subr.bf16.mxu0 0
        %2899 = vmatpush2.bf16.msra.mxu0 0
        %2900 = vmatprep.mubr.bf16.mxu0 0
        %2901 = vmatmul.mubr.bf16.gmra.mxu0 %v2469
        %v2902 = vpop.f32.mrf.mxu0
        %v2903 = vadd.f32 %v2742, %v2902
        %v2904 = vpop.f32.mrf.mxu0
        %v2905 = vpop.f32.mrf.mxu0
        %v2906 = vadd.f32 %v2745, %v2905
        %v2907 = vpop.f32.mrf.mxu0
        %2908 = vmatprep.mubr.bf16.mxu0 0
        %2909 = vmatmul.mubr.bf16.gmra.mxu0 %v2472
        %v2910 = vpop.f32.mrf.mxu0
        %v2911 = vadd.f32 %v2750, %v2910
        %v2912 = vpop.f32.mrf.mxu0
        %v2913 = vpop.f32.mrf.mxu0
        %v2914 = vadd.f32 %v2753, %v2913
        %v2915 = vpop.f32.mrf.mxu0
        %2916 = vmatprep.mubr.bf16.mxu0 0
        %2917 = vmatmul.mubr.bf16.gmra.mxu0 %v2475
        %v2918 = vpop.f32.mrf.mxu0
        %v2919 = vadd.f32 %v2758, %v2918
        %v2920 = vpop.f32.mrf.mxu0
        %v2921 = vpop.f32.mrf.mxu0
        %v2922 = vadd.f32 %v2761, %v2921
        %v2923 = vpop.f32.mrf.mxu0
        %2924 = vmatprep.mubr.bf16.mxu0 0
        %2925 = vmatmul.mubr.bf16.gmra.mxu0 %v2478
        %v2926 = vpop.f32.mrf.mxu0
        %v2927 = vadd.f32 %v2766, %v2926
        %v2928 = vpop.f32.mrf.mxu0
        %v2929 = vpop.f32.mrf.mxu0
        %v2930 = vadd.f32 %v2769, %v2929
        %v2931 = vpop.f32.mrf.mxu0
        %2932 = vmatprep.mubr.bf16.mxu0 0
        %2933 = vmatmul.mubr.bf16.gmra.mxu0 %v2481
        %v2934 = vpop.f32.mrf.mxu0
        %v2935 = vadd.f32 %v2774, %v2934
        %v2936 = vpop.f32.mrf.mxu0
        %v2937 = vpop.f32.mrf.mxu0
        %v2938 = vadd.f32 %v2777, %v2937
        %v2939 = vpop.f32.mrf.mxu0
        %2940 = vmatprep.mubr.bf16.mxu0 0
        %2941 = vmatmul.mubr.bf16.gmra.mxu0 %v2484
        %v2942 = vpop.f32.mrf.mxu0
        %v2943 = vadd.f32 %v2782, %v2942
        %v2944 = vpop.f32.mrf.mxu0
        %v2945 = vpop.f32.mrf.mxu0
        %v2946 = vadd.f32 %v2785, %v2945
        %v2947 = vpop.f32.mrf.mxu0
        %2948 = vmatprep.mubr.bf16.mxu0 0
        %2949 = vmatmul.mubr.bf16.gmra.mxu0 %v2487
        %v2950 = vpop.f32.mrf.mxu0
        %v2951 = vadd.f32 %v2790, %v2950
        %v2952 = vpop.f32.mrf.mxu0
        %v2953 = vpop.f32.mrf.mxu0
        %v2954 = vadd.f32 %v2793, %v2953
        %v2955 = vpop.f32.mrf.mxu0
        %2956 = vmatprep.mubr.bf16.mxu0 0
        %2957 = vmatmul.mubr.bf16.gmra.mxu0 %v2490
        %v2958 = vpop.f32.mrf.mxu0
        %v2959 = vadd.f32 %v2798, %v2958
        %v2960 = vpop.f32.mrf.mxu0
        %v2961 = vpop.f32.mrf.mxu0
        %v2962 = vadd.f32 %v2801, %v2961
        %v2963 = vpop.f32.mrf.mxu0
        %2964 = vmatprep.mubr.bf16.mxu0 0
        %2965 = vmatmul.mubr.bf16.gmra.mxu0 %v2493
        %v2966 = vpop.f32.mrf.mxu0
        %v2967 = vadd.f32 %v2806, %v2966
        %v2968 = vpop.f32.mrf.mxu0
        %v2969 = vpop.f32.mrf.mxu0
        %v2970 = vadd.f32 %v2809, %v2969
        %v2971 = vpop.f32.mrf.mxu0
        %2972 = vmatprep.mubr.bf16.mxu0 0
        %2973 = vmatmul.mubr.bf16.gmra.mxu0 %v2496
        %v2974 = vpop.f32.mrf.mxu0
        %v2975 = vadd.f32 %v2814, %v2974
        %v2976 = vpop.f32.mrf.mxu0
        %v2977 = vpop.f32.mrf.mxu0
        %v2978 = vadd.f32 %v2817, %v2977
        %v2979 = vpop.f32.mrf.mxu0
        %2980 = vmatprep.mubr.bf16.mxu0 0
        %2981 = vmatmul.mubr.bf16.gmra.mxu0 %v2499
        %v2982 = vpop.f32.mrf.mxu0
        %v2983 = vadd.f32 %v2822, %v2982
        %v2984 = vpop.f32.mrf.mxu0
        %v2985 = vpop.f32.mrf.mxu0
        %v2986 = vadd.f32 %v2825, %v2985
        %v2987 = vpop.f32.mrf.mxu0
        %2988 = vmatprep.mubr.bf16.mxu0 0
        %2989 = vmatmul.mubr.bf16.gmra.mxu0 %v2502
        %v2990 = vpop.f32.mrf.mxu0
        %v2991 = vadd.f32 %v2830, %v2990
        %v2992 = vpop.f32.mrf.mxu0
        %v2993 = vpop.f32.mrf.mxu0
        %v2994 = vadd.f32 %v2833, %v2993
        %v2995 = vpop.f32.mrf.mxu0
        %2996 = vmatprep.mubr.bf16.mxu0 0
        %2997 = vmatmul.mubr.bf16.gmra.mxu0 %v2505
        %v2998 = vpop.f32.mrf.mxu0
        %v2999 = vadd.f32 %v2838, %v2998
        %v3000 = vpop.f32.mrf.mxu0
        %v3001 = vpop.f32.mrf.mxu0
        %v3002 = vadd.f32 %v2841, %v3001
        %v3003 = vpop.f32.mrf.mxu0
        %3004 = vmatprep.mubr.bf16.mxu0 0
        %3005 = vmatmul.mubr.bf16.gmra.mxu0 %v2508
        %v3006 = vpop.f32.mrf.mxu0
        %v3007 = vadd.f32 %v2846, %v3006
        %v3008 = vpop.f32.mrf.mxu0
        %v3009 = vpop.f32.mrf.mxu0
        %v3010 = vadd.f32 %v2849, %v3009
        %v3011 = vpop.f32.mrf.mxu0
        %3012 = vmatprep.mubr.bf16.mxu0 0
        %3013 = vmatmul.mubr.bf16.gmra.mxu0 %v2511
        %v3014 = vpop.f32.mrf.mxu0
        %v3015 = vadd.f32 %v2854, %v3014
        %v3016 = vpop.f32.mrf.mxu0
        %v3017 = vpop.f32.mrf.mxu0
        %v3018 = vadd.f32 %v2857, %v3017
        %v3019 = vpop.f32.mrf.mxu0
        %3020 = vmatprep.mubr.bf16.mxu0 0
        %3021 = vmatmul.mubr.bf16.gmra.mxu0 %v2514
        %v3022 = vpop.f32.mrf.mxu0
        %v3023 = vadd.f32 %v2862, %v3022
        %v3024 = vpop.f32.mrf.mxu0
        %v3025 = vpop.f32.mrf.mxu0
        %v3026 = vadd.f32 %v2865, %v3025
        %v3027 = vpop.f32.mrf.mxu0
        %3028 = vdwg.mxu0
        %s3029 = scalar_lea.vmem [#allocation2], 48
        %v3030 = vld [vmem:[%s3029] sm:$0xff]
        %v3031 = vld [vmem:[%s3029 + $0x8] sm:$0xf]
        %v3032 = vld [vmem:[%s3029 + $0xc] sm:$0xff]
        %v3033 = vld [vmem:[%s3029 + $0x14] sm:$0xf]
        %v3034 = vld [vmem:[%s3029 + $0x18] sm:$0xff]
        %v3035 = vld [vmem:[%s3029 + $0x20] sm:$0xf]
        %v3036 = vld [vmem:[%s3029 + $0x24] sm:$0xff]
        %v3037 = vld [vmem:[%s3029 + $0x2c] sm:$0xf]
        %v3038 = vld [vmem:[%s3029 + $0x30] sm:$0xff]
        %v3039 = vld [vmem:[%s3029 + $0x38] sm:$0xf]
        %v3040 = vld [vmem:[%s3029 + $0x3c] sm:$0xff]
        %v3041 = vld [vmem:[%s3029 + $0x44] sm:$0xf]
        %v3042 = vld [vmem:[%s3029 + $0x48] sm:$0xff]
        %v3043 = vld [vmem:[%s3029 + $0x50] sm:$0xf]
        %v3044 = vld [vmem:[%s3029 + $0x54] sm:$0xff]
        %v3045 = vld [vmem:[%s3029 + $0x5c] sm:$0xf]
        %v3046 = vld [vmem:[%s3029 + $0x60] sm:$0xff]
        %v3047 = vld [vmem:[%s3029 + $0x68] sm:$0xf]
        %v3048 = vld [vmem:[%s3029 + $0x6c] sm:$0xff]
        %v3049 = vld [vmem:[%s3029 + $0x74] sm:$0xf]
        %v3050 = vld [vmem:[%s3029 + $0x78] sm:$0xff]
        %v3051 = vld [vmem:[%s3029 + $0x80] sm:$0xf]
        %v3052 = vld [vmem:[%s3029 + $0x84] sm:$0xff]
        %v3053 = vld [vmem:[%s3029 + $0x8c] sm:$0xf]
        %v3054 = vld [vmem:[%s3029 + $0x90] sm:$0xff]
        %v3055 = vld [vmem:[%s3029 + $0x98] sm:$0xf]
        %v3056 = vld [vmem:[%s3029 + $0x9c] sm:$0xff]
        %v3057 = vld [vmem:[%s3029 + $0xa4] sm:$0xf]
        %v3058 = vld [vmem:[%s3029 + $0xa8] sm:$0xff]
        %v3059 = vld [vmem:[%s3029 + $0xb0] sm:$0xf]
        %v3060 = vld [vmem:[%s3029 + $0xb4] sm:$0xff]
        %v3061 = vld [vmem:[%s3029 + $0xbc] sm:$0xf]
        %v3062 = vld [vmem:[%s3029 + $0xc0] sm:$0xff]
        %v3063 = vld [vmem:[%s3029 + $0xc8] sm:$0xf]
        %v3064 = vld [vmem:[%s3029 + $0xcc] sm:$0xff]
        %v3065 = vld [vmem:[%s3029 + $0xd4] sm:$0xf]
        %v3066 = vld [vmem:[%s3029 + $0xd8] sm:$0xff]
        %v3067 = vld [vmem:[%s3029 + $0xe0] sm:$0xf]
        %v3068 = vld [vmem:[%s3029 + $0xe4] sm:$0xff]
        %v3069 = vld [vmem:[%s3029 + $0xec] sm:$0xf]
        %v3070 = vld [vmem:[%s3029 + $0xf0] sm:$0xff]
        %v3071 = vld [vmem:[%s3029 + $0xf8] sm:$0xf]
        %v3072 = vld [vmem:[%s3029 + $0xfc] sm:$0xff]
        %v3073 = vld [vmem:[%s3029 + $0x104] sm:$0xf]
        %v3074 = vld [vmem:[%s3029 + $0x108] sm:$0xff]
        %v3075 = vld [vmem:[%s3029 + $0x110] sm:$0xf]
        %v3076 = vld [vmem:[%s3029 + $0x114] sm:$0xff]
        %v3077 = vld [vmem:[%s3029 + $0x11c] sm:$0xf]
        %v3078 = vld [vmem:[%s3029 + $0x120] sm:$0xff]
        %v3079 = vld [vmem:[%s3029 + $0x128] sm:$0xf]
        %v3080 = vld [vmem:[%s3029 + $0x12c] sm:$0xff]
        %v3081 = vld [vmem:[%s3029 + $0x134] sm:$0xf]
        %v3082 = vld [vmem:[%s3029 + $0x138] sm:$0xff]
        %v3083 = vld [vmem:[%s3029 + $0x140] sm:$0xf]
        %v3084 = vld [vmem:[%s3029 + $0x144] sm:$0xff]
        %v3085 = vld [vmem:[%s3029 + $0x14c] sm:$0xf]
        %v3086 = vld [vmem:[%s3029 + $0x150] sm:$0xff]
        %v3087 = vld [vmem:[%s3029 + $0x158] sm:$0xf]
        %v3088 = vld [vmem:[%s3029 + $0x15c] sm:$0xff]
        %v3089 = vld [vmem:[%s3029 + $0x164] sm:$0xf]
        %v3090 = vld [vmem:[%s3029 + $0x168] sm:$0xff]
        %v3091 = vld [vmem:[%s3029 + $0x170] sm:$0xf]
        %v3092 = vld [vmem:[%s3029 + $0x174] sm:$0xff]
        %v3093 = vld [vmem:[%s3029 + $0x17c] sm:$0xf]
        %s3094 = scalar_lea.vmem %s3, 384
        %v3095 = vld [vmem:[%s3094] sm:$0xf]
        %v3096 = vld [vmem:[%s3094 + $0x4] sm:$0xf]
        %v3097 = vld [vmem:[%s3094 + $0x8] sm:$0xf]
        %v3098 = vld [vmem:[%s3094 + $0xc] sm:$0xf]
        %v3099 = vld [vmem:[%s3094 + $0x10] sm:$0xf]
        %v3100 = vld [vmem:[%s3094 + $0x14] sm:$0xf]
        %v3101 = vld [vmem:[%s3094 + $0x18] sm:$0xf]
        %v3102 = vld [vmem:[%s3094 + $0x1c] sm:$0xf]
        %v3103 = vld [vmem:[%s3094 + $0x20] sm:$0xf]
        %v3104 = vld [vmem:[%s3094 + $0x24] sm:$0xf]
        %v3105 = vld [vmem:[%s3094 + $0x28] sm:$0xf]
        %v3106 = vld [vmem:[%s3094 + $0x2c] sm:$0xf]
        %v3107 = vld [vmem:[%s3094 + $0x30] sm:$0xf]
        %v3108 = vld [vmem:[%s3094 + $0x34] sm:$0xf]
        %v3109 = vld [vmem:[%s3094 + $0x38] sm:$0xf]
        %v3110 = vld [vmem:[%s3094 + $0x3c] sm:$0xf]
        %v3111 = vld [vmem:[%s3094 + $0x40] sm:$0xf]
        %v3112 = vld [vmem:[%s3094 + $0x44] sm:$0xf]
        %v3113 = vld [vmem:[%s3094 + $0x48] sm:$0xf]
        %v3114 = vld [vmem:[%s3094 + $0x4c] sm:$0xf]
        %v3115 = vld [vmem:[%s3094 + $0x50] sm:$0xf]
        %v3116 = vld [vmem:[%s3094 + $0x54] sm:$0xf]
        %v3117 = vld [vmem:[%s3094 + $0x58] sm:$0xf]
        %v3118 = vld [vmem:[%s3094 + $0x5c] sm:$0xf]
        %v3119 = vld [vmem:[%s3094 + $0x60] sm:$0xf]
        %v3120 = vld [vmem:[%s3094 + $0x64] sm:$0xf]
        %v3121 = vld [vmem:[%s3094 + $0x68] sm:$0xf]
        %v3122 = vld [vmem:[%s3094 + $0x6c] sm:$0xf]
        %v3123 = vld [vmem:[%s3094 + $0x70] sm:$0xf]
        %v3124 = vld [vmem:[%s3094 + $0x74] sm:$0xf]
        %v3125 = vld [vmem:[%s3094 + $0x78] sm:$0xf]
        %v3126 = vld [vmem:[%s3094 + $0x7c] sm:$0xf]
        %v3127 = vld [vmem:[%s3094 + $0x80] sm:$0xf]
        %v3128 = vld [vmem:[%s3094 + $0x84] sm:$0xf]
        %v3129 = vld [vmem:[%s3094 + $0x88] sm:$0xf]
        %v3130 = vld [vmem:[%s3094 + $0x8c] sm:$0xf]
        %v3131 = vld [vmem:[%s3094 + $0x90] sm:$0xf]
        %v3132 = vld [vmem:[%s3094 + $0x94] sm:$0xf]
        %v3133 = vld [vmem:[%s3094 + $0x98] sm:$0xf]
        %v3134 = vld [vmem:[%s3094 + $0x9c] sm:$0xf]
        %v3135 = vld [vmem:[%s3094 + $0xa0] sm:$0xf]
        %v3136 = vld [vmem:[%s3094 + $0xa4] sm:$0xf]
        %v3137 = vld [vmem:[%s3094 + $0xa8] sm:$0xf]
        %v3138 = vld [vmem:[%s3094 + $0xac] sm:$0xf]
        %v3139 = vld [vmem:[%s3094 + $0xb0] sm:$0xf]
        %v3140 = vld [vmem:[%s3094 + $0xb4] sm:$0xf]
        %v3141 = vld [vmem:[%s3094 + $0xb8] sm:$0xf]
        %v3142 = vld [vmem:[%s3094 + $0xbc] sm:$0xf]
        %v3207 = vunpack.c.l.b16 %v3030
        %v3208 = vunpack.c.h.b16 %v3030
        %v3209 = vunpack.c.l.b16 %v3031
        %v3210 = vunpack.c.l.b16 %v3032
        %v3211 = vunpack.c.h.b16 %v3032
        %v3212 = vunpack.c.l.b16 %v3033
        %v3213 = vunpack.c.l.b16 %v3034
        %v3214 = vunpack.c.h.b16 %v3034
        %v3215 = vunpack.c.l.b16 %v3035
        %v3216 = vunpack.c.l.b16 %v3036
        %v3217 = vunpack.c.h.b16 %v3036
        %v3218 = vunpack.c.l.b16 %v3037
        %v3219 = vunpack.c.l.b16 %v3038
        %v3220 = vunpack.c.h.b16 %v3038
        %v3221 = vunpack.c.l.b16 %v3039
        %v3222 = vunpack.c.l.b16 %v3040
        %v3223 = vunpack.c.h.b16 %v3040
        %v3224 = vunpack.c.l.b16 %v3041
        %v3225 = vunpack.c.l.b16 %v3042
        %v3226 = vunpack.c.h.b16 %v3042
        %v3227 = vunpack.c.l.b16 %v3043
        %v3228 = vunpack.c.l.b16 %v3044
        %v3229 = vunpack.c.h.b16 %v3044
        %v3230 = vunpack.c.l.b16 %v3045
        %v3231 = vunpack.c.l.b16 %v3046
        %v3232 = vunpack.c.h.b16 %v3046
        %v3233 = vunpack.c.l.b16 %v3047
        %v3234 = vunpack.c.l.b16 %v3048
        %v3235 = vunpack.c.h.b16 %v3048
        %v3236 = vunpack.c.l.b16 %v3049
        %v3237 = vunpack.c.l.b16 %v3050
        %v3238 = vunpack.c.h.b16 %v3050
        %v3239 = vunpack.c.l.b16 %v3051
        %v3240 = vunpack.c.l.b16 %v3052
        %v3241 = vunpack.c.h.b16 %v3052
        %v3242 = vunpack.c.l.b16 %v3053
        %v3243 = vunpack.c.l.b16 %v3054
        %v3244 = vunpack.c.h.b16 %v3054
        %v3245 = vunpack.c.l.b16 %v3055
        %v3246 = vunpack.c.l.b16 %v3056
        %v3247 = vunpack.c.h.b16 %v3056
        %v3248 = vunpack.c.l.b16 %v3057
        %v3249 = vunpack.c.l.b16 %v3058
        %v3250 = vunpack.c.h.b16 %v3058
        %v3251 = vunpack.c.l.b16 %v3059
        %v3252 = vunpack.c.l.b16 %v3060
        %v3253 = vunpack.c.h.b16 %v3060
        %v3254 = vunpack.c.l.b16 %v3061
        %v3255 = vunpack.c.l.b16 %v3062
        %v3256 = vunpack.c.h.b16 %v3062
        %v3257 = vunpack.c.l.b16 %v3063
        %v3258 = vunpack.c.l.b16 %v3064
        %v3259 = vunpack.c.h.b16 %v3064
        %v3260 = vunpack.c.l.b16 %v3065
        %v3261 = vunpack.c.l.b16 %v3066
        %v3262 = vunpack.c.h.b16 %v3066
        %v3263 = vunpack.c.l.b16 %v3067
        %v3264 = vunpack.c.l.b16 %v3068
        %v3265 = vunpack.c.h.b16 %v3068
        %v3266 = vunpack.c.l.b16 %v3069
        %v3267 = vunpack.c.l.b16 %v3070
        %v3268 = vunpack.c.h.b16 %v3070
        %v3269 = vunpack.c.l.b16 %v3071
        %v3270 = vunpack.c.l.b16 %v3072
        %v3271 = vunpack.c.h.b16 %v3072
        %v3272 = vunpack.c.l.b16 %v3073
        %v3273 = vunpack.c.l.b16 %v3074
        %v3274 = vunpack.c.h.b16 %v3074
        %v3275 = vunpack.c.l.b16 %v3075
        %v3276 = vunpack.c.l.b16 %v3076
        %v3277 = vunpack.c.h.b16 %v3076
        %v3278 = vunpack.c.l.b16 %v3077
        %v3279 = vunpack.c.l.b16 %v3078
        %v3280 = vunpack.c.h.b16 %v3078
        %v3281 = vunpack.c.l.b16 %v3079
        %v3282 = vunpack.c.l.b16 %v3080
        %v3283 = vunpack.c.h.b16 %v3080
        %v3284 = vunpack.c.l.b16 %v3081
        %v3285 = vunpack.c.l.b16 %v3082
        %v3286 = vunpack.c.h.b16 %v3082
        %v3287 = vunpack.c.l.b16 %v3083
        %v3288 = vunpack.c.l.b16 %v3084
        %v3289 = vunpack.c.h.b16 %v3084
        %v3290 = vunpack.c.l.b16 %v3085
        %v3291 = vunpack.c.l.b16 %v3086
        %v3292 = vunpack.c.h.b16 %v3086
        %v3293 = vunpack.c.l.b16 %v3087
        %v3294 = vunpack.c.l.b16 %v3088
        %v3295 = vunpack.c.h.b16 %v3088
        %v3296 = vunpack.c.l.b16 %v3089
        %v3297 = vunpack.c.l.b16 %v3090
        %v3298 = vunpack.c.h.b16 %v3090
        %v3299 = vunpack.c.l.b16 %v3091
        %v3300 = vunpack.c.l.b16 %v3092
        %v3301 = vunpack.c.h.b16 %v3092
        %v3302 = vunpack.c.l.b16 %v3093
        %v3303 = vpack.c.b16 %v3210, %v3207
        %v3304 = vpack.c.b16 %v3211, %v3208
        %v3305 = vpack.c.b16 %v3212, %v3209
        %v3306 = vpack.c.b16 %v3216, %v3213
        %v3307 = vpack.c.b16 %v3217, %v3214
        %v3308 = vpack.c.b16 %v3218, %v3215
        %v3309 = vpack.c.b16 %v3222, %v3219
        %v3310 = vpack.c.b16 %v3223, %v3220
        %v3311 = vpack.c.b16 %v3224, %v3221
        %v3312 = vpack.c.b16 %v3228, %v3225
        %v3313 = vpack.c.b16 %v3229, %v3226
        %v3314 = vpack.c.b16 %v3230, %v3227
        %v3315 = vpack.c.b16 %v3234, %v3231
        %v3316 = vpack.c.b16 %v3235, %v3232
        %v3317 = vpack.c.b16 %v3236, %v3233
        %v3318 = vpack.c.b16 %v3240, %v3237
        %v3319 = vpack.c.b16 %v3241, %v3238
        %v3320 = vpack.c.b16 %v3242, %v3239
        %v3321 = vpack.c.b16 %v3246, %v3243
        %v3322 = vpack.c.b16 %v3247, %v3244
        %v3323 = vpack.c.b16 %v3248, %v3245
        %v3324 = vpack.c.b16 %v3252, %v3249
        %v3325 = vpack.c.b16 %v3253, %v3250
        %v3326 = vpack.c.b16 %v3254, %v3251
        %v3327 = vpack.c.b16 %v3258, %v3255
        %v3328 = vpack.c.b16 %v3259, %v3256
        %v3329 = vpack.c.b16 %v3260, %v3257
        %v3330 = vpack.c.b16 %v3264, %v3261
        %v3331 = vpack.c.b16 %v3265, %v3262
        %v3332 = vpack.c.b16 %v3266, %v3263
        %v3333 = vpack.c.b16 %v3270, %v3267
        %v3334 = vpack.c.b16 %v3271, %v3268
        %v3335 = vpack.c.b16 %v3272, %v3269
        %v3336 = vpack.c.b16 %v3276, %v3273
        %v3337 = vpack.c.b16 %v3277, %v3274
        %v3338 = vpack.c.b16 %v3278, %v3275
        %v3339 = vpack.c.b16 %v3282, %v3279
        %v3340 = vpack.c.b16 %v3283, %v3280
        %v3341 = vpack.c.b16 %v3284, %v3281
        %v3342 = vpack.c.b16 %v3288, %v3285
        %v3343 = vpack.c.b16 %v3289, %v3286
        %v3344 = vpack.c.b16 %v3290, %v3287
        %v3345 = vpack.c.b16 %v3294, %v3291
        %v3346 = vpack.c.b16 %v3295, %v3292
        %v3347 = vpack.c.b16 %v3296, %v3293
        %v3348 = vpack.c.b16 %v3300, %v3297
        %v3349 = vpack.c.b16 %v3301, %v3298
        %v3350 = vpack.c.b16 %v3302, %v3299
        %v3447 = vunpack.c.l.b16 %v3095
        %v3448 = vunpack.c.l.b16 %v3096
        %v3449 = vunpack.c.l.b16 %v3097
        %v3450 = vunpack.c.l.b16 %v3098
        %v3451 = vunpack.c.l.b16 %v3099
        %v3452 = vunpack.c.l.b16 %v3100
        %v3453 = vunpack.c.l.b16 %v3101
        %v3454 = vunpack.c.l.b16 %v3102
        %v3455 = vunpack.c.l.b16 %v3103
        %v3456 = vunpack.c.l.b16 %v3104
        %v3457 = vunpack.c.l.b16 %v3105
        %v3458 = vunpack.c.l.b16 %v3106
        %v3459 = vunpack.c.l.b16 %v3107
        %v3460 = vunpack.c.l.b16 %v3108
        %v3461 = vunpack.c.l.b16 %v3109
        %v3462 = vunpack.c.l.b16 %v3110
        %v3463 = vunpack.c.l.b16 %v3111
        %v3464 = vunpack.c.l.b16 %v3112
        %v3465 = vunpack.c.l.b16 %v3113
        %v3466 = vunpack.c.l.b16 %v3114
        %v3467 = vunpack.c.l.b16 %v3115
        %v3468 = vunpack.c.l.b16 %v3116
        %v3469 = vunpack.c.l.b16 %v3117
        %v3470 = vunpack.c.l.b16 %v3118
        %v3471 = vunpack.c.l.b16 %v3119
        %v3472 = vunpack.c.l.b16 %v3120
        %v3473 = vunpack.c.l.b16 %v3121
        %v3474 = vunpack.c.l.b16 %v3122
        %v3475 = vunpack.c.l.b16 %v3123
        %v3476 = vunpack.c.l.b16 %v3124
        %v3477 = vunpack.c.l.b16 %v3125
        %v3478 = vunpack.c.l.b16 %v3126
        %v3479 = vunpack.c.l.b16 %v3127
        %v3480 = vunpack.c.l.b16 %v3128
        %v3481 = vunpack.c.l.b16 %v3129
        %v3482 = vunpack.c.l.b16 %v3130
        %v3483 = vunpack.c.l.b16 %v3131
        %v3484 = vunpack.c.l.b16 %v3132
        %v3485 = vunpack.c.l.b16 %v3133
        %v3486 = vunpack.c.l.b16 %v3134
        %v3487 = vunpack.c.l.b16 %v3135
        %v3488 = vunpack.c.l.b16 %v3136
        %v3489 = vunpack.c.l.b16 %v3137
        %v3490 = vunpack.c.l.b16 %v3138
        %v3491 = vunpack.c.l.b16 %v3139
        %v3492 = vunpack.c.l.b16 %v3140
        %v3493 = vunpack.c.l.b16 %v3141
        %v3494 = vunpack.c.l.b16 %v3142
        %v3495 = vpack.c.b16 %v3448, %v3447
        %v3496 = vpack.c.b16 %v3450, %v3449
        %v3497 = vpack.c.b16 %v3452, %v3451
        %v3498 = vpack.c.b16 %v3454, %v3453
        %v3499 = vpack.c.b16 %v3456, %v3455
        %v3500 = vpack.c.b16 %v3458, %v3457
        %v3501 = vpack.c.b16 %v3460, %v3459
        %v3502 = vpack.c.b16 %v3462, %v3461
        %v3503 = vpack.c.b16 %v3464, %v3463
        %v3504 = vpack.c.b16 %v3466, %v3465
        %v3505 = vpack.c.b16 %v3468, %v3467
        %v3506 = vpack.c.b16 %v3470, %v3469
        %v3507 = vpack.c.b16 %v3472, %v3471
        %v3508 = vpack.c.b16 %v3474, %v3473
        %v3509 = vpack.c.b16 %v3476, %v3475
        %v3510 = vpack.c.b16 %v3478, %v3477
        %v3511 = vpack.c.b16 %v3480, %v3479
        %v3512 = vpack.c.b16 %v3482, %v3481
        %v3513 = vpack.c.b16 %v3484, %v3483
        %v3514 = vpack.c.b16 %v3486, %v3485
        %v3515 = vpack.c.b16 %v3488, %v3487
        %v3516 = vpack.c.b16 %v3490, %v3489
        %v3517 = vpack.c.b16 %v3492, %v3491
        %v3518 = vpack.c.b16 %v3494, %v3493
        %3543 = vmatprep.subr.bf16.mxu0 0
        %3544 = vmatpush1.bf16.msra.mxu0 %v3502
        %3545 = vmatprep.subr.bf16.mxu0 0
        %3546 = vmatpush1.bf16.msra.mxu0 %v3501
        %3547 = vmatprep.subr.bf16.mxu0 0
        %3548 = vmatpush1.bf16.msra.mxu0 %v3500
        %3549 = vmatprep.subr.bf16.mxu0 0
        %3550 = vmatpush1.bf16.msra.mxu0 %v3499
        %3551 = vmatprep.subr.bf16.mxu0 0
        %3552 = vmatpush1.bf16.msra.mxu0 %v3498
        %3553 = vmatprep.subr.bf16.mxu0 0
        %3554 = vmatpush1.bf16.msra.mxu0 %v3497
        %3555 = vmatprep.subr.bf16.mxu0 0
        %3556 = vmatpush1.bf16.msra.mxu0 %v3496
        %3557 = vmatprep.subr.bf16.mxu0 0
        %3558 = vmatpush1.bf16.msra.mxu0 %v3495
        %3559 = vmatprep.subr.bf16.mxu0 0
        %3560 = vmatpush2.bf16.msra.mxu0 %v3510
        %3561 = vmatprep.subr.bf16.mxu0 0
        %3562 = vmatpush2.bf16.msra.mxu0 %v3509
        %3563 = vmatprep.subr.bf16.mxu0 0
        %3564 = vmatpush2.bf16.msra.mxu0 %v3508
        %3565 = vmatprep.subr.bf16.mxu0 0
        %3566 = vmatpush2.bf16.msra.mxu0 %v3507
        %3567 = vmatprep.subr.bf16.mxu0 0
        %3568 = vmatpush2.bf16.msra.mxu0 %v3506
        %3569 = vmatprep.subr.bf16.mxu0 0
        %3570 = vmatpush2.bf16.msra.mxu0 %v3505
        %3571 = vmatprep.subr.bf16.mxu0 0
        %3572 = vmatpush2.bf16.msra.mxu0 %v3504
        %3573 = vmatprep.subr.bf16.mxu0 0
        %3574 = vmatpush2.bf16.msra.mxu0 %v3503
        %3575 = vmatprep.mubr.bf16.mxu0 %v3304
        %3576 = vmatmul.mubr.bf16.gmra.mxu0 %v3303
        %v3577 = vpop.f32.mrf.mxu0
        %v3578 = vadd.f32 0.0, %v3577
        %v3579 = vpop.f32.mrf.mxu0
        %v3580 = vpop.f32.mrf.mxu0
        %v3581 = vadd.f32 0.0, %v3580
        %v3582 = vpop.f32.mrf.mxu0
        %3583 = vmatprep.mubr.bf16.mxu0 %v3307
        %3584 = vmatmul.mubr.bf16.gmra.mxu0 %v3306
        %v3585 = vpop.f32.mrf.mxu0
        %v3586 = vadd.f32 0.0, %v3585
        %v3587 = vpop.f32.mrf.mxu0
        %v3588 = vpop.f32.mrf.mxu0
        %v3589 = vadd.f32 0.0, %v3588
        %v3590 = vpop.f32.mrf.mxu0
        %3591 = vmatprep.mubr.bf16.mxu0 %v3310
        %3592 = vmatmul.mubr.bf16.gmra.mxu0 %v3309
        %v3593 = vpop.f32.mrf.mxu0
        %v3594 = vadd.f32 0.0, %v3593
        %v3595 = vpop.f32.mrf.mxu0
        %v3596 = vpop.f32.mrf.mxu0
        %v3597 = vadd.f32 0.0, %v3596
        %v3598 = vpop.f32.mrf.mxu0
        %3599 = vmatprep.mubr.bf16.mxu0 %v3313
        %3600 = vmatmul.mubr.bf16.gmra.mxu0 %v3312
        %v3601 = vpop.f32.mrf.mxu0
        %v3602 = vadd.f32 0.0, %v3601
        %v3603 = vpop.f32.mrf.mxu0
        %v3604 = vpop.f32.mrf.mxu0
        %v3605 = vadd.f32 0.0, %v3604
        %v3606 = vpop.f32.mrf.mxu0
        %3607 = vmatprep.mubr.bf16.mxu0 %v3316
        %3608 = vmatmul.mubr.bf16.gmra.mxu0 %v3315
        %v3609 = vpop.f32.mrf.mxu0
        %v3610 = vadd.f32 0.0, %v3609
        %v3611 = vpop.f32.mrf.mxu0
        %v3612 = vpop.f32.mrf.mxu0
        %v3613 = vadd.f32 0.0, %v3612
        %v3614 = vpop.f32.mrf.mxu0
        %3615 = vmatprep.mubr.bf16.mxu0 %v3319
        %3616 = vmatmul.mubr.bf16.gmra.mxu0 %v3318
        %v3617 = vpop.f32.mrf.mxu0
        %v3618 = vadd.f32 0.0, %v3617
        %v3619 = vpop.f32.mrf.mxu0
        %v3620 = vpop.f32.mrf.mxu0
        %v3621 = vadd.f32 0.0, %v3620
        %v3622 = vpop.f32.mrf.mxu0
        %3623 = vmatprep.mubr.bf16.mxu0 %v3322
        %3624 = vmatmul.mubr.bf16.gmra.mxu0 %v3321
        %v3625 = vpop.f32.mrf.mxu0
        %v3626 = vadd.f32 0.0, %v3625
        %v3627 = vpop.f32.mrf.mxu0
        %v3628 = vpop.f32.mrf.mxu0
        %v3629 = vadd.f32 0.0, %v3628
        %v3630 = vpop.f32.mrf.mxu0
        %3631 = vmatprep.mubr.bf16.mxu0 %v3325
        %3632 = vmatmul.mubr.bf16.gmra.mxu0 %v3324
        %v3633 = vpop.f32.mrf.mxu0
        %v3634 = vadd.f32 0.0, %v3633
        %v3635 = vpop.f32.mrf.mxu0
        %v3636 = vpop.f32.mrf.mxu0
        %v3637 = vadd.f32 0.0, %v3636
        %v3638 = vpop.f32.mrf.mxu0
        %3639 = vmatprep.mubr.bf16.mxu0 %v3328
        %3640 = vmatmul.mubr.bf16.gmra.mxu0 %v3327
        %v3641 = vpop.f32.mrf.mxu0
        %v3642 = vadd.f32 0.0, %v3641
        %v3643 = vpop.f32.mrf.mxu0
        %v3644 = vpop.f32.mrf.mxu0
        %v3645 = vadd.f32 0.0, %v3644
        %v3646 = vpop.f32.mrf.mxu0
        %3647 = vmatprep.mubr.bf16.mxu0 %v3331
        %3648 = vmatmul.mubr.bf16.gmra.mxu0 %v3330
        %v3649 = vpop.f32.mrf.mxu0
        %v3650 = vadd.f32 0.0, %v3649
        %v3651 = vpop.f32.mrf.mxu0
        %v3652 = vpop.f32.mrf.mxu0
        %v3653 = vadd.f32 0.0, %v3652
        %v3654 = vpop.f32.mrf.mxu0
        %3655 = vmatprep.mubr.bf16.mxu0 %v3334
        %3656 = vmatmul.mubr.bf16.gmra.mxu0 %v3333
        %v3657 = vpop.f32.mrf.mxu0
        %v3658 = vadd.f32 0.0, %v3657
        %v3659 = vpop.f32.mrf.mxu0
        %v3660 = vpop.f32.mrf.mxu0
        %v3661 = vadd.f32 0.0, %v3660
        %v3662 = vpop.f32.mrf.mxu0
        %3663 = vmatprep.mubr.bf16.mxu0 %v3337
        %3664 = vmatmul.mubr.bf16.gmra.mxu0 %v3336
        %v3665 = vpop.f32.mrf.mxu0
        %v3666 = vadd.f32 0.0, %v3665
        %v3667 = vpop.f32.mrf.mxu0
        %v3668 = vpop.f32.mrf.mxu0
        %v3669 = vadd.f32 0.0, %v3668
        %v3670 = vpop.f32.mrf.mxu0
        %3671 = vmatprep.mubr.bf16.mxu0 %v3340
        %3672 = vmatmul.mubr.bf16.gmra.mxu0 %v3339
        %v3673 = vpop.f32.mrf.mxu0
        %v3674 = vadd.f32 0.0, %v3673
        %v3675 = vpop.f32.mrf.mxu0
        %v3676 = vpop.f32.mrf.mxu0
        %v3677 = vadd.f32 0.0, %v3676
        %v3678 = vpop.f32.mrf.mxu0
        %3679 = vmatprep.mubr.bf16.mxu0 %v3343
        %3680 = vmatmul.mubr.bf16.gmra.mxu0 %v3342
        %v3681 = vpop.f32.mrf.mxu0
        %v3682 = vadd.f32 0.0, %v3681
        %v3683 = vpop.f32.mrf.mxu0
        %v3684 = vpop.f32.mrf.mxu0
        %v3685 = vadd.f32 0.0, %v3684
        %v3686 = vpop.f32.mrf.mxu0
        %3687 = vmatprep.mubr.bf16.mxu0 %v3346
        %3688 = vmatmul.mubr.bf16.gmra.mxu0 %v3345
        %v3689 = vpop.f32.mrf.mxu0
        %v3690 = vadd.f32 0.0, %v3689
        %v3691 = vpop.f32.mrf.mxu0
        %v3692 = vpop.f32.mrf.mxu0
        %v3693 = vadd.f32 0.0, %v3692
        %v3694 = vpop.f32.mrf.mxu0
        %3695 = vmatprep.mubr.bf16.mxu0 %v3349
        %3696 = vmatmul.mubr.bf16.gmra.mxu0 %v3348
        %v3697 = vpop.f32.mrf.mxu0
        %v3698 = vadd.f32 0.0, %v3697
        %v3699 = vpop.f32.mrf.mxu0
        %v3700 = vpop.f32.mrf.mxu0
        %v3701 = vadd.f32 0.0, %v3700
        %v3702 = vpop.f32.mrf.mxu0
        %3703 = vdwg.mxu0
        %3704 = vmatprep.subr.bf16.mxu0 0
        %3705 = vmatpush1.bf16.msra.mxu0 %v3518
        %3706 = vmatprep.subr.bf16.mxu0 0
        %3707 = vmatpush1.bf16.msra.mxu0 %v3517
        %3708 = vmatprep.subr.bf16.mxu0 0
        %3709 = vmatpush1.bf16.msra.mxu0 %v3516
        %3710 = vmatprep.subr.bf16.mxu0 0
        %3711 = vmatpush1.bf16.msra.mxu0 %v3515
        %3712 = vmatprep.subr.bf16.mxu0 0
        %3713 = vmatpush1.bf16.msra.mxu0 %v3514
        %3714 = vmatprep.subr.bf16.mxu0 0
        %3715 = vmatpush1.bf16.msra.mxu0 %v3513
        %3716 = vmatprep.subr.bf16.mxu0 0
        %3717 = vmatpush1.bf16.msra.mxu0 %v3512
        %3718 = vmatprep.subr.bf16.mxu0 0
        %3719 = vmatpush1.bf16.msra.mxu0 %v3511
        %3720 = vmatprep.subr.bf16.mxu0 0
        %3721 = vmatpush2.bf16.msra.mxu0 0
        %3722 = vmatprep.subr.bf16.mxu0 0
        %3723 = vmatpush2.bf16.msra.mxu0 0
        %3724 = vmatprep.subr.bf16.mxu0 0
        %3725 = vmatpush2.bf16.msra.mxu0 0
        %3726 = vmatprep.subr.bf16.mxu0 0
        %3727 = vmatpush2.bf16.msra.mxu0 0
        %3728 = vmatprep.subr.bf16.mxu0 0
        %3729 = vmatpush2.bf16.msra.mxu0 0
        %3730 = vmatprep.subr.bf16.mxu0 0
        %3731 = vmatpush2.bf16.msra.mxu0 0
        %3732 = vmatprep.subr.bf16.mxu0 0
        %3733 = vmatpush2.bf16.msra.mxu0 0
        %3734 = vmatprep.subr.bf16.mxu0 0
        %3735 = vmatpush2.bf16.msra.mxu0 0
        %3736 = vmatprep.mubr.bf16.mxu0 0
        %3737 = vmatmul.mubr.bf16.gmra.mxu0 %v3305
        %v3738 = vpop.f32.mrf.mxu0
        %v3739 = vadd.f32 %v3578, %v3738
        %v3740 = vpop.f32.mrf.mxu0
        %v3741 = vpop.f32.mrf.mxu0
        %v3742 = vadd.f32 %v3581, %v3741
        %v3743 = vpop.f32.mrf.mxu0
        %3744 = vmatprep.mubr.bf16.mxu0 0
        %3745 = vmatmul.mubr.bf16.gmra.mxu0 %v3308
        %v3746 = vpop.f32.mrf.mxu0
        %v3747 = vadd.f32 %v3586, %v3746
        %v3748 = vpop.f32.mrf.mxu0
        %v3749 = vpop.f32.mrf.mxu0
        %v3750 = vadd.f32 %v3589, %v3749
        %v3751 = vpop.f32.mrf.mxu0
        %3752 = vmatprep.mubr.bf16.mxu0 0
        %3753 = vmatmul.mubr.bf16.gmra.mxu0 %v3311
        %v3754 = vpop.f32.mrf.mxu0
        %v3755 = vadd.f32 %v3594, %v3754
        %v3756 = vpop.f32.mrf.mxu0
        %v3757 = vpop.f32.mrf.mxu0
        %v3758 = vadd.f32 %v3597, %v3757
        %v3759 = vpop.f32.mrf.mxu0
        %3760 = vmatprep.mubr.bf16.mxu0 0
        %3761 = vmatmul.mubr.bf16.gmra.mxu0 %v3314
        %v3762 = vpop.f32.mrf.mxu0
        %v3763 = vadd.f32 %v3602, %v3762
        %v3764 = vpop.f32.mrf.mxu0
        %v3765 = vpop.f32.mrf.mxu0
        %v3766 = vadd.f32 %v3605, %v3765
        %v3767 = vpop.f32.mrf.mxu0
        %3768 = vmatprep.mubr.bf16.mxu0 0
        %3769 = vmatmul.mubr.bf16.gmra.mxu0 %v3317
        %v3770 = vpop.f32.mrf.mxu0
        %v3771 = vadd.f32 %v3610, %v3770
        %v3772 = vpop.f32.mrf.mxu0
        %v3773 = vpop.f32.mrf.mxu0
        %v3774 = vadd.f32 %v3613, %v3773
        %v3775 = vpop.f32.mrf.mxu0
        %3776 = vmatprep.mubr.bf16.mxu0 0
        %3777 = vmatmul.mubr.bf16.gmra.mxu0 %v3320
        %v3778 = vpop.f32.mrf.mxu0
        %v3779 = vadd.f32 %v3618, %v3778
        %v3780 = vpop.f32.mrf.mxu0
        %v3781 = vpop.f32.mrf.mxu0
        %v3782 = vadd.f32 %v3621, %v3781
        %v3783 = vpop.f32.mrf.mxu0
        %3784 = vmatprep.mubr.bf16.mxu0 0
        %3785 = vmatmul.mubr.bf16.gmra.mxu0 %v3323
        %v3786 = vpop.f32.mrf.mxu0
        %v3787 = vadd.f32 %v3626, %v3786
        %v3788 = vpop.f32.mrf.mxu0
        %v3789 = vpop.f32.mrf.mxu0
        %v3790 = vadd.f32 %v3629, %v3789
        %v3791 = vpop.f32.mrf.mxu0
        %3792 = vmatprep.mubr.bf16.mxu0 0
        %3793 = vmatmul.mubr.bf16.gmra.mxu0 %v3326
        %v3794 = vpop.f32.mrf.mxu0
        %v3795 = vadd.f32 %v3634, %v3794
        %v3796 = vpop.f32.mrf.mxu0
        %v3797 = vpop.f32.mrf.mxu0
        %v3798 = vadd.f32 %v3637, %v3797
        %v3799 = vpop.f32.mrf.mxu0
        %3800 = vmatprep.mubr.bf16.mxu0 0
        %3801 = vmatmul.mubr.bf16.gmra.mxu0 %v3329
        %v3802 = vpop.f32.mrf.mxu0
        %v3803 = vadd.f32 %v3642, %v3802
        %v3804 = vpop.f32.mrf.mxu0
        %v3805 = vpop.f32.mrf.mxu0
        %v3806 = vadd.f32 %v3645, %v3805
        %v3807 = vpop.f32.mrf.mxu0
        %3808 = vmatprep.mubr.bf16.mxu0 0
        %3809 = vmatmul.mubr.bf16.gmra.mxu0 %v3332
        %v3810 = vpop.f32.mrf.mxu0
        %v3811 = vadd.f32 %v3650, %v3810
        %v3812 = vpop.f32.mrf.mxu0
        %v3813 = vpop.f32.mrf.mxu0
        %v3814 = vadd.f32 %v3653, %v3813
        %v3815 = vpop.f32.mrf.mxu0
        %3816 = vmatprep.mubr.bf16.mxu0 0
        %3817 = vmatmul.mubr.bf16.gmra.mxu0 %v3335
        %v3818 = vpop.f32.mrf.mxu0
        %v3819 = vadd.f32 %v3658, %v3818
        %v3820 = vpop.f32.mrf.mxu0
        %v3821 = vpop.f32.mrf.mxu0
        %v3822 = vadd.f32 %v3661, %v3821
        %v3823 = vpop.f32.mrf.mxu0
        %3824 = vmatprep.mubr.bf16.mxu0 0
        %3825 = vmatmul.mubr.bf16.gmra.mxu0 %v3338
        %v3826 = vpop.f32.mrf.mxu0
        %v3827 = vadd.f32 %v3666, %v3826
        %v3828 = vpop.f32.mrf.mxu0
        %v3829 = vpop.f32.mrf.mxu0
        %v3830 = vadd.f32 %v3669, %v3829
        %v3831 = vpop.f32.mrf.mxu0
        %3832 = vmatprep.mubr.bf16.mxu0 0
        %3833 = vmatmul.mubr.bf16.gmra.mxu0 %v3341
        %v3834 = vpop.f32.mrf.mxu0
        %v3835 = vadd.f32 %v3674, %v3834
        %v3836 = vpop.f32.mrf.mxu0
        %v3837 = vpop.f32.mrf.mxu0
        %v3838 = vadd.f32 %v3677, %v3837
        %v3839 = vpop.f32.mrf.mxu0
        %3840 = vmatprep.mubr.bf16.mxu0 0
        %3841 = vmatmul.mubr.bf16.gmra.mxu0 %v3344
        %v3842 = vpop.f32.mrf.mxu0
        %v3843 = vadd.f32 %v3682, %v3842
        %v3844 = vpop.f32.mrf.mxu0
        %v3845 = vpop.f32.mrf.mxu0
        %v3846 = vadd.f32 %v3685, %v3845
        %v3847 = vpop.f32.mrf.mxu0
        %3848 = vmatprep.mubr.bf16.mxu0 0
        %3849 = vmatmul.mubr.bf16.gmra.mxu0 %v3347
        %v3850 = vpop.f32.mrf.mxu0
        %v3851 = vadd.f32 %v3690, %v3850
        %v3852 = vpop.f32.mrf.mxu0
        %v3853 = vpop.f32.mrf.mxu0
        %v3854 = vadd.f32 %v3693, %v3853
        %v3855 = vpop.f32.mrf.mxu0
        %3856 = vmatprep.mubr.bf16.mxu0 0
        %3857 = vmatmul.mubr.bf16.gmra.mxu0 %v3350
        %v3858 = vpop.f32.mrf.mxu0
        %v3859 = vadd.f32 %v3698, %v3858
        %v3860 = vpop.f32.mrf.mxu0
        %v3861 = vpop.f32.mrf.mxu0
        %v3862 = vadd.f32 %v3701, %v3861
        %v3863 = vpop.f32.mrf.mxu0
        %3864 = vdwg.mxu0
        %v3865 = vadd.f32 %v2903, %v3739
        %v3866 = vadd.f32 %v2906, %v3742
        %v3867 = vadd.f32 %v2911, %v3747
        %v3868 = vadd.f32 %v2914, %v3750
        %v3869 = vadd.f32 %v2919, %v3755
        %v3870 = vadd.f32 %v2922, %v3758
        %v3871 = vadd.f32 %v2927, %v3763
        %v3872 = vadd.f32 %v2930, %v3766
        %v3873 = vadd.f32 %v2935, %v3771
        %v3874 = vadd.f32 %v2938, %v3774
        %v3875 = vadd.f32 %v2943, %v3779
        %v3876 = vadd.f32 %v2946, %v3782
        %v3877 = vadd.f32 %v2951, %v3787
        %v3878 = vadd.f32 %v2954, %v3790
        %v3879 = vadd.f32 %v2959, %v3795
        %v3880 = vadd.f32 %v2962, %v3798
        %v3881 = vadd.f32 %v2967, %v3803
        %v3882 = vadd.f32 %v2970, %v3806
        %v3883 = vadd.f32 %v2975, %v3811
        %v3884 = vadd.f32 %v2978, %v3814
        %v3885 = vadd.f32 %v2983, %v3819
        %v3886 = vadd.f32 %v2986, %v3822
        %v3887 = vadd.f32 %v2991, %v3827
        %v3888 = vadd.f32 %v2994, %v3830
        %v3889 = vadd.f32 %v2999, %v3835
        %v3890 = vadd.f32 %v3002, %v3838
        %v3891 = vadd.f32 %v3007, %v3843
        %v3892 = vadd.f32 %v3010, %v3846
        %v3893 = vadd.f32 %v3015, %v3851
        %v3894 = vadd.f32 %v3018, %v3854
        %v3895 = vadd.f32 %v3023, %v3859
        %v3896 = vadd.f32 %v3026, %v3862
        %v3897 = vld [vmem:[%s4] sm:$0x1]
        %v3899 = vlaneseq
        %v3900 = vshrl.u32 %v3899, 7
        %v3901 = vsub.s32 0, %v3900
        %v3902 = vrot.slane %v3897, %v3901
        %v3904 = vadd.f32 %v3865, %v3902
        %v3905 = vadd.f32 %v3866, %v3902
        %v3906 = vadd.f32 %v3867, %v3902
        %v3907 = vadd.f32 %v3868, %v3902
        %v3908 = vadd.f32 %v3869, %v3902
        %v3909 = vadd.f32 %v3870, %v3902
        %v3910 = vadd.f32 %v3871, %v3902
        %v3911 = vadd.f32 %v3872, %v3902
        %v3912 = vadd.f32 %v3873, %v3902
        %v3913 = vadd.f32 %v3874, %v3902
        %v3914 = vadd.f32 %v3875, %v3902
        %v3915 = vadd.f32 %v3876, %v3902
        %v3916 = vadd.f32 %v3877, %v3902
        %v3917 = vadd.f32 %v3878, %v3902
        %v3918 = vadd.f32 %v3879, %v3902
        %v3919 = vadd.f32 %v3880, %v3902
        %v3920 = vadd.f32 %v3881, %v3902
        %v3921 = vadd.f32 %v3882, %v3902
        %v3922 = vadd.f32 %v3883, %v3902
        %v3923 = vadd.f32 %v3884, %v3902
        %v3924 = vadd.f32 %v3885, %v3902
        %v3925 = vadd.f32 %v3886, %v3902
        %v3926 = vadd.f32 %v3887, %v3902
        %v3927 = vadd.f32 %v3888, %v3902
        %v3928 = vadd.f32 %v3889, %v3902
        %v3929 = vadd.f32 %v3890, %v3902
        %v3930 = vadd.f32 %v3891, %v3902
        %v3931 = vadd.f32 %v3892, %v3902
        %v3932 = vadd.f32 %v3893, %v3902
        %v3933 = vadd.f32 %v3894, %v3902
        %v3934 = vadd.f32 %v3895, %v3902
        %v3935 = vadd.f32 %v3896, %v3902
        %v3936 = vmax.f32 %v3904, 0.0
        %v3937 = vmax.f32 %v3905, 0.0
        %v3938 = vmax.f32 %v3906, 0.0
        %v3939 = vmax.f32 %v3907, 0.0
        %v3940 = vmax.f32 %v3908, 0.0
        %v3941 = vmax.f32 %v3909, 0.0
        %v3942 = vmax.f32 %v3910, 0.0
        %v3943 = vmax.f32 %v3911, 0.0
        %v3944 = vmax.f32 %v3912, 0.0
        %v3945 = vmax.f32 %v3913, 0.0
        %v3946 = vmax.f32 %v3914, 0.0
        %v3947 = vmax.f32 %v3915, 0.0
        %v3948 = vmax.f32 %v3916, 0.0
        %v3949 = vmax.f32 %v3917, 0.0
        %v3950 = vmax.f32 %v3918, 0.0
        %v3951 = vmax.f32 %v3919, 0.0
        %v3952 = vmax.f32 %v3920, 0.0
        %v3953 = vmax.f32 %v3921, 0.0
        %v3954 = vmax.f32 %v3922, 0.0
        %v3955 = vmax.f32 %v3923, 0.0
        %v3956 = vmax.f32 %v3924, 0.0
        %v3957 = vmax.f32 %v3925, 0.0
        %v3958 = vmax.f32 %v3926, 0.0
        %v3959 = vmax.f32 %v3927, 0.0
        %v3960 = vmax.f32 %v3928, 0.0
        %v3961 = vmax.f32 %v3929, 0.0
        %v3962 = vmax.f32 %v3930, 0.0
        %v3963 = vmax.f32 %v3931, 0.0
        %v3964 = vmax.f32 %v3932, 0.0
        %v3965 = vmax.f32 %v3933, 0.0
        %v3966 = vmax.f32 %v3934, 0.0
        %v3967 = vmax.f32 %v3935, 0.0
        %v3968 = vadd.f32 %v3936, %v3937
        %v3969 = vadd.f32 %v3968, %v3938
        %v3970 = vadd.f32 %v3969, %v3939
        %v3971 = vadd.f32 %v3970, %v3940
        %v3972 = vadd.f32 %v3971, %v3941
        %v3973 = vadd.f32 %v3972, %v3942
        %v3974 = vadd.f32 %v3973, %v3943
        %v3975 = vadd.f32 %v3974, %v3944
        %v3976 = vadd.f32 %v3975, %v3945
        %v3977 = vadd.f32 %v3976, %v3946
        %v3978 = vadd.f32 %v3977, %v3947
        %v3979 = vadd.f32 %v3978, %v3948
        %v3980 = vadd.f32 %v3979, %v3949
        %v3981 = vadd.f32 %v3980, %v3950
        %v3982 = vadd.f32 %v3981, %v3951
        %v3983 = vadd.f32 %v3982, %v3952
        %v3984 = vadd.f32 %v3983, %v3953
        %v3985 = vadd.f32 %v3984, %v3954
        %v3986 = vadd.f32 %v3985, %v3955
        %v3987 = vadd.f32 %v3986, %v3956
        %v3988 = vadd.f32 %v3987, %v3957
        %v3989 = vadd.f32 %v3988, %v3958
        %v3990 = vadd.f32 %v3989, %v3959
        %v3991 = vadd.f32 %v3990, %v3960
        %v3992 = vadd.f32 %v3991, %v3961
        %v3993 = vadd.f32 %v3992, %v3962
        %v3994 = vadd.f32 %v3993, %v3963
        %v3995 = vadd.f32 %v3994, %v3964
        %v3996 = vadd.f32 %v3995, %v3965
        %v3997 = vadd.f32 %v3996, %v3966
        %v3998 = vadd.f32 %v3997, %v3967
        %v3999 = vrot.slane %v3998, 4
        %v4000 = vadd.f32 %v3998, %v3999
        %v4001 = vrot.slane %v4000, 2
        %v4002 = vadd.f32 %v4000, %v4001
        %v4003 = vrot.slane %v4002, 1
        %v4004 = vadd.f32 %v4002, %v4003
        %v4005 = vmul.f32 %v4004, 0.00390625
        %v4006 = vpack.c.bf16 %v4005, %v4005
        %v4007 = vld [vmem:[%s5] sm:$0xf]
        %v4008 = vld [vmem:[%s5 + $0x4] sm:$0xf]
        %v4009 = vld [vmem:[%s5 + $0x8] sm:$0xf]
        %v4010 = vld [vmem:[%s5 + $0xc] sm:$0xf]
        %v4011 = vld [vmem:[%s5 + $0x10] sm:$0xf]
        %v4012 = vld [vmem:[%s5 + $0x14] sm:$0xf]
        %v4013 = vld [vmem:[%s5 + $0x18] sm:$0xf]
        %v4014 = vld [vmem:[%s5 + $0x1c] sm:$0xf]
        %v4015 = vld [vmem:[%s5 + $0x20] sm:$0xf]
        %v4016 = vld [vmem:[%s5 + $0x24] sm:$0xf]
        %v4017 = vld [vmem:[%s5 + $0x28] sm:$0xf]
        %v4018 = vld [vmem:[%s5 + $0x2c] sm:$0xf]
        %v4019 = vld [vmem:[%s5 + $0x30] sm:$0xf]
        %v4020 = vld [vmem:[%s5 + $0x34] sm:$0xf]
        %v4021 = vld [vmem:[%s5 + $0x38] sm:$0xf]
        %v4022 = vld [vmem:[%s5 + $0x3c] sm:$0xf]
        %v4023 = vld [vmem:[%s6] sm:$0x1]
        %v4040 = vunpack.c.l.b16 %v4007
        %v4041 = vunpack.c.l.b16 %v4008
        %v4042 = vunpack.c.l.b16 %v4009
        %v4043 = vunpack.c.l.b16 %v4010
        %v4044 = vunpack.c.l.b16 %v4011
        %v4045 = vunpack.c.l.b16 %v4012
        %v4046 = vunpack.c.l.b16 %v4013
        %v4047 = vunpack.c.l.b16 %v4014
        %v4048 = vunpack.c.l.b16 %v4015
        %v4049 = vunpack.c.l.b16 %v4016
        %v4050 = vunpack.c.l.b16 %v4017
        %v4051 = vunpack.c.l.b16 %v4018
        %v4052 = vunpack.c.l.b16 %v4019
        %v4053 = vunpack.c.l.b16 %v4020
        %v4054 = vunpack.c.l.b16 %v4021
        %v4055 = vunpack.c.l.b16 %v4022
        %v4056 = vpack.c.b16 %v4041, %v4040
        %v4057 = vpack.c.b16 %v4043, %v4042
        %v4058 = vpack.c.b16 %v4045, %v4044
        %v4059 = vpack.c.b16 %v4047, %v4046
        %v4060 = vpack.c.b16 %v4049, %v4048
        %v4061 = vpack.c.b16 %v4051, %v4050
        %v4062 = vpack.c.b16 %v4053, %v4052
        %v4063 = vpack.c.b16 %v4055, %v4054
        %4072 = vmatprep.subr.bf16.mxu0 0
        %4073 = vmatpush1.bf16.msra.mxu0 %v4063
        %4074 = vmatprep.subr.bf16.mxu0 0
        %4075 = vmatpush1.bf16.msra.mxu0 %v4062
        %4076 = vmatprep.subr.bf16.mxu0 0
        %4077 = vmatpush1.bf16.msra.mxu0 %v4061
        %4078 = vmatprep.subr.bf16.mxu0 0
        %4079 = vmatpush1.bf16.msra.mxu0 %v4060
        %4080 = vmatprep.subr.bf16.mxu0 0
        %4081 = vmatpush1.bf16.msra.mxu0 %v4059
        %4082 = vmatprep.subr.bf16.mxu0 0
        %4083 = vmatpush1.bf16.msra.mxu0 %v4058
        %4084 = vmatprep.subr.bf16.mxu0 0
        %4085 = vmatpush1.bf16.msra.mxu0 %v4057
        %4086 = vmatprep.subr.bf16.mxu0 0
        %4087 = vmatpush1.bf16.msra.mxu0 %v4056
        %4088 = vmatprep.subr.bf16.mxu0 0
        %4089 = vmatpush2.bf16.msra.mxu0 0
        %4090 = vmatprep.subr.bf16.mxu0 0
        %4091 = vmatpush2.bf16.msra.mxu0 0
        %4092 = vmatprep.subr.bf16.mxu0 0
        %4093 = vmatpush2.bf16.msra.mxu0 0
        %4094 = vmatprep.subr.bf16.mxu0 0
        %4095 = vmatpush2.bf16.msra.mxu0 0
        %4096 = vmatprep.subr.bf16.mxu0 0
        %4097 = vmatpush2.bf16.msra.mxu0 0
        %4098 = vmatprep.subr.bf16.mxu0 0
        %4099 = vmatpush2.bf16.msra.mxu0 0
        %4100 = vmatprep.subr.bf16.mxu0 0
        %4101 = vmatpush2.bf16.msra.mxu0 0
        %4102 = vmatprep.subr.bf16.mxu0 0
        %4103 = vmatpush2.bf16.msra.mxu0 0
        %4104 = vmatprep.mubr.bf16.mxu0 0
        %4105 = vmatmul.mubr.bf16.gmra.mxu0 %v4006
        %v4106 = vpop.f32.mrf.mxu0
        %v4107 = vadd.f32 %v4023, %v4106
        %v4108 = vpop.f32.mrf.mxu0
        %v4109 = vpop.f32.mrf.mxu0
        %v4110 = vpop.f32.mrf.mxu0
        %4111 = vdwg.mxu0
        %v4112 = vsub.f32 0.0, %v4107
        %v4113 = vmul.f32 %v4112, 1.442695
        %v4114 = vpow.pop %v4113
        %v4115 = vadd.f32 %v4114, 1.0
        %v4116 = vrcp.pop %v4115
        %v4117 = vmul.f32 1.0, %v4116
        %4118 = vst [vmem:[%s270] sm:$0x1] %v4117
        %s4119 = sand.u32 %s181, 1
        %s4120 = scalar_lea.sflag [#allocation4], %s4119
        %s4121 = sand.u32 %s181, 1
        %s4122 = scalar_lea.vmem [#allocation3], %s4121
        // Predicated region
        $region49: #{design_feature_generator.1} parent=47 // pred_check
          %p4123 = pneg %p191
        $region50: #{design_feature_generator.1} parent=47 // pred_check_branch
          %4125 = sbr.rel (%p4123) target = $region52
        $region51: #{design_feature_generator.1} parent=47 // pred_region
          %s4127 = ssub.s32 16, 16
          %4128 = vsyncadd %s4120, %s4127
          %s4129 = smul.addr %s21, 16
          %s4130 = scalar_lea.hbm %s7, %s4129
          %s4132 = sshll.u32 %s4122, 4
          %s4133 = int_to_ptr.vmem [resolvable:$true] %s4132
          %4135 = dma.vmem_to_hbm [thread:$0]  %s4133, 16, %s4130, %s4120
        $region52: #{design_feature_generator.1} parent=47 // pred_fallthru
          _
      $region48: #{design_feature_generator.1} parent=5 // pred_fallthru
        _
      %p4136 = scmp.le.s32.totalorder 2, %s16
      // Predicated region
      $region53: #{design_feature_generator.1} parent=5 // pred_check
        %p4137 = pneg %p4136
      $region54: #{design_feature_generator.1} parent=5 // pred_check_branch
        %4139 = sbr.rel (%p4137) target = $region56
      $region55: #{design_feature_generator.1} parent=5 // pred_region
        %s4140 = ssub.s32 %s16, 2
        // Predicated region
        $region57: #{design_feature_generator.1} parent=55 // pred_check
          %p4141 = pneg %p197
        $region58: #{design_feature_generator.1} parent=55 // pred_check_branch
          %4143 = sbr.rel (%p4141) target = $region60
        $region59: #{design_feature_generator.1} parent=55 // pred_region
          %s4144 = sand.u32 %s182, 1
          %s4145 = scalar_lea.sflag [#allocation4], %s4144
          %s4146 = sand.u32 %s182, 1
          %s4147 = scalar_lea.vmem [#allocation3], %s4146
          %4148 = dma.done %s4145, 16
        $region60: #{design_feature_generator.1} parent=55 // pred_fallthru
          _
      $region56: #{design_feature_generator.1} parent=5 // pred_fallthru
        _
    $region6: #{design_feature_generator.1} parent=1 // loop_footer
      %s20 = sadd.s32 1, %s16
    $region7: #{design_feature_generator.1} parent=1 // loop_footer_branch
      %15 = sbr.rel target = $region3
    $region8: #{design_feature_generator.1} parent=1 // loop_exit
      _
    %4149 = vsyncpa [#allocation4], 1
    %s4150 = scalar_lea.sflag [#allocation4], 1
    %4151 = vsyncpa %s4150, 1

</llo_original>
